<compile_context>
chip_gen: v7x
topology: tpu7x:2x2x1
jax: 0.10.0
libtpu: 0.0.40
codegen_flags: <defaults>
</compile_context>

<pallas_src>
import math

import jax
import jax.numpy as jnp
from jax.experimental import pallas as pl
from jax.experimental.pallas import tpu as pltpu

# ---------------- config (small, BERT-like) ----------------
VOCAB_SIZE = 64
HIDDEN = 32
NUM_HEADS = 4
HEAD_DIM = HIDDEN // NUM_HEADS
INTERMEDIATE = 64
NUM_LAYERS = 2
MAX_POS = 16
TYPE_VOCAB = 2
LN_EPS = 1e-12
BATCH = 2
SEQ = 8


# ---------------- in-kernel helpers (f32 math) ----------------
def _layernorm(y, g, b):
    mean = jnp.mean(y, axis=-1, keepdims=True)
    var = jnp.mean((y - mean) ** 2, axis=-1, keepdims=True)
    return (y - mean) * jax.lax.rsqrt(var + LN_EPS) * g + b


def _gelu(y):
    # TODO(synk): exact erf-based GELU (HF default) if/when erf lowering is guaranteed in Mosaic.
    c = math.sqrt(2.0 / math.pi)
    return 0.5 * y * (1.0 + jnp.tanh(c * (y + 0.044715 * y * y * y)))


# ---------------- one grid step == one transformer layer ----------------
def _bert_layer_kernel(x_emb_ref, mask_ref, emb_g_ref, emb_b_ref,
                       wq_ref, bq_ref, wk_ref, bk_ref, wv_ref, bv_ref,
                       wo_ref, bo_ref, ln1g_ref, ln1b_ref,
                       wi_ref, bi_ref, wo2_ref, bo2_ref, ln2g_ref, ln2b_ref,
                       o_ref):
    B = mask_ref.shape[0]
    S = mask_ref.shape[2]
    T, H = o_ref.shape                  # T = B*S
    NH = NUM_HEADS
    DH = H // NH

    # Step 0: embedding LayerNorm initializes the residual stream.  The output
    # block index is constant over the grid, so o_ref is the VMEM-resident
    # accumulator carrying the hidden state across layer steps.
    @pl.when(pl.program_id(0) == 0)
    def _():
        o_ref[...] = _layernorm(x_emb_ref[...], emb_g_ref[...], emb_b_ref[...])

    x = o_ref[...]                                     # (T, H) f32
    x_bf = x.astype(jnp.bfloat16)

    # Q/K/V: three lane-offset-0 (T,H)x(H,H) matmuls, bf16 operands, f32 accum.
    # 1/sqrt(DH) is folded into wq/bq host-side.
    q = jnp.dot(x_bf, wq_ref[...], preferred_element_type=jnp.float32) + bq_ref[...]
    k = jnp.dot(x_bf, wk_ref[...], preferred_element_type=jnp.float32) + bk_ref[...]
    v = jnp.dot(x_bf, wv_ref[...], preferred_element_type=jnp.float32) + bv_ref[...]

    mask = mask_ref[...]                               # (B, 1, S) additive bias

    attn = jnp.zeros((T, H), jnp.float32)
    # Static per-head loop; the batch dim is handled inside each einsum
    # (batch loop collapsed).  Head merge is folded into per-head output
    # projections — no concatenates of sub-128-lane pieces.
    for h in range(NH):
        lo = h * DH
        qh = q[:, lo:lo + DH].reshape(B, S, DH).astype(jnp.bfloat16)
        kh = k[:, lo:lo + DH].reshape(B, S, DH).astype(jnp.bfloat16)
        vh = v[:, lo:lo + DH].reshape(B, S, DH).astype(jnp.bfloat16)

        s = jnp.einsum('bqd,bkd->bqk', qh, kh,
                       preferred_element_type=jnp.float32) + mask       # (B,S,S)
        s = s - jnp.max(s, axis=-1, keepdims=True)
        e = jnp.exp(s)
        p = e * pl.reciprocal(jnp.sum(e, axis=-1, keepdims=True), approx=True)

        ctx = jnp.einsum('bqk,bkd->bqd', p.astype(jnp.bfloat16), vh,
                         preferred_element_type=jnp.float32)            # (B,S,DH)

        attn = attn + jnp.dot(ctx.reshape(T, DH).astype(jnp.bfloat16),
                              wo_ref[h],                                # (DH, H)
                              preferred_element_type=jnp.float32)
    attn = attn + bo_ref[...]
    x = _layernorm(attn + x, ln1g_ref[...], ln1b_ref[...])

    # Feed-forward (bf16 MXU operands, f32 GELU / LayerNorm).
    inter = _gelu(jnp.dot(x.astype(jnp.bfloat16), wi_ref[...],
                          preferred_element_type=jnp.float32) + bi_ref[...])
    ffn = jnp.dot(inter.astype(jnp.bfloat16), wo2_ref[...],
                  preferred_element_type=jnp.float32) + bo2_ref[...]
    o_ref[...] = _layernorm(ffn + x, ln2g_ref[...], ln2b_ref[...])


# ---------------- parameter init (deterministic, synthetic) ----------------
def init_params(key):
    keys = iter(jax.random.split(key, 8 + NUM_LAYERS * 8))

    def normal(shape):
        return 0.02 * jax.random.normal(next(keys), shape, dtype=jnp.float32)

    params = {
        "word_emb": normal((VOCAB_SIZE, HIDDEN)),
        "pos_emb": normal((MAX_POS, HIDDEN)),
        "type_emb": normal((TYPE_VOCAB, HIDDEN)),
        "emb_ln_g": jnp.ones((HIDDEN,), jnp.float32),
        "emb_ln_b": jnp.zeros((HIDDEN,), jnp.float32),
        "layers": [],
    }
    for _ in range(NUM_LAYERS):
        params["layers"].append({
            "wq": normal((HIDDEN, HIDDEN)), "bq": jnp.zeros((HIDDEN,), jnp.float32),
            "wk": normal((HIDDEN, HIDDEN)), "bk": jnp.zeros((HIDDEN,), jnp.float32),
            "wv": normal((HIDDEN, HIDDEN)), "bv": jnp.zeros((HIDDEN,), jnp.float32),
            "wo": normal((HIDDEN, HIDDEN)), "bo": jnp.zeros((HIDDEN,), jnp.float32),
            "ln1_g": jnp.ones((HIDDEN,), jnp.float32),
            "ln1_b": jnp.zeros((HIDDEN,), jnp.float32),
            "wi": normal((HIDDEN, INTERMEDIATE)),
            "bi": jnp.zeros((INTERMEDIATE,), jnp.float32),
            "wo2": normal((INTERMEDIATE, HIDDEN)),
            "bo2": jnp.zeros((HIDDEN,), jnp.float32),
            "ln2_g": jnp.ones((HIDDEN,), jnp.float32),
            "ln2_b": jnp.zeros((HIDDEN,), jnp.float32),
        })
    return params


# ---------------- forward pass (BertEncoder.forward semantics) ----------------
def bert_encoder_forward(params, input_ids, attention_mask):
    B, S = input_ids.shape
    H, NH, DH, I, L = HIDDEN, NUM_HEADS, HEAD_DIM, INTERMEDIATE, NUM_LAYERS
    T = B * S

    # --- embeddings (gather glue, plain JAX; token_type_ids = 0, eval mode) ---
    emb = (jnp.take(params["word_emb"], input_ids, axis=0)
           + params["pos_emb"][:S][None, :, :]
           + params["type_emb"][0][None, None, :])
    x = emb.reshape(T, H).astype(jnp.float32)

    # --- additive attention-mask bias, (B, 1, S); broadcast happens in-kernel ---
    mask_bias = ((1.0 - attention_mask.astype(jnp.float32)) * (-1e9))[:, None, :]

    # --- per-layer weight stacks (bf16 matmul weights, f32 biases / LN params) ---
    layers = params["layers"]
    stack = lambda name: jnp.stack([lyr[name] for lyr in layers])
    to_bf = lambda a: a.astype(jnp.bfloat16)
    scale = 1.0 / math.sqrt(DH)

    wq = to_bf(stack("wq") * scale)                  # fold 1/sqrt(DH) into q proj
    bq = (stack("bq") * scale)[:, None, :]
    wk, bk = to_bf(stack("wk")), stack("bk")[:, None, :]
    wv, bv = to_bf(stack("wv")), stack("bv")[:, None, :]
    wo_r = to_bf(stack("wo").reshape(L, NH, DH, H))  # head-major output projection
    bo = stack("bo")[:, None, :]
    ln1g, ln1b = stack("ln1_g")[:, None, :], stack("ln1_b")[:, None, :]
    wi, bi = to_bf(stack("wi")), stack("bi")[:, None, :]
    wo2, bo2 = to_bf(stack("wo2")), stack("bo2")[:, None, :]
    ln2g, ln2b = stack("ln2_g")[:, None, :], stack("ln2_b")[:, None, :]

    per_layer_w = lambda shp: pl.BlockSpec((None,) + shp, lambda l: (l,) + (0,) * len(shp))
    resident_2d = lambda shp: pl.BlockSpec(shp, lambda l: (0, 0))

    grid_spec = pltpu.PrefetchScalarGridSpec(
        num_scalar_prefetch=0,
        grid=(L,),                                   # one grid step per layer
        in_specs=[
            resident_2d((T, H)),                                 # x (embeddings)
            pl.BlockSpec((B, 1, S), lambda l: (0, 0, 0)),        # mask bias
            resident_2d((1, H)),                                 # emb LN gamma
            resident_2d((1, H)),                                 # emb LN beta
            per_layer_w((H, H)),   per_layer_w((1, H)),          # wq, bq
            per_layer_w((H, H)),   per_layer_w((1, H)),          # wk, bk
            per_layer_w((H, H)),   per_layer_w((1, H)),          # wv, bv
            per_layer_w((NH, DH, H)), per_layer_w((1, H)),       # wo (head-major), bo
            per_layer_w((1, H)),   per_layer_w((1, H)),          # ln1 g, b
            per_layer_w((H, I)),   per_layer_w((1, I)),          # wi, bi
            per_layer_w((I, H)),   per_layer_w((1, H)),          # wo2, bo2
            per_layer_w((1, H)),   per_layer_w((1, H)),          # ln2 g, b
        ],
        # Constant block index -> output stays VMEM-resident across all layers
        # and carries the residual stream (written back to HBM once at the end).
        out_specs=pl.BlockSpec((T, H), lambda l: (0, 0)),
    )

    last_hidden = pl.pallas_call(
        _bert_layer_kernel,
        out_shape=jax.ShapeDtypeStruct((T, H), jnp.float32),
        grid_spec=grid_spec,
        compiler_params=pltpu.CompilerParams(
            dimension_semantics=("arbitrary",),      # layers are sequential
            vmem_limit_bytes=32 * 1024 * 1024,
        ),
    )(x, mask_bias,
      params["emb_ln_g"][None, :], params["emb_ln_b"][None, :],
      wq, bq, wk, bk, wv, bv, wo_r, bo, ln1g, ln1b,
      wi, bi, wo2, bo2, ln2g, ln2b)

    last_hidden_state = last_hidden.reshape(B, S, H)          # outputs[0]
    last_hidden_state_cls = last_hidden_state[:, 0, :]        # outputs[0][:, 0, :]
    return last_hidden_state_cls, last_hidden_state


if __name__ == "__main__":
    key = jax.random.PRNGKey(0)
    pkey, ikey = jax.random.split(key)
    params = init_params(pkey)

    input_ids = jax.random.randint(ikey, (BATCH, SEQ), 0, VOCAB_SIZE, dtype=jnp.int32)
    attention_mask = jnp.array(
        [[1, 1, 1, 1, 1, 1, 1, 1],
         [1, 1, 1, 1, 1, 0, 0, 0]], dtype=jnp.int32
    )

    cls_vec, last_hidden = jax.jit(bert_encoder_forward)(
        params, input_ids, attention_mask
    )
    jax.block_until_ready((cls_vec, last_hidden))

    assert cls_vec.shape == (BATCH, HIDDEN)
    assert last_hidden.shape == (BATCH, SEQ, HIDDEN)
    assert bool(jnp.all(jnp.isfinite(cls_vec))) and bool(jnp.all(jnp.isfinite(last_hidden)))
    print("KERNEL_OK")
</pallas_src>

<mosaic_0001>
module attributes {stable_mosaic.version = 11 : i64} {
  func.func @_bert_layer_kernel(%arg0: i32, %arg1: memref<16x32xf32, #tpu.memory_space<vmem>>, %arg2: memref<2x1x8xf32, #tpu.memory_space<vmem>>, %arg3: memref<1x32xf32, #tpu.memory_space<vmem>>, %arg4: memref<1x32xf32, #tpu.memory_space<vmem>>, %arg5: memref<1x32x32xbf16, #tpu.memory_space<vmem>>, %arg6: memref<1x1x32xf32, #tpu.memory_space<vmem>>, %arg7: memref<1x32x32xbf16, #tpu.memory_space<vmem>>, %arg8: memref<1x1x32xf32, #tpu.memory_space<vmem>>, %arg9: memref<1x32x32xbf16, #tpu.memory_space<vmem>>, %arg10: memref<1x1x32xf32, #tpu.memory_space<vmem>>, %arg11: memref<1x4x8x32xbf16, #tpu.memory_space<vmem>>, %arg12: memref<1x1x32xf32, #tpu.memory_space<vmem>>, %arg13: memref<1x1x32xf32, #tpu.memory_space<vmem>>, %arg14: memref<1x1x32xf32, #tpu.memory_space<vmem>>, %arg15: memref<1x32x64xbf16, #tpu.memory_space<vmem>>, %arg16: memref<1x1x64xf32, #tpu.memory_space<vmem>>, %arg17: memref<1x64x32xbf16, #tpu.memory_space<vmem>>, %arg18: memref<1x1x32xf32, #tpu.memory_space<vmem>>, %arg19: memref<1x1x32xf32, #tpu.memory_space<vmem>>, %arg20: memref<1x1x32xf32, #tpu.memory_space<vmem>>, %arg21: memref<16x32xf32, #tpu.memory_space<vmem>>) attributes {dimension_semantics = [#tpu.dimension_semantics<arbitrary>], iteration_bounds = array<i64: 2>, scalar_prefetch = 0 : i64, scratch_operands = 0 : i64, tpu.core_type = #tpu.core_type<tc>, window_params = [{pipeline_mode = #tpu.pipeline_mode<synchronous>, transform_indices = @transform_0, window_bounds = array<i64: 16, 32>}, {pipeline_mode = #tpu.pipeline_mode<synchronous>, transform_indices = @transform_1, window_bounds = array<i64: 2, 1, 8>}, {pipeline_mode = #tpu.pipeline_mode<synchronous>, transform_indices = @transform_2, window_bounds = array<i64: 1, 32>}, {pipeline_mode = #tpu.pipeline_mode<synchronous>, transform_indices = @transform_3, window_bounds = array<i64: 1, 32>}, {transform_indices = @transform_4, window_bounds = array<i64: 1, 32, 32>}, {transform_indices = @transform_5, window_bounds = array<i64: 1, 1, 32>}, {transform_indices = @transform_6, window_bounds = array<i64: 1, 32, 32>}, {transform_indices = @transform_7, window_bounds = array<i64: 1, 1, 32>}, {transform_indices = @transform_8, window_bounds = array<i64: 1, 32, 32>}, {transform_indices = @transform_9, window_bounds = array<i64: 1, 1, 32>}, {transform_indices = @transform_10, window_bounds = array<i64: 1, 4, 8, 32>}, {transform_indices = @transform_11, window_bounds = array<i64: 1, 1, 32>}, {transform_indices = @transform_12, window_bounds = array<i64: 1, 1, 32>}, {transform_indices = @transform_13, window_bounds = array<i64: 1, 1, 32>}, {transform_indices = @transform_14, window_bounds = array<i64: 1, 32, 64>}, {transform_indices = @transform_15, window_bounds = array<i64: 1, 1, 64>}, {transform_indices = @transform_16, window_bounds = array<i64: 1, 64, 32>}, {transform_indices = @transform_17, window_bounds = array<i64: 1, 1, 32>}, {transform_indices = @transform_18, window_bounds = array<i64: 1, 1, 32>}, {transform_indices = @transform_19, window_bounds = array<i64: 1, 1, 32>}, {pipeline_mode = #tpu.pipeline_mode<synchronous>, transform_indices = @transform_20, window_bounds = array<i64: 16, 32>}]} {
    %c0_i32 = arith.constant 0 : i32
    %0 = arith.cmpi eq, %arg0, %c0_i32 : i32
    %1 = arith.extui %0 : i1 to i32
    %c0_i32_0 = arith.constant 0 : i32
    %2 = arith.cmpi ne, %1, %c0_i32_0 : i32
    scf.if %2 {
      %c0_104 = arith.constant 0 : index
      %c0_105 = arith.constant 0 : index
      %236 = vector.load %arg1[%c0_104, %c0_105] : memref<16x32xf32, #tpu.memory_space<vmem>>, vector<16x32xf32>
      %c0_106 = arith.constant 0 : index
      %c0_107 = arith.constant 0 : index
      %237 = vector.load %arg3[%c0_106, %c0_107] : memref<1x32xf32, #tpu.memory_space<vmem>>, vector<1x32xf32>
      %c0_108 = arith.constant 0 : index
      %c0_109 = arith.constant 0 : index
      %238 = vector.load %arg4[%c0_108, %c0_109] : memref<1x32xf32, #tpu.memory_space<vmem>>, vector<1x32xf32>
      %cst_110 = arith.constant dense<0.000000e+00> : vector<16xf32>
      %239 = vector.multi_reduction <add>, %236, %cst_110 [1] : vector<16x32xf32> to vector<16xf32>
      %240 = vector.shape_cast %239 : vector<16xf32> to vector<16x1xf32>
      %cst_111 = arith.constant 3.200000e+01 : f32
      %241 = vector.broadcast %cst_111 : f32 to vector<16x1xf32>
      %242 = arith.divf %240, %241 : vector<16x1xf32>
      %243 = vector.broadcast %242 : vector<16x1xf32> to vector<16x32xf32>
      %244 = arith.subf %236, %243 : vector<16x32xf32>
      %245 = arith.mulf %244, %244 : vector<16x32xf32>
      %cst_112 = arith.constant dense<0.000000e+00> : vector<16xf32>
      %246 = vector.multi_reduction <add>, %245, %cst_112 [1] : vector<16x32xf32> to vector<16xf32>
      %247 = vector.shape_cast %246 : vector<16xf32> to vector<16x1xf32>
      %cst_113 = arith.constant 3.200000e+01 : f32
      %248 = vector.broadcast %cst_113 : f32 to vector<16x1xf32>
      %249 = arith.divf %247, %248 : vector<16x1xf32>
      %250 = vector.broadcast %242 : vector<16x1xf32> to vector<16x32xf32>
      %251 = arith.subf %236, %250 : vector<16x32xf32>
      %cst_114 = arith.constant 9.99999996E-13 : f32
      %252 = vector.broadcast %cst_114 : f32 to vector<16x1xf32>
      %253 = arith.addf %249, %252 : vector<16x1xf32>
      %254 = math.rsqrt %253 : vector<16x1xf32>
      %255 = vector.broadcast %254 : vector<16x1xf32> to vector<16x32xf32>
      %256 = arith.mulf %251, %255 : vector<16x32xf32>
      %257 = vector.broadcast %237 : vector<1x32xf32> to vector<16x32xf32>
      %258 = arith.mulf %256, %257 : vector<16x32xf32>
      %259 = vector.broadcast %238 : vector<1x32xf32> to vector<16x32xf32>
      %260 = arith.addf %258, %259 : vector<16x32xf32>
      %c0_115 = arith.constant 0 : index
      %c0_116 = arith.constant 0 : index
      %261 = vector.load %arg21[%c0_115, %c0_116] : memref<16x32xf32, #tpu.memory_space<vmem>>, vector<16x32xf32>
      tpu.vector_store %arg21[%c0_115, %c0_116], %260 {strides = array<i32>} : memref<16x32xf32, #tpu.memory_space<vmem>>, vector<16x32xf32>,
    } else {
    }
    %c0 = arith.constant 0 : index
    %c0_1 = arith.constant 0 : index
    %3 = vector.load %arg21[%c0, %c0_1] : memref<16x32xf32, #tpu.memory_space<vmem>>, vector<16x32xf32>
    %4 = arith.truncf %3 : vector<16x32xf32> to vector<16x32xbf16>
    %c0_2 = arith.constant 0 : index
    %c0_3 = arith.constant 0 : index
    %c0_4 = arith.constant 0 : index
    %5 = vector.load %arg5[%c0_2, %c0_3, %c0_4] : memref<1x32x32xbf16, #tpu.memory_space<vmem>>, vector<1x32x32xbf16>
    %6 = vector.shape_cast %5 : vector<1x32x32xbf16> to vector<32x32xbf16>
    %cst = arith.constant dense<0.000000e+00> : vector<16x32xf32>
    %7 = tpu.matmul %4, %6, %cst {dimension_numbers = #tpu.dot_dimension_numbers<[1], [0], [0], [1], [0, 0, 1, 1], [], []>} : vector<16x32xbf16>, vector<32x32xbf16>, vector<16x32xf32> -> vector<16x32xf32>
    %c0_5 = arith.constant 0 : index
    %c0_6 = arith.constant 0 : index
    %c0_7 = arith.constant 0 : index
    %8 = vector.load %arg6[%c0_5, %c0_6, %c0_7] : memref<1x1x32xf32, #tpu.memory_space<vmem>>, vector<1x1x32xf32>
    %9 = vector.shape_cast %8 : vector<1x1x32xf32> to vector<1x32xf32>
    %10 = vector.broadcast %9 : vector<1x32xf32> to vector<16x32xf32>
    %11 = arith.addf %7, %10 : vector<16x32xf32>
    %c0_8 = arith.constant 0 : index
    %c0_9 = arith.constant 0 : index
    %c0_10 = arith.constant 0 : index
    %12 = vector.load %arg7[%c0_8, %c0_9, %c0_10] : memref<1x32x32xbf16, #tpu.memory_space<vmem>>, vector<1x32x32xbf16>
    %13 = vector.shape_cast %12 : vector<1x32x32xbf16> to vector<32x32xbf16>
    %cst_11 = arith.constant dense<0.000000e+00> : vector<16x32xf32>
    %14 = tpu.matmul %4, %13, %cst_11 {dimension_numbers = #tpu.dot_dimension_numbers<[1], [0], [0], [1], [0, 0, 1, 1], [], []>} : vector<16x32xbf16>, vector<32x32xbf16>, vector<16x32xf32> -> vector<16x32xf32>
    %c0_12 = arith.constant 0 : index
    %c0_13 = arith.constant 0 : index
    %c0_14 = arith.constant 0 : index
    %15 = vector.load %arg8[%c0_12, %c0_13, %c0_14] : memref<1x1x32xf32, #tpu.memory_space<vmem>>, vector<1x1x32xf32>
    %16 = vector.shape_cast %15 : vector<1x1x32xf32> to vector<1x32xf32>
    %17 = vector.broadcast %16 : vector<1x32xf32> to vector<16x32xf32>
    %18 = arith.addf %14, %17 : vector<16x32xf32>
    %c0_15 = arith.constant 0 : index
    %c0_16 = arith.constant 0 : index
    %c0_17 = arith.constant 0 : index
    %19 = vector.load %arg9[%c0_15, %c0_16, %c0_17] : memref<1x32x32xbf16, #tpu.memory_space<vmem>>, vector<1x32x32xbf16>
    %20 = vector.shape_cast %19 : vector<1x32x32xbf16> to vector<32x32xbf16>
    %cst_18 = arith.constant dense<0.000000e+00> : vector<16x32xf32>
    %21 = tpu.matmul %4, %20, %cst_18 {dimension_numbers = #tpu.dot_dimension_numbers<[1], [0], [0], [1], [0, 0, 1, 1], [], []>} : vector<16x32xbf16>, vector<32x32xbf16>, vector<16x32xf32> -> vector<16x32xf32>
    %c0_19 = arith.constant 0 : index
    %c0_20 = arith.constant 0 : index
    %c0_21 = arith.constant 0 : index
    %22 = vector.load %arg10[%c0_19, %c0_20, %c0_21] : memref<1x1x32xf32, #tpu.memory_space<vmem>>, vector<1x1x32xf32>
    %23 = vector.shape_cast %22 : vector<1x1x32xf32> to vector<1x32xf32>
    %24 = vector.broadcast %23 : vector<1x32xf32> to vector<16x32xf32>
    %25 = arith.addf %21, %24 : vector<16x32xf32>
    %c0_22 = arith.constant 0 : index
    %c0_23 = arith.constant 0 : index
    %c0_24 = arith.constant 0 : index
    %26 = vector.load %arg2[%c0_22, %c0_23, %c0_24] : memref<2x1x8xf32, #tpu.memory_space<vmem>>, vector<2x1x8xf32>
    %cst_25 = arith.constant 0.000000e+00 : f32
    %27 = vector.broadcast %cst_25 : f32 to vector<16x32xf32>
    %28 = vector.extract_strided_slice %11 {offsets = [0, 0], sizes = [16, 8], strides = [1, 1]} : vector<16x32xf32> to vector<16x8xf32>
    %29 = vector.shape_cast %28 : vector<16x8xf32> to vector<2x8x8xf32>
    %30 = arith.truncf %29 : vector<2x8x8xf32> to vector<2x8x8xbf16>
    %31 = vector.extract_strided_slice %18 {offsets = [0, 0], sizes = [16, 8], strides = [1, 1]} : vector<16x32xf32> to vector<16x8xf32>
    %32 = vector.shape_cast %31 : vector<16x8xf32> to vector<2x8x8xf32>
    %33 = arith.truncf %32 : vector<2x8x8xf32> to vector<2x8x8xbf16>
    %34 = vector.extract_strided_slice %25 {offsets = [0, 0], sizes = [16, 8], strides = [1, 1]} : vector<16x32xf32> to vector<16x8xf32>
    %35 = vector.shape_cast %34 : vector<16x8xf32> to vector<2x8x8xf32>
    %36 = arith.truncf %35 : vector<2x8x8xf32> to vector<2x8x8xbf16>
    "tpu.trace_start"() <{level = 10 : i32, message = "bqd,bkd->bqk"}> : () -> ()
    %cst_26 = arith.constant dense<0.000000e+00> : vector<2x8x8xf32>
    %37 = tpu.matmul %30, %33, %cst_26 {dimension_numbers = #tpu.dot_dimension_numbers<[2], [2], [1], [1], [0, 0, 0, 1, 1, 1], [0], [0]>} : vector<2x8x8xbf16>, vector<2x8x8xbf16>, vector<2x8x8xf32> -> vector<2x8x8xf32>
    "tpu.trace_stop"() : () -> ()
    %38 = vector.broadcast %26 : vector<2x1x8xf32> to vector<2x8x8xf32>
    %39 = arith.addf %37, %38 : vector<2x8x8xf32>
    %cst_27 = arith.constant dense<0xFF800000> : vector<2x8xf32>
    %40 = vector.multi_reduction <maximumf>, %39, %cst_27 [2] : vector<2x8x8xf32> to vector<2x8xf32>
    %41 = vector.shape_cast %40 : vector<2x8xf32> to vector<2x8x1xf32>
    %42 = vector.broadcast %41 : vector<2x8x1xf32> to vector<2x8x8xf32>
    %43 = arith.subf %39, %42 : vector<2x8x8xf32>
    %44 = math.exp %43 : vector<2x8x8xf32>
    %cst_28 = arith.constant dense<0.000000e+00> : vector<2x8xf32>
    %45 = vector.multi_reduction <add>, %44, %cst_28 [2] : vector<2x8x8xf32> to vector<2x8xf32>
    %46 = vector.shape_cast %45 : vector<2x8xf32> to vector<2x8x1xf32>
    %47 = tpu.reciprocal %46 {approx = true} : vector<2x8x1xf32> -> vector<2x8x1xf32>
    %48 = vector.broadcast %47 : vector<2x8x1xf32> to vector<2x8x8xf32>
    %49 = arith.mulf %44, %48 : vector<2x8x8xf32>
    %50 = arith.truncf %49 : vector<2x8x8xf32> to vector<2x8x8xbf16>
    "tpu.trace_start"() <{level = 10 : i32, message = "bqk,bkd->bqd"}> : () -> ()
    %cst_29 = arith.constant dense<0.000000e+00> : vector<2x8x8xf32>
    %51 = tpu.matmul %50, %36, %cst_29 {dimension_numbers = #tpu.dot_dimension_numbers<[2], [1], [1], [2], [0, 0, 0, 1, 1, 2], [0], [0]>} : vector<2x8x8xbf16>, vector<2x8x8xbf16>, vector<2x8x8xf32> -> vector<2x8x8xf32>
    "tpu.trace_stop"() : () -> ()
    %52 = vector.shape_cast %51 : vector<2x8x8xf32> to vector<16x8xf32>
    %53 = arith.truncf %52 : vector<16x8xf32> to vector<16x8xbf16>
    %c0_30 = arith.constant 0 : index
    %c0_31 = arith.constant 0 : index
    %c0_32 = arith.constant 0 : index
    %c0_33 = arith.constant 0 : index
    %54 = vector.load %arg11[%c0_30, %c0_31, %c0_32, %c0_33] : memref<1x4x8x32xbf16, #tpu.memory_space<vmem>>, vector<1x1x8x32xbf16>
    %55 = vector.shape_cast %54 : vector<1x1x8x32xbf16> to vector<8x32xbf16>
    %cst_34 = arith.constant dense<0.000000e+00> : vector<16x32xf32>
    %56 = tpu.matmul %53, %55, %cst_34 {dimension_numbers = #tpu.dot_dimension_numbers<[1], [0], [0], [1], [0, 0, 1, 1], [], []>} : vector<16x8xbf16>, vector<8x32xbf16>, vector<16x32xf32> -> vector<16x32xf32>
    %57 = arith.addf %27, %56 : vector<16x32xf32>
    %58 = vector.extract_strided_slice %11 {offsets = [0, 8], sizes = [16, 8], strides = [1, 1]} : vector<16x32xf32> to vector<16x8xf32>
    %59 = vector.shape_cast %58 : vector<16x8xf32> to vector<2x8x8xf32>
    %60 = arith.truncf %59 : vector<2x8x8xf32> to vector<2x8x8xbf16>
    %61 = vector.extract_strided_slice %18 {offsets = [0, 8], sizes = [16, 8], strides = [1, 1]} : vector<16x32xf32> to vector<16x8xf32>
    %62 = vector.shape_cast %61 : vector<16x8xf32> to vector<2x8x8xf32>
    %63 = arith.truncf %62 : vector<2x8x8xf32> to vector<2x8x8xbf16>
    %64 = vector.extract_strided_slice %25 {offsets = [0, 8], sizes = [16, 8], strides = [1, 1]} : vector<16x32xf32> to vector<16x8xf32>
    %65 = vector.shape_cast %64 : vector<16x8xf32> to vector<2x8x8xf32>
    %66 = arith.truncf %65 : vector<2x8x8xf32> to vector<2x8x8xbf16>
    "tpu.trace_start"() <{level = 10 : i32, message = "bqd,bkd->bqk"}> : () -> ()
    %cst_35 = arith.constant dense<0.000000e+00> : vector<2x8x8xf32>
    %67 = tpu.matmul %60, %63, %cst_35 {dimension_numbers = #tpu.dot_dimension_numbers<[2], [2], [1], [1], [0, 0, 0, 1, 1, 1], [0], [0]>} : vector<2x8x8xbf16>, vector<2x8x8xbf16>, vector<2x8x8xf32> -> vector<2x8x8xf32>
    "tpu.trace_stop"() : () -> ()
    %68 = vector.broadcast %26 : vector<2x1x8xf32> to vector<2x8x8xf32>
    %69 = arith.addf %67, %68 : vector<2x8x8xf32>
    %cst_36 = arith.constant dense<0xFF800000> : vector<2x8xf32>
    %70 = vector.multi_reduction <maximumf>, %69, %cst_36 [2] : vector<2x8x8xf32> to vector<2x8xf32>
    %71 = vector.shape_cast %70 : vector<2x8xf32> to vector<2x8x1xf32>
    %72 = vector.broadcast %71 : vector<2x8x1xf32> to vector<2x8x8xf32>
    %73 = arith.subf %69, %72 : vector<2x8x8xf32>
    %74 = math.exp %73 : vector<2x8x8xf32>
    %cst_37 = arith.constant dense<0.000000e+00> : vector<2x8xf32>
    %75 = vector.multi_reduction <add>, %74, %cst_37 [2] : vector<2x8x8xf32> to vector<2x8xf32>
    %76 = vector.shape_cast %75 : vector<2x8xf32> to vector<2x8x1xf32>
    %77 = tpu.reciprocal %76 {approx = true} : vector<2x8x1xf32> -> vector<2x8x1xf32>
    %78 = vector.broadcast %77 : vector<2x8x1xf32> to vector<2x8x8xf32>
    %79 = arith.mulf %74, %78 : vector<2x8x8xf32>
    %80 = arith.truncf %79 : vector<2x8x8xf32> to vector<2x8x8xbf16>
    "tpu.trace_start"() <{level = 10 : i32, message = "bqk,bkd->bqd"}> : () -> ()
    %cst_38 = arith.constant dense<0.000000e+00> : vector<2x8x8xf32>
    %81 = tpu.matmul %80, %66, %cst_38 {dimension_numbers = #tpu.dot_dimension_numbers<[2], [1], [1], [2], [0, 0, 0, 1, 1, 2], [0], [0]>} : vector<2x8x8xbf16>, vector<2x8x8xbf16>, vector<2x8x8xf32> -> vector<2x8x8xf32>
    "tpu.trace_stop"() : () -> ()
    %82 = vector.shape_cast %81 : vector<2x8x8xf32> to vector<16x8xf32>
    %83 = arith.truncf %82 : vector<16x8xf32> to vector<16x8xbf16>
    %c0_39 = arith.constant 0 : index
    %c1 = arith.constant 1 : index
    %c0_40 = arith.constant 0 : index
    %c0_41 = arith.constant 0 : index
    %84 = vector.load %arg11[%c0_39, %c1, %c0_40, %c0_41] : memref<1x4x8x32xbf16, #tpu.memory_space<vmem>>, vector<1x1x8x32xbf16>
    %85 = vector.shape_cast %84 : vector<1x1x8x32xbf16> to vector<8x32xbf16>
    %cst_42 = arith.constant dense<0.000000e+00> : vector<16x32xf32>
    %86 = tpu.matmul %83, %85, %cst_42 {dimension_numbers = #tpu.dot_dimension_numbers<[1], [0], [0], [1], [0, 0, 1, 1], [], []>} : vector<16x8xbf16>, vector<8x32xbf16>, vector<16x32xf32> -> vector<16x32xf32>
    %87 = arith.addf %57, %86 : vector<16x32xf32>
    %88 = vector.extract_strided_slice %11 {offsets = [0, 16], sizes = [16, 8], strides = [1, 1]} : vector<16x32xf32> to vector<16x8xf32>
    %89 = vector.shape_cast %88 : vector<16x8xf32> to vector<2x8x8xf32>
    %90 = arith.truncf %89 : vector<2x8x8xf32> to vector<2x8x8xbf16>
    %91 = vector.extract_strided_slice %18 {offsets = [0, 16], sizes = [16, 8], strides = [1, 1]} : vector<16x32xf32> to vector<16x8xf32>
    %92 = vector.shape_cast %91 : vector<16x8xf32> to vector<2x8x8xf32>
    %93 = arith.truncf %92 : vector<2x8x8xf32> to vector<2x8x8xbf16>
    %94 = vector.extract_strided_slice %25 {offsets = [0, 16], sizes = [16, 8], strides = [1, 1]} : vector<16x32xf32> to vector<16x8xf32>
    %95 = vector.shape_cast %94 : vector<16x8xf32> to vector<2x8x8xf32>
    %96 = arith.truncf %95 : vector<2x8x8xf32> to vector<2x8x8xbf16>
    "tpu.trace_start"() <{level = 10 : i32, message = "bqd,bkd->bqk"}> : () -> ()
    %cst_43 = arith.constant dense<0.000000e+00> : vector<2x8x8xf32>
    %97 = tpu.matmul %90, %93, %cst_43 {dimension_numbers = #tpu.dot_dimension_numbers<[2], [2], [1], [1], [0, 0, 0, 1, 1, 1], [0], [0]>} : vector<2x8x8xbf16>, vector<2x8x8xbf16>, vector<2x8x8xf32> -> vector<2x8x8xf32>
    "tpu.trace_stop"() : () -> ()
    %98 = vector.broadcast %26 : vector<2x1x8xf32> to vector<2x8x8xf32>
    %99 = arith.addf %97, %98 : vector<2x8x8xf32>
    %cst_44 = arith.constant dense<0xFF800000> : vector<2x8xf32>
    %100 = vector.multi_reduction <maximumf>, %99, %cst_44 [2] : vector<2x8x8xf32> to vector<2x8xf32>
    %101 = vector.shape_cast %100 : vector<2x8xf32> to vector<2x8x1xf32>
    %102 = vector.broadcast %101 : vector<2x8x1xf32> to vector<2x8x8xf32>
    %103 = arith.subf %99, %102 : vector<2x8x8xf32>
    %104 = math.exp %103 : vector<2x8x8xf32>
    %cst_45 = arith.constant dense<0.000000e+00> : vector<2x8xf32>
    %105 = vector.multi_reduction <add>, %104, %cst_45 [2] : vector<2x8x8xf32> to vector<2x8xf32>
    %106 = vector.shape_cast %105 : vector<2x8xf32> to vector<2x8x1xf32>
    %107 = tpu.reciprocal %106 {approx = true} : vector<2x8x1xf32> -> vector<2x8x1xf32>
    %108 = vector.broadcast %107 : vector<2x8x1xf32> to vector<2x8x8xf32>
    %109 = arith.mulf %104, %108 : vector<2x8x8xf32>
    %110 = arith.truncf %109 : vector<2x8x8xf32> to vector<2x8x8xbf16>
    "tpu.trace_start"() <{level = 10 : i32, message = "bqk,bkd->bqd"}> : () -> ()
    %cst_46 = arith.constant dense<0.000000e+00> : vector<2x8x8xf32>
    %111 = tpu.matmul %110, %96, %cst_46 {dimension_numbers = #tpu.dot_dimension_numbers<[2], [1], [1], [2], [0, 0, 0, 1, 1, 2], [0], [0]>} : vector<2x8x8xbf16>, vector<2x8x8xbf16>, vector<2x8x8xf32> -> vector<2x8x8xf32>
    "tpu.trace_stop"() : () -> ()
    %112 = vector.shape_cast %111 : vector<2x8x8xf32> to vector<16x8xf32>
    %113 = arith.truncf %112 : vector<16x8xf32> to vector<16x8xbf16>
    %c0_47 = arith.constant 0 : index
    %c2 = arith.constant 2 : index
    %c0_48 = arith.constant 0 : index
    %c0_49 = arith.constant 0 : index
    %114 = vector.load %arg11[%c0_47, %c2, %c0_48, %c0_49] : memref<1x4x8x32xbf16, #tpu.memory_space<vmem>>, vector<1x1x8x32xbf16>
    %115 = vector.shape_cast %114 : vector<1x1x8x32xbf16> to vector<8x32xbf16>
    %cst_50 = arith.constant dense<0.000000e+00> : vector<16x32xf32>
    %116 = tpu.matmul %113, %115, %cst_50 {dimension_numbers = #tpu.dot_dimension_numbers<[1], [0], [0], [1], [0, 0, 1, 1], [], []>} : vector<16x8xbf16>, vector<8x32xbf16>, vector<16x32xf32> -> vector<16x32xf32>
    %117 = arith.addf %87, %116 : vector<16x32xf32>
    %118 = vector.extract_strided_slice %11 {offsets = [0, 24], sizes = [16, 8], strides = [1, 1]} : vector<16x32xf32> to vector<16x8xf32>
    %119 = vector.shape_cast %118 : vector<16x8xf32> to vector<2x8x8xf32>
    %120 = arith.truncf %119 : vector<2x8x8xf32> to vector<2x8x8xbf16>
    %121 = vector.extract_strided_slice %18 {offsets = [0, 24], sizes = [16, 8], strides = [1, 1]} : vector<16x32xf32> to vector<16x8xf32>
    %122 = vector.shape_cast %121 : vector<16x8xf32> to vector<2x8x8xf32>
    %123 = arith.truncf %122 : vector<2x8x8xf32> to vector<2x8x8xbf16>
    %124 = vector.extract_strided_slice %25 {offsets = [0, 24], sizes = [16, 8], strides = [1, 1]} : vector<16x32xf32> to vector<16x8xf32>
    %125 = vector.shape_cast %124 : vector<16x8xf32> to vector<2x8x8xf32>
    %126 = arith.truncf %125 : vector<2x8x8xf32> to vector<2x8x8xbf16>
    "tpu.trace_start"() <{level = 10 : i32, message = "bqd,bkd->bqk"}> : () -> ()
    %cst_51 = arith.constant dense<0.000000e+00> : vector<2x8x8xf32>
    %127 = tpu.matmul %120, %123, %cst_51 {dimension_numbers = #tpu.dot_dimension_numbers<[2], [2], [1], [1], [0, 0, 0, 1, 1, 1], [0], [0]>} : vector<2x8x8xbf16>, vector<2x8x8xbf16>, vector<2x8x8xf32> -> vector<2x8x8xf32>
    "tpu.trace_stop"() : () -> ()
    %128 = vector.broadcast %26 : vector<2x1x8xf32> to vector<2x8x8xf32>
    %129 = arith.addf %127, %128 : vector<2x8x8xf32>
    %cst_52 = arith.constant dense<0xFF800000> : vector<2x8xf32>
    %130 = vector.multi_reduction <maximumf>, %129, %cst_52 [2] : vector<2x8x8xf32> to vector<2x8xf32>
    %131 = vector.shape_cast %130 : vector<2x8xf32> to vector<2x8x1xf32>
    %132 = vector.broadcast %131 : vector<2x8x1xf32> to vector<2x8x8xf32>
    %133 = arith.subf %129, %132 : vector<2x8x8xf32>
    %134 = math.exp %133 : vector<2x8x8xf32>
    %cst_53 = arith.constant dense<0.000000e+00> : vector<2x8xf32>
    %135 = vector.multi_reduction <add>, %134, %cst_53 [2] : vector<2x8x8xf32> to vector<2x8xf32>
    %136 = vector.shape_cast %135 : vector<2x8xf32> to vector<2x8x1xf32>
    %137 = tpu.reciprocal %136 {approx = true} : vector<2x8x1xf32> -> vector<2x8x1xf32>
    %138 = vector.broadcast %137 : vector<2x8x1xf32> to vector<2x8x8xf32>
    %139 = arith.mulf %134, %138 : vector<2x8x8xf32>
    %140 = arith.truncf %139 : vector<2x8x8xf32> to vector<2x8x8xbf16>
    "tpu.trace_start"() <{level = 10 : i32, message = "bqk,bkd->bqd"}> : () -> ()
    %cst_54 = arith.constant dense<0.000000e+00> : vector<2x8x8xf32>
    %141 = tpu.matmul %140, %126, %cst_54 {dimension_numbers = #tpu.dot_dimension_numbers<[2], [1], [1], [2], [0, 0, 0, 1, 1, 2], [0], [0]>} : vector<2x8x8xbf16>, vector<2x8x8xbf16>, vector<2x8x8xf32> -> vector<2x8x8xf32>
    "tpu.trace_stop"() : () -> ()
    %142 = vector.shape_cast %141 : vector<2x8x8xf32> to vector<16x8xf32>
    %143 = arith.truncf %142 : vector<16x8xf32> to vector<16x8xbf16>
    %c0_55 = arith.constant 0 : index
    %c3 = arith.constant 3 : index
    %c0_56 = arith.constant 0 : index
    %c0_57 = arith.constant 0 : index
    %144 = vector.load %arg11[%c0_55, %c3, %c0_56, %c0_57] : memref<1x4x8x32xbf16, #tpu.memory_space<vmem>>, vector<1x1x8x32xbf16>
    %145 = vector.shape_cast %144 : vector<1x1x8x32xbf16> to vector<8x32xbf16>
    %cst_58 = arith.constant dense<0.000000e+00> : vector<16x32xf32>
    %146 = tpu.matmul %143, %145, %cst_58 {dimension_numbers = #tpu.dot_dimension_numbers<[1], [0], [0], [1], [0, 0, 1, 1], [], []>} : vector<16x8xbf16>, vector<8x32xbf16>, vector<16x32xf32> -> vector<16x32xf32>
    %147 = arith.addf %117, %146 : vector<16x32xf32>
    %c0_59 = arith.constant 0 : index
    %c0_60 = arith.constant 0 : index
    %c0_61 = arith.constant 0 : index
    %148 = vector.load %arg12[%c0_59, %c0_60, %c0_61] : memref<1x1x32xf32, #tpu.memory_space<vmem>>, vector<1x1x32xf32>
    %149 = vector.shape_cast %148 : vector<1x1x32xf32> to vector<1x32xf32>
    %150 = vector.broadcast %149 : vector<1x32xf32> to vector<16x32xf32>
    %151 = arith.addf %147, %150 : vector<16x32xf32>
    %152 = arith.addf %151, %3 : vector<16x32xf32>
    %c0_62 = arith.constant 0 : index
    %c0_63 = arith.constant 0 : index
    %c0_64 = arith.constant 0 : index
    %153 = vector.load %arg13[%c0_62, %c0_63, %c0_64] : memref<1x1x32xf32, #tpu.memory_space<vmem>>, vector<1x1x32xf32>
    %154 = vector.shape_cast %153 : vector<1x1x32xf32> to vector<1x32xf32>
    %c0_65 = arith.constant 0 : index
    %c0_66 = arith.constant 0 : index
    %c0_67 = arith.constant 0 : index
    %155 = vector.load %arg14[%c0_65, %c0_66, %c0_67] : memref<1x1x32xf32, #tpu.memory_space<vmem>>, vector<1x1x32xf32>
    %156 = vector.shape_cast %155 : vector<1x1x32xf32> to vector<1x32xf32>
    %cst_68 = arith.constant dense<0.000000e+00> : vector<16xf32>
    %157 = vector.multi_reduction <add>, %152, %cst_68 [1] : vector<16x32xf32> to vector<16xf32>
    %158 = vector.shape_cast %157 : vector<16xf32> to vector<16x1xf32>
    %cst_69 = arith.constant 3.200000e+01 : f32
    %159 = vector.broadcast %cst_69 : f32 to vector<16x1xf32>
    %160 = arith.divf %158, %159 : vector<16x1xf32>
    %161 = vector.broadcast %160 : vector<16x1xf32> to vector<16x32xf32>
    %162 = arith.subf %152, %161 : vector<16x32xf32>
    %163 = arith.mulf %162, %162 : vector<16x32xf32>
    %cst_70 = arith.constant dense<0.000000e+00> : vector<16xf32>
    %164 = vector.multi_reduction <add>, %163, %cst_70 [1] : vector<16x32xf32> to vector<16xf32>
    %165 = vector.shape_cast %164 : vector<16xf32> to vector<16x1xf32>
    %cst_71 = arith.constant 3.200000e+01 : f32
    %166 = vector.broadcast %cst_71 : f32 to vector<16x1xf32>
    %167 = arith.divf %165, %166 : vector<16x1xf32>
    %168 = vector.broadcast %160 : vector<16x1xf32> to vector<16x32xf32>
    %169 = arith.subf %152, %168 : vector<16x32xf32>
    %cst_72 = arith.constant 9.99999996E-13 : f32
    %170 = vector.broadcast %cst_72 : f32 to vector<16x1xf32>
    %171 = arith.addf %167, %170 : vector<16x1xf32>
    %172 = math.rsqrt %171 : vector<16x1xf32>
    %173 = vector.broadcast %172 : vector<16x1xf32> to vector<16x32xf32>
    %174 = arith.mulf %169, %173 : vector<16x32xf32>
    %175 = vector.broadcast %154 : vector<1x32xf32> to vector<16x32xf32>
    %176 = arith.mulf %174, %175 : vector<16x32xf32>
    %177 = vector.broadcast %156 : vector<1x32xf32> to vector<16x32xf32>
    %178 = arith.addf %176, %177 : vector<16x32xf32>
    %179 = arith.truncf %178 : vector<16x32xf32> to vector<16x32xbf16>
    %c0_73 = arith.constant 0 : index
    %c0_74 = arith.constant 0 : index
    %c0_75 = arith.constant 0 : index
    %180 = vector.load %arg15[%c0_73, %c0_74, %c0_75] : memref<1x32x64xbf16, #tpu.memory_space<vmem>>, vector<1x32x64xbf16>
    %181 = vector.shape_cast %180 : vector<1x32x64xbf16> to vector<32x64xbf16>
    %cst_76 = arith.constant dense<0.000000e+00> : vector<16x64xf32>
    %182 = tpu.matmul %179, %181, %cst_76 {dimension_numbers = #tpu.dot_dimension_numbers<[1], [0], [0], [1], [0, 0, 1, 1], [], []>} : vector<16x32xbf16>, vector<32x64xbf16>, vector<16x64xf32> -> vector<16x64xf32>
    %c0_77 = arith.constant 0 : index
    %c0_78 = arith.constant 0 : index
    %c0_79 = arith.constant 0 : index
    %183 = vector.load %arg16[%c0_77, %c0_78, %c0_79] : memref<1x1x64xf32, #tpu.memory_space<vmem>>, vector<1x1x64xf32>
    %184 = vector.shape_cast %183 : vector<1x1x64xf32> to vector<1x64xf32>
    %185 = vector.broadcast %184 : vector<1x64xf32> to vector<16x64xf32>
    %186 = arith.addf %182, %185 : vector<16x64xf32>
    %cst_80 = arith.constant 5.000000e-01 : f32
    %187 = vector.broadcast %cst_80 : f32 to vector<16x64xf32>
    %188 = arith.mulf %187, %186 : vector<16x64xf32>
    %cst_81 = arith.constant 4.471500e-02 : f32
    %189 = vector.broadcast %cst_81 : f32 to vector<16x64xf32>
    %190 = arith.mulf %189, %186 : vector<16x64xf32>
    %191 = arith.mulf %190, %186 : vector<16x64xf32>
    %192 = arith.mulf %191, %186 : vector<16x64xf32>
    %193 = arith.addf %186, %192 : vector<16x64xf32>
    %cst_82 = arith.constant 0.797884583 : f32
    %194 = vector.broadcast %cst_82 : f32 to vector<16x64xf32>
    %195 = arith.mulf %194, %193 : vector<16x64xf32>
    %196 = math.tanh %195 : vector<16x64xf32>
    %cst_83 = arith.constant 1.000000e+00 : f32
    %197 = vector.broadcast %cst_83 : f32 to vector<16x64xf32>
    %198 = arith.addf %197, %196 : vector<16x64xf32>
    %199 = arith.mulf %188, %198 : vector<16x64xf32>
    %200 = arith.truncf %199 : vector<16x64xf32> to vector<16x64xbf16>
    %c0_84 = arith.constant 0 : index
    %c0_85 = arith.constant 0 : index
    %c0_86 = arith.constant 0 : index
    %201 = vector.load %arg17[%c0_84, %c0_85, %c0_86] : memref<1x64x32xbf16, #tpu.memory_space<vmem>>, vector<1x64x32xbf16>
    %202 = vector.shape_cast %201 : vector<1x64x32xbf16> to vector<64x32xbf16>
    %cst_87 = arith.constant dense<0.000000e+00> : vector<16x32xf32>
    %203 = tpu.matmul %200, %202, %cst_87 {dimension_numbers = #tpu.dot_dimension_numbers<[1], [0], [0], [1], [0, 0, 1, 1], [], []>} : vector<16x64xbf16>, vector<64x32xbf16>, vector<16x32xf32> -> vector<16x32xf32>
    %c0_88 = arith.constant 0 : index
    %c0_89 = arith.constant 0 : index
    %c0_90 = arith.constant 0 : index
    %204 = vector.load %arg18[%c0_88, %c0_89, %c0_90] : memref<1x1x32xf32, #tpu.memory_space<vmem>>, vector<1x1x32xf32>
    %205 = vector.shape_cast %204 : vector<1x1x32xf32> to vector<1x32xf32>
    %206 = vector.broadcast %205 : vector<1x32xf32> to vector<16x32xf32>
    %207 = arith.addf %203, %206 : vector<16x32xf32>
    %208 = arith.addf %207, %178 : vector<16x32xf32>
    %c0_91 = arith.constant 0 : index
    %c0_92 = arith.constant 0 : index
    %c0_93 = arith.constant 0 : index
    %209 = vector.load %arg19[%c0_91, %c0_92, %c0_93] : memref<1x1x32xf32, #tpu.memory_space<vmem>>, vector<1x1x32xf32>
    %210 = vector.shape_cast %209 : vector<1x1x32xf32> to vector<1x32xf32>
    %c0_94 = arith.constant 0 : index
    %c0_95 = arith.constant 0 : index
    %c0_96 = arith.constant 0 : index
    %211 = vector.load %arg20[%c0_94, %c0_95, %c0_96] : memref<1x1x32xf32, #tpu.memory_space<vmem>>, vector<1x1x32xf32>
    %212 = vector.shape_cast %211 : vector<1x1x32xf32> to vector<1x32xf32>
    %cst_97 = arith.constant dense<0.000000e+00> : vector<16xf32>
    %213 = vector.multi_reduction <add>, %208, %cst_97 [1] : vector<16x32xf32> to vector<16xf32>
    %214 = vector.shape_cast %213 : vector<16xf32> to vector<16x1xf32>
    %cst_98 = arith.constant 3.200000e+01 : f32
    %215 = vector.broadcast %cst_98 : f32 to vector<16x1xf32>
    %216 = arith.divf %214, %215 : vector<16x1xf32>
    %217 = vector.broadcast %216 : vector<16x1xf32> to vector<16x32xf32>
    %218 = arith.subf %208, %217 : vector<16x32xf32>
    %219 = arith.mulf %218, %218 : vector<16x32xf32>
    %cst_99 = arith.constant dense<0.000000e+00> : vector<16xf32>
    %220 = vector.multi_reduction <add>, %219, %cst_99 [1] : vector<16x32xf32> to vector<16xf32>
    %221 = vector.shape_cast %220 : vector<16xf32> to vector<16x1xf32>
    %cst_100 = arith.constant 3.200000e+01 : f32
    %222 = vector.broadcast %cst_100 : f32 to vector<16x1xf32>
    %223 = arith.divf %221, %222 : vector<16x1xf32>
    %224 = vector.broadcast %216 : vector<16x1xf32> to vector<16x32xf32>
    %225 = arith.subf %208, %224 : vector<16x32xf32>
    %cst_101 = arith.constant 9.99999996E-13 : f32
    %226 = vector.broadcast %cst_101 : f32 to vector<16x1xf32>
    %227 = arith.addf %223, %226 : vector<16x1xf32>
    %228 = math.rsqrt %227 : vector<16x1xf32>
    %229 = vector.broadcast %228 : vector<16x1xf32> to vector<16x32xf32>
    %230 = arith.mulf %225, %229 : vector<16x32xf32>
    %231 = vector.broadcast %210 : vector<1x32xf32> to vector<16x32xf32>
    %232 = arith.mulf %230, %231 : vector<16x32xf32>
    %233 = vector.broadcast %212 : vector<1x32xf32> to vector<16x32xf32>
    %234 = arith.addf %232, %233 : vector<16x32xf32>
    %c0_102 = arith.constant 0 : index
    %c0_103 = arith.constant 0 : index
    %235 = vector.load %arg21[%c0_102, %c0_103] : memref<16x32xf32, #tpu.memory_space<vmem>>, vector<16x32xf32>
    tpu.vector_store %arg21[%c0_102, %c0_103], %234 {strides = array<i32>} : memref<16x32xf32, #tpu.memory_space<vmem>>, vector<16x32xf32>,
    return
  }
  func.func @transform_0(%arg0: i32) -> (i32, i32) {
    %c0_i32 = arith.constant 0 : i32
    %c0_i32_0 = arith.constant 0 : i32
    %c0_i32_1 = arith.constant 0 : i32
    return %c0_i32, %c0_i32_0 : i32, i32
  }
  func.func @transform_1(%arg0: i32) -> (i32, i32, i32) {
    %c0_i32 = arith.constant 0 : i32
    %c0_i32_0 = arith.constant 0 : i32
    %c0_i32_1 = arith.constant 0 : i32
    %c0_i32_2 = arith.constant 0 : i32
    return %c0_i32, %c0_i32_0, %c0_i32_1 : i32, i32, i32
  }
  func.func @transform_2(%arg0: i32) -> (i32, i32) {
    %c0_i32 = arith.constant 0 : i32
    %c0_i32_0 = arith.constant 0 : i32
    %c0_i32_1 = arith.constant 0 : i32
    return %c0_i32, %c0_i32_0 : i32, i32
  }
  func.func @transform_3(%arg0: i32) -> (i32, i32) {
    %c0_i32 = arith.constant 0 : i32
    %c0_i32_0 = arith.constant 0 : i32
    %c0_i32_1 = arith.constant 0 : i32
    return %c0_i32, %c0_i32_0 : i32, i32
  }
  func.func @transform_4(%arg0: i32) -> (i32, i32, i32) {
    %c0_i32 = arith.constant 0 : i32
    %c0_i32_0 = arith.constant 0 : i32
    %c0_i32_1 = arith.constant 0 : i32
    return %arg0, %c0_i32, %c0_i32_0 : i32, i32, i32
  }
  func.func @transform_5(%arg0: i32) -> (i32, i32, i32) {
    %c0_i32 = arith.constant 0 : i32
    %c0_i32_0 = arith.constant 0 : i32
    %c0_i32_1 = arith.constant 0 : i32
    return %arg0, %c0_i32, %c0_i32_0 : i32, i32, i32
  }
  func.func @transform_6(%arg0: i32) -> (i32, i32, i32) {
    %c0_i32 = arith.constant 0 : i32
    %c0_i32_0 = arith.constant 0 : i32
    %c0_i32_1 = arith.constant 0 : i32
    return %arg0, %c0_i32, %c0_i32_0 : i32, i32, i32
  }
  func.func @transform_7(%arg0: i32) -> (i32, i32, i32) {
    %c0_i32 = arith.constant 0 : i32
    %c0_i32_0 = arith.constant 0 : i32
    %c0_i32_1 = arith.constant 0 : i32
    return %arg0, %c0_i32, %c0_i32_0 : i32, i32, i32
  }
  func.func @transform_8(%arg0: i32) -> (i32, i32, i32) {
    %c0_i32 = arith.constant 0 : i32
    %c0_i32_0 = arith.constant 0 : i32
    %c0_i32_1 = arith.constant 0 : i32
    return %arg0, %c0_i32, %c0_i32_0 : i32, i32, i32
  }
  func.func @transform_9(%arg0: i32) -> (i32, i32, i32) {
    %c0_i32 = arith.constant 0 : i32
    %c0_i32_0 = arith.constant 0 : i32
    %c0_i32_1 = arith.constant 0 : i32
    return %arg0, %c0_i32, %c0_i32_0 : i32, i32, i32
  }
  func.func @transform_10(%arg0: i32) -> (i32, i32, i32, i32) {
    %c0_i32 = arith.constant 0 : i32
    %c0_i32_0 = arith.constant 0 : i32
    %c0_i32_1 = arith.constant 0 : i32
    %c0_i32_2 = arith.constant 0 : i32
    return %arg0, %c0_i32, %c0_i32_0, %c0_i32_1 : i32, i32, i32, i32
  }
  func.func @transform_11(%arg0: i32) -> (i32, i32, i32) {
    %c0_i32 = arith.constant 0 : i32
    %c0_i32_0 = arith.constant 0 : i32
    %c0_i32_1 = arith.constant 0 : i32
    return %arg0, %c0_i32, %c0_i32_0 : i32, i32, i32
  }
  func.func @transform_12(%arg0: i32) -> (i32, i32, i32) {
    %c0_i32 = arith.constant 0 : i32
    %c0_i32_0 = arith.constant 0 : i32
    %c0_i32_1 = arith.constant 0 : i32
    return %arg0, %c0_i32, %c0_i32_0 : i32, i32, i32
  }
  func.func @transform_13(%arg0: i32) -> (i32, i32, i32) {
    %c0_i32 = arith.constant 0 : i32
    %c0_i32_0 = arith.constant 0 : i32
    %c0_i32_1 = arith.constant 0 : i32
    return %arg0, %c0_i32, %c0_i32_0 : i32, i32, i32
  }
  func.func @transform_14(%arg0: i32) -> (i32, i32, i32) {
    %c0_i32 = arith.constant 0 : i32
    %c0_i32_0 = arith.constant 0 : i32
    %c0_i32_1 = arith.constant 0 : i32
    return %arg0, %c0_i32, %c0_i32_0 : i32, i32, i32
  }
  func.func @transform_15(%arg0: i32) -> (i32, i32, i32) {
    %c0_i32 = arith.constant 0 : i32
    %c0_i32_0 = arith.constant 0 : i32
    %c0_i32_1 = arith.constant 0 : i32
    return %arg0, %c0_i32, %c0_i32_0 : i32, i32, i32
  }
  func.func @transform_16(%arg0: i32) -> (i32, i32, i32) {
    %c0_i32 = arith.constant 0 : i32
    %c0_i32_0 = arith.constant 0 : i32
    %c0_i32_1 = arith.constant 0 : i32
    return %arg0, %c0_i32, %c0_i32_0 : i32, i32, i32
  }
  func.func @transform_17(%arg0: i32) -> (i32, i32, i32) {
    %c0_i32 = arith.constant 0 : i32
    %c0_i32_0 = arith.constant 0 : i32
    %c0_i32_1 = arith.constant 0 : i32
    return %arg0, %c0_i32, %c0_i32_0 : i32, i32, i32
  }
  func.func @transform_18(%arg0: i32) -> (i32, i32, i32) {
    %c0_i32 = arith.constant 0 : i32
    %c0_i32_0 = arith.constant 0 : i32
    %c0_i32_1 = arith.constant 0 : i32
    return %arg0, %c0_i32, %c0_i32_0 : i32, i32, i32
  }
  func.func @transform_19(%arg0: i32) -> (i32, i32, i32) {
    %c0_i32 = arith.constant 0 : i32
    %c0_i32_0 = arith.constant 0 : i32
    %c0_i32_1 = arith.constant 0 : i32
    return %arg0, %c0_i32, %c0_i32_0 : i32, i32, i32
  }
  func.func @transform_20(%arg0: i32) -> (i32, i32) {
    %c0_i32 = arith.constant 0 : i32
    %c0_i32_0 = arith.constant 0 : i32
    %c0_i32_1 = arith.constant 0 : i32
    return %c0_i32, %c0_i32_0 : i32, i32
  }
}

</mosaic_0001>

<llo_original>
// kernel: bert_encoder_forward.1
$region0: #{bert_encoder_forward.1}
  #allocation0 [shape = 'u32[]', space=smem, size = 0x4, offset = 0x4, fixed_abs, tag = 'smem constant byte address 0x4 - core index']
  #allocation1 [shape = 'u32[144,128]{1,0:T(1,128)}', space=vmem, size = 0x12000, scoped, tag = 'internal scratch']
  %s0 = inlined_call_operand.vmem [shape: f32[16,32], index: 0, kind: input, shape index: {}]
  %s1 = inlined_call_operand.vmem [shape: f32[2,1,8], index: 1, kind: input, shape index: {}]
  %s2 = inlined_call_operand.vmem [shape: f32[1,32], index: 2, kind: input, shape index: {}]
  %s3 = inlined_call_operand.vmem [shape: f32[1,32], index: 3, kind: input, shape index: {}]
  %s4 = inlined_call_operand.vmem [shape: bf16[2,32,32], index: 4, kind: input, shape index: {}]
  %s5 = inlined_call_operand.vmem [shape: f32[2,1,32], index: 5, kind: input, shape index: {}]
  %s6 = inlined_call_operand.vmem [shape: bf16[2,32,32], index: 6, kind: input, shape index: {}]
  %s7 = inlined_call_operand.vmem [shape: f32[2,1,32], index: 7, kind: input, shape index: {}]
  %s8 = inlined_call_operand.vmem [shape: bf16[2,32,32], index: 8, kind: input, shape index: {}]
  %s9 = inlined_call_operand.vmem [shape: f32[2,1,32], index: 9, kind: input, shape index: {}]
  %s10 = inlined_call_operand.vmem [shape: bf16[2,4,8,32], index: 10, kind: input, shape index: {}]
  %s11 = inlined_call_operand.vmem [shape: f32[2,1,32], index: 11, kind: input, shape index: {}]
  %s12 = inlined_call_operand.vmem [shape: f32[2,1,32], index: 12, kind: input, shape index: {}]
  %s13 = inlined_call_operand.vmem [shape: f32[2,1,32], index: 13, kind: input, shape index: {}]
  %s14 = inlined_call_operand.vmem [shape: bf16[2,32,64], index: 14, kind: input, shape index: {}]
  %s15 = inlined_call_operand.vmem [shape: f32[2,1,64], index: 15, kind: input, shape index: {}]
  %s16 = inlined_call_operand.vmem [shape: bf16[2,64,32], index: 16, kind: input, shape index: {}]
  %s17 = inlined_call_operand.vmem [shape: f32[2,1,32], index: 17, kind: input, shape index: {}]
  %s18 = inlined_call_operand.vmem [shape: f32[2,1,32], index: 18, kind: input, shape index: {}]
  %s19 = inlined_call_operand.vmem [shape: f32[2,1,32], index: 19, kind: input, shape index: {}]
  %s20 = inlined_call_operand.vmem [shape: f32[16,32], index: 20, kind: output, shape index: {}]
  %s21 = sld [smem:[#allocation0]]
  $region117: #{bert_encoder_forward.1} parent=0
    _
  %s23 = ssub.s32 1, %s21
  %s24 = scalar_select 0, %s23, %s21
  loop: start=0, step=1, limit=4
  $region2: #{bert_encoder_forward.1} parent=0 // loop_pre_header
    _
  $region3: #{bert_encoder_forward.1} parent=0 // loop_header
    %s26 = sphi 0, %s30
    %p27 = scmp.ge.s32.totalorder %s26, 4
    %s34 = sphi 0, %s34
    %s36 = sphi 0, %s34
    %s37 = sphi 0, %s36
    %s51 = sphi 0, %s37
    %s55 = sphi 0, %s55
    %s57 = sphi 0, %s55
    %s58 = sphi 0, %s57
    %s72 = sphi 0, %s58
    %s76 = sphi 0, %s76
    %s78 = sphi 0, %s76
    %s79 = sphi 0, %s78
    %s93 = sphi 0, %s79
    %s97 = sphi 0, %s97
    %s99 = sphi 0, %s97
    %s100 = sphi 0, %s99
    %s114 = sphi 0, %s100
    %s120 = sphi 0, %s122
    %s123 = sphi 0, %s120
    %s124 = sphi 0, %s123
    %s140 = sphi 0, %s124
    %s146 = sphi 0, %s148
    %s149 = sphi 0, %s146
    %s150 = sphi 0, %s149
    %s166 = sphi 0, %s150
    %s172 = sphi 0, %s174
    %s175 = sphi 0, %s172
    %s176 = sphi 0, %s175
    %s192 = sphi 0, %s176
    %s198 = sphi 0, %s200
    %s201 = sphi 0, %s198
    %s202 = sphi 0, %s201
    %s218 = sphi 0, %s202
    %s224 = sphi 0, %s226
    %s227 = sphi 0, %s224
    %s228 = sphi 0, %s227
    %s244 = sphi 0, %s228
    %s250 = sphi 0, %s252
    %s253 = sphi 0, %s250
    %s254 = sphi 0, %s253
    %s270 = sphi 0, %s254
    %s276 = sphi 0, %s278
    %s279 = sphi 0, %s276
    %s280 = sphi 0, %s279
    %s296 = sphi 0, %s280
    %s302 = sphi 0, %s304
    %s305 = sphi 0, %s302
    %s306 = sphi 0, %s305
    %s322 = sphi 0, %s306
    %s328 = sphi 0, %s330
    %s331 = sphi 0, %s328
    %s332 = sphi 0, %s331
    %s348 = sphi 0, %s332
    %s354 = sphi 0, %s356
    %s357 = sphi 0, %s354
    %s358 = sphi 0, %s357
    %s374 = sphi 0, %s358
    %s380 = sphi 0, %s382
    %s383 = sphi 0, %s380
    %s384 = sphi 0, %s383
    %s400 = sphi 0, %s384
    %s406 = sphi 0, %s408
    %s409 = sphi 0, %s406
    %s410 = sphi 0, %s409
    %s426 = sphi 0, %s410
    %s432 = sphi 0, %s434
    %s435 = sphi 0, %s432
    %s436 = sphi 0, %s435
    %s452 = sphi 0, %s436
    %s458 = sphi 0, %s460
    %s461 = sphi 0, %s458
    %s462 = sphi 0, %s461
    %s478 = sphi 0, %s462
    %s484 = sphi 0, %s486
    %s487 = sphi 0, %s484
    %s488 = sphi 0, %s487
    %s504 = sphi 0, %s488
    %s510 = sphi 0, %s512
    %s513 = sphi 0, %s510
    %s514 = sphi 0, %s513
    %s530 = sphi 0, %s514
    %s534 = sphi 0, %s534
    %s536 = sphi 0, %s534
    %s537 = sphi 0, %s536
    %s551 = sphi 0, %s537
  $region4: #{bert_encoder_forward.1} parent=0 // loop_header_branch
    %29 = sbr.rel (%p27) target = $region8
  $region5: #{bert_encoder_forward.1} parent=0 // loop_body
    %s31 = ssub.s32 %s26, 1
    %s32 = ssub.s32 %s26, 2
    %s33 = sadd.s32 %s26, 1
    %s35 = sadd.s32 %s34, 1
    %p38 = scmp.eq.s32.totalorder %s26, 1
    %p39 = scmp.ne.s32.totalorder %s34, %s36
    %p40 = scmp.eq.s32.totalorder %s26, 0
    %p41 = por %p39, %p40
    %p42 = scmp.ne.s32.totalorder %s34, %s36
    %p43 = scmp.eq.s32.totalorder %s31, 1
    %p44 = por %p42, %p43
    %p45 = scmp.ne.s32.totalorder %s36, %s37
    %p46 = scmp.eq.s32.totalorder %s31, 0
    %p47 = por %p45, %p46
    %p48 = scmp.ne.s32.totalorder %s36, %s37
    %p49 = scmp.eq.s32.totalorder %s32, 1
    %p50 = por %p48, %p49
    %p52 = scmp.ne.s32.totalorder %s37, %s51
    %p53 = scmp.eq.s32.totalorder %s32, 0
    %p54 = por %p52, %p53
    %s56 = sadd.s32 %s55, 1
    %p59 = scmp.eq.s32.totalorder %s26, 1
    %p60 = scmp.ne.s32.totalorder %s55, %s57
    %p61 = scmp.eq.s32.totalorder %s26, 0
    %p62 = por %p60, %p61
    %p63 = scmp.ne.s32.totalorder %s55, %s57
    %p64 = scmp.eq.s32.totalorder %s31, 1
    %p65 = por %p63, %p64
    %p66 = scmp.ne.s32.totalorder %s57, %s58
    %p67 = scmp.eq.s32.totalorder %s31, 0
    %p68 = por %p66, %p67
    %p69 = scmp.ne.s32.totalorder %s57, %s58
    %p70 = scmp.eq.s32.totalorder %s32, 1
    %p71 = por %p69, %p70
    %p73 = scmp.ne.s32.totalorder %s58, %s72
    %p74 = scmp.eq.s32.totalorder %s32, 0
    %p75 = por %p73, %p74
    %s77 = sadd.s32 %s76, 1
    %p80 = scmp.eq.s32.totalorder %s26, 1
    %p81 = scmp.ne.s32.totalorder %s76, %s78
    %p82 = scmp.eq.s32.totalorder %s26, 0
    %p83 = por %p81, %p82
    %p84 = scmp.ne.s32.totalorder %s76, %s78
    %p85 = scmp.eq.s32.totalorder %s31, 1
    %p86 = por %p84, %p85
    %p87 = scmp.ne.s32.totalorder %s78, %s79
    %p88 = scmp.eq.s32.totalorder %s31, 0
    %p89 = por %p87, %p88
    %p90 = scmp.ne.s32.totalorder %s78, %s79
    %p91 = scmp.eq.s32.totalorder %s32, 1
    %p92 = por %p90, %p91
    %p94 = scmp.ne.s32.totalorder %s79, %s93
    %p95 = scmp.eq.s32.totalorder %s32, 0
    %p96 = por %p94, %p95
    %s98 = sadd.s32 %s97, 1
    %p101 = scmp.eq.s32.totalorder %s26, 1
    %p102 = scmp.ne.s32.totalorder %s97, %s99
    %p103 = scmp.eq.s32.totalorder %s26, 0
    %p104 = por %p102, %p103
    %p105 = scmp.ne.s32.totalorder %s97, %s99
    %p106 = scmp.eq.s32.totalorder %s31, 1
    %p107 = por %p105, %p106
    %p108 = scmp.ne.s32.totalorder %s99, %s100
    %p109 = scmp.eq.s32.totalorder %s31, 0
    %p110 = por %p108, %p109
    %p111 = scmp.ne.s32.totalorder %s99, %s100
    %p112 = scmp.eq.s32.totalorder %s32, 1
    %p113 = por %p111, %p112
    %p115 = scmp.ne.s32.totalorder %s100, %s114
    %p116 = scmp.eq.s32.totalorder %s32, 0
    %p117 = por %p115, %p116
    %s118 = ssub.s32 %s26, %s33
    %p119 = scmp.eq.s32.totalorder %s118, 0
    %s121 = sadd.s32 %s120, 1
    %s122 = scalar_select %p119, %s120, %s121
    %p125 = pneg %p119
    %p126 = scmp.eq.s32.totalorder %s26, 1
    %p127 = por %p125, %p126
    %p128 = scmp.ne.s32.totalorder %s120, %s123
    %p129 = scmp.eq.s32.totalorder %s26, 0
    %p130 = por %p128, %p129
    %p131 = scmp.ne.s32.totalorder %s120, %s123
    %p132 = scmp.eq.s32.totalorder %s31, 1
    %p133 = por %p131, %p132
    %p134 = scmp.ne.s32.totalorder %s123, %s124
    %p135 = scmp.eq.s32.totalorder %s31, 0
    %p136 = por %p134, %p135
    %p137 = scmp.ne.s32.totalorder %s123, %s124
    %p138 = scmp.eq.s32.totalorder %s32, 1
    %p139 = por %p137, %p138
    %p141 = scmp.ne.s32.totalorder %s124, %s140
    %p142 = scmp.eq.s32.totalorder %s32, 0
    %p143 = por %p141, %p142
    %s144 = ssub.s32 %s26, %s33
    %p145 = scmp.eq.s32.totalorder %s144, 0
    %s147 = sadd.s32 %s146, 1
    %s148 = scalar_select %p145, %s146, %s147
    %p151 = pneg %p145
    %p152 = scmp.eq.s32.totalorder %s26, 1
    %p153 = por %p151, %p152
    %p154 = scmp.ne.s32.totalorder %s146, %s149
    %p155 = scmp.eq.s32.totalorder %s26, 0
    %p156 = por %p154, %p155
    %p157 = scmp.ne.s32.totalorder %s146, %s149
    %p158 = scmp.eq.s32.totalorder %s31, 1
    %p159 = por %p157, %p158
    %p160 = scmp.ne.s32.totalorder %s149, %s150
    %p161 = scmp.eq.s32.totalorder %s31, 0
    %p162 = por %p160, %p161
    %p163 = scmp.ne.s32.totalorder %s149, %s150
    %p164 = scmp.eq.s32.totalorder %s32, 1
    %p165 = por %p163, %p164
    %p167 = scmp.ne.s32.totalorder %s150, %s166
    %p168 = scmp.eq.s32.totalorder %s32, 0
    %p169 = por %p167, %p168
    %s170 = ssub.s32 %s26, %s33
    %p171 = scmp.eq.s32.totalorder %s170, 0
    %s173 = sadd.s32 %s172, 1
    %s174 = scalar_select %p171, %s172, %s173
    %p177 = pneg %p171
    %p178 = scmp.eq.s32.totalorder %s26, 1
    %p179 = por %p177, %p178
    %p180 = scmp.ne.s32.totalorder %s172, %s175
    %p181 = scmp.eq.s32.totalorder %s26, 0
    %p182 = por %p180, %p181
    %p183 = scmp.ne.s32.totalorder %s172, %s175
    %p184 = scmp.eq.s32.totalorder %s31, 1
    %p185 = por %p183, %p184
    %p186 = scmp.ne.s32.totalorder %s175, %s176
    %p187 = scmp.eq.s32.totalorder %s31, 0
    %p188 = por %p186, %p187
    %p189 = scmp.ne.s32.totalorder %s175, %s176
    %p190 = scmp.eq.s32.totalorder %s32, 1
    %p191 = por %p189, %p190
    %p193 = scmp.ne.s32.totalorder %s176, %s192
    %p194 = scmp.eq.s32.totalorder %s32, 0
    %p195 = por %p193, %p194
    %s196 = ssub.s32 %s26, %s33
    %p197 = scmp.eq.s32.totalorder %s196, 0
    %s199 = sadd.s32 %s198, 1
    %s200 = scalar_select %p197, %s198, %s199
    %p203 = pneg %p197
    %p204 = scmp.eq.s32.totalorder %s26, 1
    %p205 = por %p203, %p204
    %p206 = scmp.ne.s32.totalorder %s198, %s201
    %p207 = scmp.eq.s32.totalorder %s26, 0
    %p208 = por %p206, %p207
    %p209 = scmp.ne.s32.totalorder %s198, %s201
    %p210 = scmp.eq.s32.totalorder %s31, 1
    %p211 = por %p209, %p210
    %p212 = scmp.ne.s32.totalorder %s201, %s202
    %p213 = scmp.eq.s32.totalorder %s31, 0
    %p214 = por %p212, %p213
    %p215 = scmp.ne.s32.totalorder %s201, %s202
    %p216 = scmp.eq.s32.totalorder %s32, 1
    %p217 = por %p215, %p216
    %p219 = scmp.ne.s32.totalorder %s202, %s218
    %p220 = scmp.eq.s32.totalorder %s32, 0
    %p221 = por %p219, %p220
    %s222 = ssub.s32 %s26, %s33
    %p223 = scmp.eq.s32.totalorder %s222, 0
    %s225 = sadd.s32 %s224, 1
    %s226 = scalar_select %p223, %s224, %s225
    %p229 = pneg %p223
    %p230 = scmp.eq.s32.totalorder %s26, 1
    %p231 = por %p229, %p230
    %p232 = scmp.ne.s32.totalorder %s224, %s227
    %p233 = scmp.eq.s32.totalorder %s26, 0
    %p234 = por %p232, %p233
    %p235 = scmp.ne.s32.totalorder %s224, %s227
    %p236 = scmp.eq.s32.totalorder %s31, 1
    %p237 = por %p235, %p236
    %p238 = scmp.ne.s32.totalorder %s227, %s228
    %p239 = scmp.eq.s32.totalorder %s31, 0
    %p240 = por %p238, %p239
    %p241 = scmp.ne.s32.totalorder %s227, %s228
    %p242 = scmp.eq.s32.totalorder %s32, 1
    %p243 = por %p241, %p242
    %p245 = scmp.ne.s32.totalorder %s228, %s244
    %p246 = scmp.eq.s32.totalorder %s32, 0
    %p247 = por %p245, %p246
    %s248 = ssub.s32 %s26, %s33
    %p249 = scmp.eq.s32.totalorder %s248, 0
    %s251 = sadd.s32 %s250, 1
    %s252 = scalar_select %p249, %s250, %s251
    %p255 = pneg %p249
    %p256 = scmp.eq.s32.totalorder %s26, 1
    %p257 = por %p255, %p256
    %p258 = scmp.ne.s32.totalorder %s250, %s253
    %p259 = scmp.eq.s32.totalorder %s26, 0
    %p260 = por %p258, %p259
    %p261 = scmp.ne.s32.totalorder %s250, %s253
    %p262 = scmp.eq.s32.totalorder %s31, 1
    %p263 = por %p261, %p262
    %p264 = scmp.ne.s32.totalorder %s253, %s254
    %p265 = scmp.eq.s32.totalorder %s31, 0
    %p266 = por %p264, %p265
    %p267 = scmp.ne.s32.totalorder %s253, %s254
    %p268 = scmp.eq.s32.totalorder %s32, 1
    %p269 = por %p267, %p268
    %p271 = scmp.ne.s32.totalorder %s254, %s270
    %p272 = scmp.eq.s32.totalorder %s32, 0
    %p273 = por %p271, %p272
    %s274 = ssub.s32 %s26, %s33
    %p275 = scmp.eq.s32.totalorder %s274, 0
    %s277 = sadd.s32 %s276, 1
    %s278 = scalar_select %p275, %s276, %s277
    %p281 = pneg %p275
    %p282 = scmp.eq.s32.totalorder %s26, 1
    %p283 = por %p281, %p282
    %p284 = scmp.ne.s32.totalorder %s276, %s279
    %p285 = scmp.eq.s32.totalorder %s26, 0
    %p286 = por %p284, %p285
    %p287 = scmp.ne.s32.totalorder %s276, %s279
    %p288 = scmp.eq.s32.totalorder %s31, 1
    %p289 = por %p287, %p288
    %p290 = scmp.ne.s32.totalorder %s279, %s280
    %p291 = scmp.eq.s32.totalorder %s31, 0
    %p292 = por %p290, %p291
    %p293 = scmp.ne.s32.totalorder %s279, %s280
    %p294 = scmp.eq.s32.totalorder %s32, 1
    %p295 = por %p293, %p294
    %p297 = scmp.ne.s32.totalorder %s280, %s296
    %p298 = scmp.eq.s32.totalorder %s32, 0
    %p299 = por %p297, %p298
    %s300 = ssub.s32 %s26, %s33
    %p301 = scmp.eq.s32.totalorder %s300, 0
    %s303 = sadd.s32 %s302, 1
    %s304 = scalar_select %p301, %s302, %s303
    %p307 = pneg %p301
    %p308 = scmp.eq.s32.totalorder %s26, 1
    %p309 = por %p307, %p308
    %p310 = scmp.ne.s32.totalorder %s302, %s305
    %p311 = scmp.eq.s32.totalorder %s26, 0
    %p312 = por %p310, %p311
    %p313 = scmp.ne.s32.totalorder %s302, %s305
    %p314 = scmp.eq.s32.totalorder %s31, 1
    %p315 = por %p313, %p314
    %p316 = scmp.ne.s32.totalorder %s305, %s306
    %p317 = scmp.eq.s32.totalorder %s31, 0
    %p318 = por %p316, %p317
    %p319 = scmp.ne.s32.totalorder %s305, %s306
    %p320 = scmp.eq.s32.totalorder %s32, 1
    %p321 = por %p319, %p320
    %p323 = scmp.ne.s32.totalorder %s306, %s322
    %p324 = scmp.eq.s32.totalorder %s32, 0
    %p325 = por %p323, %p324
    %s326 = ssub.s32 %s26, %s33
    %p327 = scmp.eq.s32.totalorder %s326, 0
    %s329 = sadd.s32 %s328, 1
    %s330 = scalar_select %p327, %s328, %s329
    %p333 = pneg %p327
    %p334 = scmp.eq.s32.totalorder %s26, 1
    %p335 = por %p333, %p334
    %p336 = scmp.ne.s32.totalorder %s328, %s331
    %p337 = scmp.eq.s32.totalorder %s26, 0
    %p338 = por %p336, %p337
    %p339 = scmp.ne.s32.totalorder %s328, %s331
    %p340 = scmp.eq.s32.totalorder %s31, 1
    %p341 = por %p339, %p340
    %p342 = scmp.ne.s32.totalorder %s331, %s332
    %p343 = scmp.eq.s32.totalorder %s31, 0
    %p344 = por %p342, %p343
    %p345 = scmp.ne.s32.totalorder %s331, %s332
    %p346 = scmp.eq.s32.totalorder %s32, 1
    %p347 = por %p345, %p346
    %p349 = scmp.ne.s32.totalorder %s332, %s348
    %p350 = scmp.eq.s32.totalorder %s32, 0
    %p351 = por %p349, %p350
    %s352 = ssub.s32 %s26, %s33
    %p353 = scmp.eq.s32.totalorder %s352, 0
    %s355 = sadd.s32 %s354, 1
    %s356 = scalar_select %p353, %s354, %s355
    %p359 = pneg %p353
    %p360 = scmp.eq.s32.totalorder %s26, 1
    %p361 = por %p359, %p360
    %p362 = scmp.ne.s32.totalorder %s354, %s357
    %p363 = scmp.eq.s32.totalorder %s26, 0
    %p364 = por %p362, %p363
    %p365 = scmp.ne.s32.totalorder %s354, %s357
    %p366 = scmp.eq.s32.totalorder %s31, 1
    %p367 = por %p365, %p366
    %p368 = scmp.ne.s32.totalorder %s357, %s358
    %p369 = scmp.eq.s32.totalorder %s31, 0
    %p370 = por %p368, %p369
    %p371 = scmp.ne.s32.totalorder %s357, %s358
    %p372 = scmp.eq.s32.totalorder %s32, 1
    %p373 = por %p371, %p372
    %p375 = scmp.ne.s32.totalorder %s358, %s374
    %p376 = scmp.eq.s32.totalorder %s32, 0
    %p377 = por %p375, %p376
    %s378 = ssub.s32 %s26, %s33
    %p379 = scmp.eq.s32.totalorder %s378, 0
    %s381 = sadd.s32 %s380, 1
    %s382 = scalar_select %p379, %s380, %s381
    %p385 = pneg %p379
    %p386 = scmp.eq.s32.totalorder %s26, 1
    %p387 = por %p385, %p386
    %p388 = scmp.ne.s32.totalorder %s380, %s383
    %p389 = scmp.eq.s32.totalorder %s26, 0
    %p390 = por %p388, %p389
    %p391 = scmp.ne.s32.totalorder %s380, %s383
    %p392 = scmp.eq.s32.totalorder %s31, 1
    %p393 = por %p391, %p392
    %p394 = scmp.ne.s32.totalorder %s383, %s384
    %p395 = scmp.eq.s32.totalorder %s31, 0
    %p396 = por %p394, %p395
    %p397 = scmp.ne.s32.totalorder %s383, %s384
    %p398 = scmp.eq.s32.totalorder %s32, 1
    %p399 = por %p397, %p398
    %p401 = scmp.ne.s32.totalorder %s384, %s400
    %p402 = scmp.eq.s32.totalorder %s32, 0
    %p403 = por %p401, %p402
    %s404 = ssub.s32 %s26, %s33
    %p405 = scmp.eq.s32.totalorder %s404, 0
    %s407 = sadd.s32 %s406, 1
    %s408 = scalar_select %p405, %s406, %s407
    %p411 = pneg %p405
    %p412 = scmp.eq.s32.totalorder %s26, 1
    %p413 = por %p411, %p412
    %p414 = scmp.ne.s32.totalorder %s406, %s409
    %p415 = scmp.eq.s32.totalorder %s26, 0
    %p416 = por %p414, %p415
    %p417 = scmp.ne.s32.totalorder %s406, %s409
    %p418 = scmp.eq.s32.totalorder %s31, 1
    %p419 = por %p417, %p418
    %p420 = scmp.ne.s32.totalorder %s409, %s410
    %p421 = scmp.eq.s32.totalorder %s31, 0
    %p422 = por %p420, %p421
    %p423 = scmp.ne.s32.totalorder %s409, %s410
    %p424 = scmp.eq.s32.totalorder %s32, 1
    %p425 = por %p423, %p424
    %p427 = scmp.ne.s32.totalorder %s410, %s426
    %p428 = scmp.eq.s32.totalorder %s32, 0
    %p429 = por %p427, %p428
    %s430 = ssub.s32 %s26, %s33
    %p431 = scmp.eq.s32.totalorder %s430, 0
    %s433 = sadd.s32 %s432, 1
    %s434 = scalar_select %p431, %s432, %s433
    %p437 = pneg %p431
    %p438 = scmp.eq.s32.totalorder %s26, 1
    %p439 = por %p437, %p438
    %p440 = scmp.ne.s32.totalorder %s432, %s435
    %p441 = scmp.eq.s32.totalorder %s26, 0
    %p442 = por %p440, %p441
    %p443 = scmp.ne.s32.totalorder %s432, %s435
    %p444 = scmp.eq.s32.totalorder %s31, 1
    %p445 = por %p443, %p444
    %p446 = scmp.ne.s32.totalorder %s435, %s436
    %p447 = scmp.eq.s32.totalorder %s31, 0
    %p448 = por %p446, %p447
    %p449 = scmp.ne.s32.totalorder %s435, %s436
    %p450 = scmp.eq.s32.totalorder %s32, 1
    %p451 = por %p449, %p450
    %p453 = scmp.ne.s32.totalorder %s436, %s452
    %p454 = scmp.eq.s32.totalorder %s32, 0
    %p455 = por %p453, %p454
    %s456 = ssub.s32 %s26, %s33
    %p457 = scmp.eq.s32.totalorder %s456, 0
    %s459 = sadd.s32 %s458, 1
    %s460 = scalar_select %p457, %s458, %s459
    %p463 = pneg %p457
    %p464 = scmp.eq.s32.totalorder %s26, 1
    %p465 = por %p463, %p464
    %p466 = scmp.ne.s32.totalorder %s458, %s461
    %p467 = scmp.eq.s32.totalorder %s26, 0
    %p468 = por %p466, %p467
    %p469 = scmp.ne.s32.totalorder %s458, %s461
    %p470 = scmp.eq.s32.totalorder %s31, 1
    %p471 = por %p469, %p470
    %p472 = scmp.ne.s32.totalorder %s461, %s462
    %p473 = scmp.eq.s32.totalorder %s31, 0
    %p474 = por %p472, %p473
    %p475 = scmp.ne.s32.totalorder %s461, %s462
    %p476 = scmp.eq.s32.totalorder %s32, 1
    %p477 = por %p475, %p476
    %p479 = scmp.ne.s32.totalorder %s462, %s478
    %p480 = scmp.eq.s32.totalorder %s32, 0
    %p481 = por %p479, %p480
    %s482 = ssub.s32 %s26, %s33
    %p483 = scmp.eq.s32.totalorder %s482, 0
    %s485 = sadd.s32 %s484, 1
    %s486 = scalar_select %p483, %s484, %s485
    %p489 = pneg %p483
    %p490 = scmp.eq.s32.totalorder %s26, 1
    %p491 = por %p489, %p490
    %p492 = scmp.ne.s32.totalorder %s484, %s487
    %p493 = scmp.eq.s32.totalorder %s26, 0
    %p494 = por %p492, %p493
    %p495 = scmp.ne.s32.totalorder %s484, %s487
    %p496 = scmp.eq.s32.totalorder %s31, 1
    %p497 = por %p495, %p496
    %p498 = scmp.ne.s32.totalorder %s487, %s488
    %p499 = scmp.eq.s32.totalorder %s31, 0
    %p500 = por %p498, %p499
    %p501 = scmp.ne.s32.totalorder %s487, %s488
    %p502 = scmp.eq.s32.totalorder %s32, 1
    %p503 = por %p501, %p502
    %p505 = scmp.ne.s32.totalorder %s488, %s504
    %p506 = scmp.eq.s32.totalorder %s32, 0
    %p507 = por %p505, %p506
    %s508 = ssub.s32 %s26, %s33
    %p509 = scmp.eq.s32.totalorder %s508, 0
    %s511 = sadd.s32 %s510, 1
    %s512 = scalar_select %p509, %s510, %s511
    %p515 = pneg %p509
    %p516 = scmp.eq.s32.totalorder %s26, 1
    %p517 = por %p515, %p516
    %p518 = scmp.ne.s32.totalorder %s510, %s513
    %p519 = scmp.eq.s32.totalorder %s26, 0
    %p520 = por %p518, %p519
    %p521 = scmp.ne.s32.totalorder %s510, %s513
    %p522 = scmp.eq.s32.totalorder %s31, 1
    %p523 = por %p521, %p522
    %p524 = scmp.ne.s32.totalorder %s513, %s514
    %p525 = scmp.eq.s32.totalorder %s31, 0
    %p526 = por %p524, %p525
    %p527 = scmp.ne.s32.totalorder %s513, %s514
    %p528 = scmp.eq.s32.totalorder %s32, 1
    %p529 = por %p527, %p528
    %p531 = scmp.ne.s32.totalorder %s514, %s530
    %p532 = scmp.eq.s32.totalorder %s32, 0
    %p533 = por %p531, %p532
    %s535 = sadd.s32 %s534, 1
    %p538 = scmp.eq.s32.totalorder %s26, 1
    %p539 = scmp.ne.s32.totalorder %s534, %s536
    %p540 = scmp.eq.s32.totalorder %s26, 0
    %p541 = por %p539, %p540
    %p542 = scmp.ne.s32.totalorder %s534, %s536
    %p543 = scmp.eq.s32.totalorder %s31, 1
    %p544 = por %p542, %p543
    %p545 = scmp.ne.s32.totalorder %s536, %s537
    %p546 = scmp.eq.s32.totalorder %s31, 0
    %p547 = por %p545, %p546
    %p548 = scmp.ne.s32.totalorder %s536, %s537
    %p549 = scmp.eq.s32.totalorder %s32, 1
    %p550 = por %p548, %p549
    %p552 = scmp.ne.s32.totalorder %s537, %s551
    %p553 = scmp.eq.s32.totalorder %s32, 0
    %p554 = por %p552, %p553
    %p555 = scmp.le.s32.totalorder 1, %s26
    %p556 = scmp.lt.s32.totalorder %s26, 3
    %p557 = pnand %p555, %p556
    %p558 = pneg %p557
    // Predicated region
    $region9: #{bert_encoder_forward.1} parent=5 // pred_check
      _
    $region10: #{bert_encoder_forward.1} parent=5 // pred_check_branch
      %560 = sbr.rel (%p557) target = $region12
    $region11: #{bert_encoder_forward.1} parent=5 // pred_region
      %s561 = ssub.s32 %s26, 1
      // Predicated region
      $region13: #{bert_encoder_forward.1} parent=11 // pred_check
        %p562 = pneg %p47
      $region14: #{bert_encoder_forward.1} parent=11 // pred_check_branch
        %564 = sbr.rel (%p562) target = $region16
      $region15: #{bert_encoder_forward.1} parent=11 // pred_region
        _
      $region16: #{bert_encoder_forward.1} parent=11 // pred_fallthru
        _
      // Predicated region
      $region17: #{bert_encoder_forward.1} parent=11 // pred_check
        %p565 = pneg %p68
      $region18: #{bert_encoder_forward.1} parent=11 // pred_check_branch
        %567 = sbr.rel (%p565) target = $region20
      $region19: #{bert_encoder_forward.1} parent=11 // pred_region
        _
      $region20: #{bert_encoder_forward.1} parent=11 // pred_fallthru
        _
      // Predicated region
      $region21: #{bert_encoder_forward.1} parent=11 // pred_check
        %p568 = pneg %p89
      $region22: #{bert_encoder_forward.1} parent=11 // pred_check_branch
        %570 = sbr.rel (%p568) target = $region24
      $region23: #{bert_encoder_forward.1} parent=11 // pred_region
        _
      $region24: #{bert_encoder_forward.1} parent=11 // pred_fallthru
        _
      // Predicated region
      $region25: #{bert_encoder_forward.1} parent=11 // pred_check
        %p571 = pneg %p110
      $region26: #{bert_encoder_forward.1} parent=11 // pred_check_branch
        %573 = sbr.rel (%p571) target = $region28
      $region27: #{bert_encoder_forward.1} parent=11 // pred_region
        _
      $region28: #{bert_encoder_forward.1} parent=11 // pred_fallthru
        _
    $region12: #{bert_encoder_forward.1} parent=5 // pred_fallthru
      _
    %p574 = scmp.lt.s32.totalorder %s26, 2
    // Predicated region
    $region29: #{bert_encoder_forward.1} parent=5 // pred_check
      %p575 = pneg %p574
    $region30: #{bert_encoder_forward.1} parent=5 // pred_check_branch
      %577 = sbr.rel (%p575) target = $region32
    $region31: #{bert_encoder_forward.1} parent=5 // pred_region
      // Predicated region
      $region33: #{bert_encoder_forward.1} parent=31 // pred_check
        %p578 = pneg %p130
      $region34: #{bert_encoder_forward.1} parent=31 // pred_check_branch
        %580 = sbr.rel (%p578) target = $region36
      $region35: #{bert_encoder_forward.1} parent=31 // pred_region
        %p581 = scmp.lt.s32.totalorder %s26, 1
        %s582 = scalar_select %p581, %s26, 1
        %s583 = smul.addr %s582, 4
        %s584 = smul.addr %s583, 4
        %s585 = scalar_lea.vmem %s4, %s584
      $region36: #{bert_encoder_forward.1} parent=31 // pred_fallthru
        _
      // Predicated region
      $region37: #{bert_encoder_forward.1} parent=31 // pred_check
        %p586 = pneg %p156
      $region38: #{bert_encoder_forward.1} parent=31 // pred_check_branch
        %588 = sbr.rel (%p586) target = $region40
      $region39: #{bert_encoder_forward.1} parent=31 // pred_region
        %p589 = scmp.lt.s32.totalorder %s26, 1
        %s590 = scalar_select %p589, %s26, 1
        %s591 = scalar_lea.vmem %s5, %s590
      $region40: #{bert_encoder_forward.1} parent=31 // pred_fallthru
        _
      // Predicated region
      $region41: #{bert_encoder_forward.1} parent=31 // pred_check
        %p592 = pneg %p182
      $region42: #{bert_encoder_forward.1} parent=31 // pred_check_branch
        %594 = sbr.rel (%p592) target = $region44
      $region43: #{bert_encoder_forward.1} parent=31 // pred_region
        %p595 = scmp.lt.s32.totalorder %s26, 1
        %s596 = scalar_select %p595, %s26, 1
        %s597 = smul.addr %s596, 4
        %s598 = smul.addr %s597, 4
        %s599 = scalar_lea.vmem %s6, %s598
      $region44: #{bert_encoder_forward.1} parent=31 // pred_fallthru
        _
      // Predicated region
      $region45: #{bert_encoder_forward.1} parent=31 // pred_check
        %p600 = pneg %p208
      $region46: #{bert_encoder_forward.1} parent=31 // pred_check_branch
        %602 = sbr.rel (%p600) target = $region48
      $region47: #{bert_encoder_forward.1} parent=31 // pred_region
        %p603 = scmp.lt.s32.totalorder %s26, 1
        %s604 = scalar_select %p603, %s26, 1
        %s605 = scalar_lea.vmem %s7, %s604
      $region48: #{bert_encoder_forward.1} parent=31 // pred_fallthru
        _
      // Predicated region
      $region49: #{bert_encoder_forward.1} parent=31 // pred_check
        %p606 = pneg %p234
      $region50: #{bert_encoder_forward.1} parent=31 // pred_check_branch
        %608 = sbr.rel (%p606) target = $region52
      $region51: #{bert_encoder_forward.1} parent=31 // pred_region
        %p609 = scmp.lt.s32.totalorder %s26, 1
        %s610 = scalar_select %p609, %s26, 1
        %s611 = smul.addr %s610, 4
        %s612 = smul.addr %s611, 4
        %s613 = scalar_lea.vmem %s8, %s612
      $region52: #{bert_encoder_forward.1} parent=31 // pred_fallthru
        _
      // Predicated region
      $region53: #{bert_encoder_forward.1} parent=31 // pred_check
        %p614 = pneg %p260
      $region54: #{bert_encoder_forward.1} parent=31 // pred_check_branch
        %616 = sbr.rel (%p614) target = $region56
      $region55: #{bert_encoder_forward.1} parent=31 // pred_region
        %p617 = scmp.lt.s32.totalorder %s26, 1
        %s618 = scalar_select %p617, %s26, 1
        %s619 = scalar_lea.vmem %s9, %s618
      $region56: #{bert_encoder_forward.1} parent=31 // pred_fallthru
        _
      // Predicated region
      $region57: #{bert_encoder_forward.1} parent=31 // pred_check
        %p620 = pneg %p286
      $region58: #{bert_encoder_forward.1} parent=31 // pred_check_branch
        %622 = sbr.rel (%p620) target = $region60
      $region59: #{bert_encoder_forward.1} parent=31 // pred_region
        %p623 = scmp.lt.s32.totalorder %s26, 1
        %s624 = scalar_select %p623, %s26, 1
        %s625 = smul.addr %s624, 4
        %s626 = smul.addr %s625, 4
        %s627 = scalar_lea.vmem %s10, %s626
      $region60: #{bert_encoder_forward.1} parent=31 // pred_fallthru
        _
      // Predicated region
      $region61: #{bert_encoder_forward.1} parent=31 // pred_check
        %p628 = pneg %p312
      $region62: #{bert_encoder_forward.1} parent=31 // pred_check_branch
        %630 = sbr.rel (%p628) target = $region64
      $region63: #{bert_encoder_forward.1} parent=31 // pred_region
        %p631 = scmp.lt.s32.totalorder %s26, 1
        %s632 = scalar_select %p631, %s26, 1
        %s633 = scalar_lea.vmem %s11, %s632
      $region64: #{bert_encoder_forward.1} parent=31 // pred_fallthru
        _
      // Predicated region
      $region65: #{bert_encoder_forward.1} parent=31 // pred_check
        %p634 = pneg %p338
      $region66: #{bert_encoder_forward.1} parent=31 // pred_check_branch
        %636 = sbr.rel (%p634) target = $region68
      $region67: #{bert_encoder_forward.1} parent=31 // pred_region
        %p637 = scmp.lt.s32.totalorder %s26, 1
        %s638 = scalar_select %p637, %s26, 1
        %s639 = scalar_lea.vmem %s12, %s638
      $region68: #{bert_encoder_forward.1} parent=31 // pred_fallthru
        _
      // Predicated region
      $region69: #{bert_encoder_forward.1} parent=31 // pred_check
        %p640 = pneg %p364
      $region70: #{bert_encoder_forward.1} parent=31 // pred_check_branch
        %642 = sbr.rel (%p640) target = $region72
      $region71: #{bert_encoder_forward.1} parent=31 // pred_region
        %p643 = scmp.lt.s32.totalorder %s26, 1
        %s644 = scalar_select %p643, %s26, 1
        %s645 = scalar_lea.vmem %s13, %s644
      $region72: #{bert_encoder_forward.1} parent=31 // pred_fallthru
        _
      // Predicated region
      $region73: #{bert_encoder_forward.1} parent=31 // pred_check
        %p646 = pneg %p390
      $region74: #{bert_encoder_forward.1} parent=31 // pred_check_branch
        %648 = sbr.rel (%p646) target = $region76
      $region75: #{bert_encoder_forward.1} parent=31 // pred_region
        %p649 = scmp.lt.s32.totalorder %s26, 1
        %s650 = scalar_select %p649, %s26, 1
        %s651 = smul.addr %s650, 4
        %s652 = smul.addr %s651, 4
        %s653 = scalar_lea.vmem %s14, %s652
      $region76: #{bert_encoder_forward.1} parent=31 // pred_fallthru
        _
      // Predicated region
      $region77: #{bert_encoder_forward.1} parent=31 // pred_check
        %p654 = pneg %p416
      $region78: #{bert_encoder_forward.1} parent=31 // pred_check_branch
        %656 = sbr.rel (%p654) target = $region80
      $region79: #{bert_encoder_forward.1} parent=31 // pred_region
        %p657 = scmp.lt.s32.totalorder %s26, 1
        %s658 = scalar_select %p657, %s26, 1
        %s659 = scalar_lea.vmem %s15, %s658
      $region80: #{bert_encoder_forward.1} parent=31 // pred_fallthru
        _
      // Predicated region
      $region81: #{bert_encoder_forward.1} parent=31 // pred_check
        %p660 = pneg %p442
      $region82: #{bert_encoder_forward.1} parent=31 // pred_check_branch
        %662 = sbr.rel (%p660) target = $region84
      $region83: #{bert_encoder_forward.1} parent=31 // pred_region
        %p663 = scmp.lt.s32.totalorder %s26, 1
        %s664 = scalar_select %p663, %s26, 1
        %s665 = smul.addr %s664, 8
        %s666 = smul.addr %s665, 4
        %s667 = scalar_lea.vmem %s16, %s666
      $region84: #{bert_encoder_forward.1} parent=31 // pred_fallthru
        _
      // Predicated region
      $region85: #{bert_encoder_forward.1} parent=31 // pred_check
        %p668 = pneg %p468
      $region86: #{bert_encoder_forward.1} parent=31 // pred_check_branch
        %670 = sbr.rel (%p668) target = $region88
      $region87: #{bert_encoder_forward.1} parent=31 // pred_region
        %p671 = scmp.lt.s32.totalorder %s26, 1
        %s672 = scalar_select %p671, %s26, 1
        %s673 = scalar_lea.vmem %s17, %s672
      $region88: #{bert_encoder_forward.1} parent=31 // pred_fallthru
        _
      // Predicated region
      $region89: #{bert_encoder_forward.1} parent=31 // pred_check
        %p674 = pneg %p494
      $region90: #{bert_encoder_forward.1} parent=31 // pred_check_branch
        %676 = sbr.rel (%p674) target = $region92
      $region91: #{bert_encoder_forward.1} parent=31 // pred_region
        %p677 = scmp.lt.s32.totalorder %s26, 1
        %s678 = scalar_select %p677, %s26, 1
        %s679 = scalar_lea.vmem %s18, %s678
      $region92: #{bert_encoder_forward.1} parent=31 // pred_fallthru
        _
      // Predicated region
      $region93: #{bert_encoder_forward.1} parent=31 // pred_check
        %p680 = pneg %p520
      $region94: #{bert_encoder_forward.1} parent=31 // pred_check_branch
        %682 = sbr.rel (%p680) target = $region96
      $region95: #{bert_encoder_forward.1} parent=31 // pred_region
        %p683 = scmp.lt.s32.totalorder %s26, 1
        %s684 = scalar_select %p683, %s26, 1
        %s685 = scalar_lea.vmem %s19, %s684
      $region96: #{bert_encoder_forward.1} parent=31 // pred_fallthru
        _
    $region32: #{bert_encoder_forward.1} parent=5 // pred_fallthru
      _
    %p686 = scmp.le.s32.totalorder 1, %s26
    %p687 = scmp.lt.s32.totalorder %s26, 3
    %p688 = pnand %p686, %p687
    %p689 = pneg %p688
    // Predicated region
    $region97: #{bert_encoder_forward.1} parent=5 // pred_check
      _
    $region98: #{bert_encoder_forward.1} parent=5 // pred_check_branch
      %691 = sbr.rel (%p688) target = $region100
    $region99: #{bert_encoder_forward.1} parent=5 // pred_region
      %s692 = ssub.s32 %s26, 1
      %p693 = pneg %p47
      %p694 = pneg %p44
      %p695 = pneg %p68
      %p696 = pneg %p65
      %p697 = pneg %p89
      %p698 = pneg %p86
      %p699 = pneg %p110
      %p700 = pneg %p107
      %p701 = scmp.lt.s32.totalorder %s31, 1
      %s702 = scalar_select %p701, %s31, 1
      %s703 = smul.addr %s702, 4
      %s704 = smul.addr %s703, 4
      %s705 = scalar_lea.vmem %s4, %s704
      %p706 = pneg %p136
      %p707 = pneg %p133
      %p708 = scmp.lt.s32.totalorder %s31, 1
      %s709 = scalar_select %p708, %s31, 1
      %s710 = scalar_lea.vmem %s5, %s709
      %p711 = pneg %p162
      %p712 = pneg %p159
      %p713 = scmp.lt.s32.totalorder %s31, 1
      %s714 = scalar_select %p713, %s31, 1
      %s715 = smul.addr %s714, 4
      %s716 = smul.addr %s715, 4
      %s717 = scalar_lea.vmem %s6, %s716
      %p718 = pneg %p188
      %p719 = pneg %p185
      %p720 = scmp.lt.s32.totalorder %s31, 1
      %s721 = scalar_select %p720, %s31, 1
      %s722 = scalar_lea.vmem %s7, %s721
      %p723 = pneg %p214
      %p724 = pneg %p211
      %p725 = scmp.lt.s32.totalorder %s31, 1
      %s726 = scalar_select %p725, %s31, 1
      %s727 = smul.addr %s726, 4
      %s728 = smul.addr %s727, 4
      %s729 = scalar_lea.vmem %s8, %s728
      %p730 = pneg %p240
      %p731 = pneg %p237
      %p732 = scmp.lt.s32.totalorder %s31, 1
      %s733 = scalar_select %p732, %s31, 1
      %s734 = scalar_lea.vmem %s9, %s733
      %p735 = pneg %p266
      %p736 = pneg %p263
      %p737 = scmp.lt.s32.totalorder %s31, 1
      %s738 = scalar_select %p737, %s31, 1
      %s739 = smul.addr %s738, 4
      %s740 = smul.addr %s739, 4
      %s741 = scalar_lea.vmem %s10, %s740
      %p742 = pneg %p292
      %p743 = pneg %p289
      %p744 = scmp.lt.s32.totalorder %s31, 1
      %s745 = scalar_select %p744, %s31, 1
      %s746 = scalar_lea.vmem %s11, %s745
      %p747 = pneg %p318
      %p748 = pneg %p315
      %p749 = scmp.lt.s32.totalorder %s31, 1
      %s750 = scalar_select %p749, %s31, 1
      %s751 = scalar_lea.vmem %s12, %s750
      %p752 = pneg %p344
      %p753 = pneg %p341
      %p754 = scmp.lt.s32.totalorder %s31, 1
      %s755 = scalar_select %p754, %s31, 1
      %s756 = scalar_lea.vmem %s13, %s755
      %p757 = pneg %p370
      %p758 = pneg %p367
      %p759 = scmp.lt.s32.totalorder %s31, 1
      %s760 = scalar_select %p759, %s31, 1
      %s761 = smul.addr %s760, 4
      %s762 = smul.addr %s761, 4
      %s763 = scalar_lea.vmem %s14, %s762
      %p764 = pneg %p396
      %p765 = pneg %p393
      %p766 = scmp.lt.s32.totalorder %s31, 1
      %s767 = scalar_select %p766, %s31, 1
      %s768 = scalar_lea.vmem %s15, %s767
      %p769 = pneg %p422
      %p770 = pneg %p419
      %p771 = scmp.lt.s32.totalorder %s31, 1
      %s772 = scalar_select %p771, %s31, 1
      %s773 = smul.addr %s772, 8
      %s774 = smul.addr %s773, 4
      %s775 = scalar_lea.vmem %s16, %s774
      %p776 = pneg %p448
      %p777 = pneg %p445
      %p778 = scmp.lt.s32.totalorder %s31, 1
      %s779 = scalar_select %p778, %s31, 1
      %s780 = scalar_lea.vmem %s17, %s779
      %p781 = pneg %p474
      %p782 = pneg %p471
      %p783 = scmp.lt.s32.totalorder %s31, 1
      %s784 = scalar_select %p783, %s31, 1
      %s785 = scalar_lea.vmem %s18, %s784
      %p786 = pneg %p500
      %p787 = pneg %p497
      %p788 = scmp.lt.s32.totalorder %s31, 1
      %s789 = scalar_select %p788, %s31, 1
      %s790 = scalar_lea.vmem %s19, %s789
      %p791 = pneg %p526
      %p792 = pneg %p523
      %p793 = pneg %p547
      %p794 = pneg %p544
      %p795 = scmp.lt.s32.totalorder %s31, 1
      %s796 = scalar_select %p795, %s31, 1
      %s797 = smul.addr %s796, 4
      %s798 = smul.addr %s797, 4
      %s799 = scalar_lea.vmem %s4, %s798
      %p800 = scmp.lt.s32.totalorder %s31, 1
      %s801 = scalar_select %p800, %s31, 1
      %s802 = scalar_lea.vmem %s5, %s801
      %p803 = scmp.lt.s32.totalorder %s31, 1
      %s804 = scalar_select %p803, %s31, 1
      %s805 = smul.addr %s804, 4
      %s806 = smul.addr %s805, 4
      %s807 = scalar_lea.vmem %s6, %s806
      %p808 = scmp.lt.s32.totalorder %s31, 1
      %s809 = scalar_select %p808, %s31, 1
      %s810 = scalar_lea.vmem %s7, %s809
      %p811 = scmp.lt.s32.totalorder %s31, 1
      %s812 = scalar_select %p811, %s31, 1
      %s813 = smul.addr %s812, 4
      %s814 = smul.addr %s813, 4
      %s815 = scalar_lea.vmem %s8, %s814
      %p816 = scmp.lt.s32.totalorder %s31, 1
      %s817 = scalar_select %p816, %s31, 1
      %s818 = scalar_lea.vmem %s9, %s817
      %p819 = scmp.lt.s32.totalorder %s31, 1
      %s820 = scalar_select %p819, %s31, 1
      %s821 = smul.addr %s820, 4
      %s822 = smul.addr %s821, 4
      %s823 = scalar_lea.vmem %s10, %s822
      %p824 = scmp.lt.s32.totalorder %s31, 1
      %s825 = scalar_select %p824, %s31, 1
      %s826 = scalar_lea.vmem %s11, %s825
      %p827 = scmp.lt.s32.totalorder %s31, 1
      %s828 = scalar_select %p827, %s31, 1
      %s829 = scalar_lea.vmem %s12, %s828
      %p830 = scmp.lt.s32.totalorder %s31, 1
      %s831 = scalar_select %p830, %s31, 1
      %s832 = scalar_lea.vmem %s13, %s831
      %p833 = scmp.lt.s32.totalorder %s31, 1
      %s834 = scalar_select %p833, %s31, 1
      %s835 = smul.addr %s834, 4
      %s836 = smul.addr %s835, 4
      %s837 = scalar_lea.vmem %s14, %s836
      %p838 = scmp.lt.s32.totalorder %s31, 1
      %s839 = scalar_select %p838, %s31, 1
      %s840 = scalar_lea.vmem %s15, %s839
      %p841 = scmp.lt.s32.totalorder %s31, 1
      %s842 = scalar_select %p841, %s31, 1
      %s843 = smul.addr %s842, 8
      %s844 = smul.addr %s843, 4
      %s845 = scalar_lea.vmem %s16, %s844
      %p846 = scmp.lt.s32.totalorder %s31, 1
      %s847 = scalar_select %p846, %s31, 1
      %s848 = scalar_lea.vmem %s17, %s847
      %p849 = scmp.lt.s32.totalorder %s31, 1
      %s850 = scalar_select %p849, %s31, 1
      %s851 = scalar_lea.vmem %s18, %s850
      %p852 = scmp.lt.s32.totalorder %s31, 1
      %s853 = scalar_select %p852, %s31, 1
      %s854 = scalar_lea.vmem %s19, %s853
      %p856 = scmp.eq.s32.totalorder %s31, 0
      // Predicated region
      $region101: #{bert_encoder_forward.1} parent=99 // pred_check
        %p857 = pneg %p856
      $region102: #{bert_encoder_forward.1} parent=99 // pred_check_branch
        %859 = sbr.rel (%p857) target = $region104
      $region103: #{bert_encoder_forward.1} parent=99 // pred_region
        %v860 = vld [vmem:[%s0] sm:$0xff]
        %v861 = vld [vmem:[%s0 + $0x8] sm:$0xff]
        %v862 = vld [vmem:[%s2] sm:$0x1]
        %v863 = vld [vmem:[%s3] sm:$0x1]
        %vm864 = vcmask 261120
        %v865 = vsel %vm864, %v860, 0.0
        %866 = vadd.xlane.f32.xlu0 %v865
        %v867 = vpop.xlane.xlu0 %866
        %v868 = vsel %vm864, %v861, 0.0
        %869 = vadd.xlane.f32.xlu0 %v868
        %v870 = vpop.xlane.xlu0 %869
        %v871 = vrcp.pop 32.0
        %v872 = vmul.f32 %v867, %v871
        %v873 = vmul.f32 %v870, %v871
        %v874 = vsub.f32 %v860, %v872
        %v875 = vsub.f32 %v861, %v873
        %v876 = vmul.f32 %v874, %v874
        %v877 = vmul.f32 %v875, %v875
        %v878 = vsel %vm864, %v876, 0.0
        %879 = vadd.xlane.f32.xlu0 %v878
        %v880 = vpop.xlane.xlu0 %879
        %v881 = vsel %vm864, %v877, 0.0
        %882 = vadd.xlane.f32.xlu0 %v881
        %v883 = vpop.xlane.xlu0 %882
        %v884 = vmul.f32 %v880, %v871
        %v885 = vmul.f32 %v883, %v871
        %v886 = vadd.f32 %v884, 1e-12
        %v887 = vadd.f32 %v885, 1e-12
        %v888 = vrsqrt.pop %v886
        %v889 = vrsqrt.pop %v887
        %v890 = vmul.f32 %v874, %v888
        %v891 = vmul.f32 %v875, %v889
        %v893 = vlaneseq
        %v894 = vshrl.u32 %v893, 7
        %v895 = vsub.s32 0, %v894
        %v896 = vrot.slane %v862, %v895
        %v898 = vmul.f32 %v890, %v896
        %v899 = vmul.f32 %v891, %v896
        %v901 = vlaneseq
        %v902 = vshrl.u32 %v901, 7
        %v903 = vsub.s32 0, %v902
        %v904 = vrot.slane %v863, %v903
        %v906 = vadd.f32 %v898, %v904
        %v907 = vadd.f32 %v899, %v904
        %908 = vst.msk [vmem:[%s20] sm:$0xff] %vm864, %v906
        %909 = vst.msk [vmem:[%s20 + $0x8] sm:$0xff] %vm864, %v907
      $region104: #{bert_encoder_forward.1} parent=99 // pred_fallthru
        _
      %v910 = vld [vmem:[%s20] sm:$0xff]
      %v911 = vld [vmem:[%s20 + $0x8] sm:$0xff]
      %v912 = vpack.c.bf16 %v911, %v910
      %v913 = vld [vmem:[%s799] sm:$0xf]
      %v914 = vld [vmem:[%s799 + $0x4] sm:$0xf]
      %v915 = vld [vmem:[%s799 + $0x8] sm:$0xf]
      %v916 = vld [vmem:[%s799 + $0xc] sm:$0xf]
      %v917 = vld [vmem:[%s802] sm:$0x1]
      %v919 = vlaneseq
      %v920 = vshrl.u32 %v919, 7
      %v921 = vsub.s32 0, %v920
      %v922 = vrot.slane %v917, %v921
      %v928 = vunpack.c.l.b16 %v913
      %v929 = vunpack.c.l.b16 %v914
      %v930 = vunpack.c.l.b16 %v915
      %v931 = vunpack.c.l.b16 %v916
      %v932 = vpack.c.b16 %v929, %v928
      %v933 = vpack.c.b16 %v931, %v930
      %vm936 = vcmask 261120
      %v938 = vsel %vm936, %v912, 0
      %940 = vmatprep.subr.bf16.mxu0 0
      %941 = vmatpush1.bf16.msra.mxu0 %v932
      %942 = vmatprep.subr.bf16.mxu0 0
      %943 = vmatpush1.bf16.msra.mxu0 %v933
      %944 = vmatprep.subr.bf16.mxu0 0
      %945 = vmatpush1.bf16.msra.mxu0 0
      %946 = vmatprep.subr.bf16.mxu0 0
      %947 = vmatpush1.bf16.msra.mxu0 0
      %948 = vmatprep.subr.bf16.mxu0 0
      %949 = vmatpush1.bf16.msra.mxu0 0
      %950 = vmatprep.subr.bf16.mxu0 0
      %951 = vmatpush1.bf16.msra.mxu0 0
      %952 = vmatprep.subr.bf16.mxu0 0
      %953 = vmatpush1.bf16.msra.mxu0 0
      %954 = vmatprep.subr.bf16.mxu0 0
      %955 = vmatpush1.bf16.msra.mxu0 0
      %956 = vmatprep.subr.bf16.mxu0 0
      %957 = vmatpush1.bf16.msra.mxu0 0
      %958 = vmatprep.subr.bf16.mxu0 0
      %959 = vmatpush1.bf16.msra.mxu0 0
      %960 = vmatprep.subr.bf16.mxu0 0
      %961 = vmatpush1.bf16.msra.mxu0 0
      %962 = vmatprep.subr.bf16.mxu0 0
      %963 = vmatpush1.bf16.msra.mxu0 0
      %964 = vmatprep.subr.bf16.mxu0 0
      %965 = vmatpush1.bf16.msra.mxu0 0
      %966 = vmatprep.subr.bf16.mxu0 0
      %967 = vmatpush1.bf16.msra.mxu0 0
      %968 = vmatprep.subr.bf16.mxu0 0
      %969 = vmatpush1.bf16.msra.mxu0 0
      %970 = vmatprep.subr.bf16.mxu0 0
      %971 = vmatpush1.bf16.msra.mxu0 0
      %972 = vmatprep.mubr.bf16.mxu0 0
      %973 = vmatmul.mubr.bf16.gmra.mrb[0].mxu0 %v938
      %v974 = vpop.f32.mrb[0].mxu0
      %v975 = vadd.f32 %v922, %v974
      %v976 = vpop.f32.mrb[0].mxu0
      %v977 = vpop.f32.mrb[0].mxu0
      %v978 = vadd.f32 %v922, %v977
      %v979 = vpop.f32.mrb[0].mxu0
      %980 = vdwg.mxu0
      %v981 = vld [vmem:[%s807] sm:$0xf]
      %v982 = vld [vmem:[%s807 + $0x4] sm:$0xf]
      %v983 = vld [vmem:[%s807 + $0x8] sm:$0xf]
      %v984 = vld [vmem:[%s807 + $0xc] sm:$0xf]
      %v985 = vld [vmem:[%s810] sm:$0x1]
      %v987 = vlaneseq
      %v988 = vshrl.u32 %v987, 7
      %v989 = vsub.s32 0, %v988
      %v990 = vrot.slane %v985, %v989
      %v996 = vunpack.c.l.b16 %v981
      %v997 = vunpack.c.l.b16 %v982
      %v998 = vunpack.c.l.b16 %v983
      %v999 = vunpack.c.l.b16 %v984
      %v1000 = vpack.c.b16 %v997, %v996
      %v1001 = vpack.c.b16 %v999, %v998
      %1004 = vmatprep.subr.bf16.mxu0 0
      %1005 = vmatpush1.bf16.msra.mxu0 %v1000
      %1006 = vmatprep.subr.bf16.mxu0 0
      %1007 = vmatpush1.bf16.msra.mxu0 %v1001
      %1008 = vmatprep.subr.bf16.mxu0 0
      %1009 = vmatpush1.bf16.msra.mxu0 0
      %1010 = vmatprep.subr.bf16.mxu0 0
      %1011 = vmatpush1.bf16.msra.mxu0 0
      %1012 = vmatprep.subr.bf16.mxu0 0
      %1013 = vmatpush1.bf16.msra.mxu0 0
      %1014 = vmatprep.subr.bf16.mxu0 0
      %1015 = vmatpush1.bf16.msra.mxu0 0
      %1016 = vmatprep.subr.bf16.mxu0 0
      %1017 = vmatpush1.bf16.msra.mxu0 0
      %1018 = vmatprep.subr.bf16.mxu0 0
      %1019 = vmatpush1.bf16.msra.mxu0 0
      %1020 = vmatprep.subr.bf16.mxu0 0
      %1021 = vmatpush1.bf16.msra.mxu0 0
      %1022 = vmatprep.subr.bf16.mxu0 0
      %1023 = vmatpush1.bf16.msra.mxu0 0
      %1024 = vmatprep.subr.bf16.mxu0 0
      %1025 = vmatpush1.bf16.msra.mxu0 0
      %1026 = vmatprep.subr.bf16.mxu0 0
      %1027 = vmatpush1.bf16.msra.mxu0 0
      %1028 = vmatprep.subr.bf16.mxu0 0
      %1029 = vmatpush1.bf16.msra.mxu0 0
      %1030 = vmatprep.subr.bf16.mxu0 0
      %1031 = vmatpush1.bf16.msra.mxu0 0
      %1032 = vmatprep.subr.bf16.mxu0 0
      %1033 = vmatpush1.bf16.msra.mxu0 0
      %1034 = vmatprep.subr.bf16.mxu0 0
      %1035 = vmatpush1.bf16.msra.mxu0 0
      %1036 = vmatprep.mubr.bf16.mxu0 0
      %1037 = vmatmul.mubr.bf16.gmra.mrb[0].mxu0 %v938
      %v1038 = vpop.f32.mrb[0].mxu0
      %v1039 = vadd.f32 %v990, %v1038
      %v1040 = vpop.f32.mrb[0].mxu0
      %v1041 = vpop.f32.mrb[0].mxu0
      %v1042 = vadd.f32 %v990, %v1041
      %v1043 = vpop.f32.mrb[0].mxu0
      %1044 = vdwg.mxu0
      %v1045 = vld [vmem:[%s815] sm:$0xf]
      %v1046 = vld [vmem:[%s815 + $0x4] sm:$0xf]
      %v1047 = vld [vmem:[%s815 + $0x8] sm:$0xf]
      %v1048 = vld [vmem:[%s815 + $0xc] sm:$0xf]
      %v1049 = vld [vmem:[%s818] sm:$0x1]
      %v1051 = vlaneseq
      %v1052 = vshrl.u32 %v1051, 7
      %v1053 = vsub.s32 0, %v1052
      %v1054 = vrot.slane %v1049, %v1053
      %v1060 = vunpack.c.l.b16 %v1045
      %v1061 = vunpack.c.l.b16 %v1046
      %v1062 = vunpack.c.l.b16 %v1047
      %v1063 = vunpack.c.l.b16 %v1048
      %v1064 = vpack.c.b16 %v1061, %v1060
      %v1065 = vpack.c.b16 %v1063, %v1062
      %1068 = vmatprep.subr.bf16.mxu0 0
      %1069 = vmatpush1.bf16.msra.mxu0 %v1064
      %1070 = vmatprep.subr.bf16.mxu0 0
      %1071 = vmatpush1.bf16.msra.mxu0 %v1065
      %1072 = vmatprep.subr.bf16.mxu0 0
      %1073 = vmatpush1.bf16.msra.mxu0 0
      %1074 = vmatprep.subr.bf16.mxu0 0
      %1075 = vmatpush1.bf16.msra.mxu0 0
      %1076 = vmatprep.subr.bf16.mxu0 0
      %1077 = vmatpush1.bf16.msra.mxu0 0
      %1078 = vmatprep.subr.bf16.mxu0 0
      %1079 = vmatpush1.bf16.msra.mxu0 0
      %1080 = vmatprep.subr.bf16.mxu0 0
      %1081 = vmatpush1.bf16.msra.mxu0 0
      %1082 = vmatprep.subr.bf16.mxu0 0
      %1083 = vmatpush1.bf16.msra.mxu0 0
      %1084 = vmatprep.subr.bf16.mxu0 0
      %1085 = vmatpush1.bf16.msra.mxu0 0
      %1086 = vmatprep.subr.bf16.mxu0 0
      %1087 = vmatpush1.bf16.msra.mxu0 0
      %1088 = vmatprep.subr.bf16.mxu0 0
      %1089 = vmatpush1.bf16.msra.mxu0 0
      %1090 = vmatprep.subr.bf16.mxu0 0
      %1091 = vmatpush1.bf16.msra.mxu0 0
      %1092 = vmatprep.subr.bf16.mxu0 0
      %1093 = vmatpush1.bf16.msra.mxu0 0
      %1094 = vmatprep.subr.bf16.mxu0 0
      %1095 = vmatpush1.bf16.msra.mxu0 0
      %1096 = vmatprep.subr.bf16.mxu0 0
      %1097 = vmatpush1.bf16.msra.mxu0 0
      %1098 = vmatprep.subr.bf16.mxu0 0
      %1099 = vmatpush1.bf16.msra.mxu0 0
      %1100 = vmatprep.mubr.bf16.mxu0 0
      %1101 = vmatmul.mubr.bf16.gmra.mrb[0].mxu0 %v938
      %v1102 = vpop.f32.mrb[0].mxu0
      %v1103 = vadd.f32 %v1054, %v1102
      %v1104 = vpop.f32.mrb[0].mxu0
      %v1105 = vpop.f32.mrb[0].mxu0
      %v1106 = vadd.f32 %v1054, %v1105
      %v1107 = vpop.f32.mrb[0].mxu0
      %1108 = vdwg.mxu0
      %v1109 = vld [vmem:[%s1] sm:$0x1]
      %v1110 = vld [vmem:[%s1 + $0x1] sm:$0x1]
      %v1111 = vpack.c.bf16 %v975, %v975
      %v1112 = vpack.c.bf16 %v978, %v978
      %v1113 = vpack.c.bf16 %v1039, %v1039
      %v1114 = vpack.c.bf16 %v1042, %v1042
      %v1115 = vpack.c.bf16 %v1103, %v1103
      %v1116 = vpack.c.bf16 %v1106, %v1106
      %v1119 = vlaneseq
      %v1120 = vshrl.u32 %v1119, 7
      %v1121 = vsub.s32 0, %v1120
      %v1122 = vrot.slane %v1109, %v1121
      %v1123 = vlaneseq
      %v1124 = vshrl.u32 %v1123, 7
      %v1125 = vsub.s32 0, %v1124
      %v1126 = vrot.slane %v1110, %v1125
      %vm1129 = vcmask 64512
      %v1131 = vsel %vm1129, %v1111, 0
      %v1134 = vsel %vm1129, %v1113, 0
      %1136 = vmatprep.subr.bf16.mxu0 0
      %1137 = vmatpush1.bf16.xpose.msra.mxu0 %v1134
      %1138 = vmatprep.subr.bf16.mxu0 0
      %1139 = vmatpush1.bf16.xpose.msra.mxu0 0
      %1140 = vmatprep.subr.bf16.mxu0 0
      %1141 = vmatpush1.bf16.xpose.msra.mxu0 0
      %1142 = vmatprep.subr.bf16.mxu0 0
      %1143 = vmatpush1.bf16.xpose.msra.mxu0 0
      %1144 = vmatprep.subr.bf16.mxu0 0
      %1145 = vmatpush1.bf16.xpose.msra.mxu0 0
      %1146 = vmatprep.subr.bf16.mxu0 0
      %1147 = vmatpush1.bf16.xpose.msra.mxu0 0
      %1148 = vmatprep.subr.bf16.mxu0 0
      %1149 = vmatpush1.bf16.xpose.msra.mxu0 0
      %1150 = vmatprep.subr.bf16.mxu0 0
      %1151 = vmatpush1.bf16.xpose.msra.mxu0 0
      %1152 = vmatprep.subr.bf16.mxu0 0
      %1153 = vmatpush1.bf16.xpose.msra.mxu0 0
      %1154 = vmatprep.subr.bf16.mxu0 0
      %1155 = vmatpush1.bf16.xpose.msra.mxu0 0
      %1156 = vmatprep.subr.bf16.mxu0 0
      %1157 = vmatpush1.bf16.xpose.msra.mxu0 0
      %1158 = vmatprep.subr.bf16.mxu0 0
      %1159 = vmatpush1.bf16.xpose.msra.mxu0 0
      %1160 = vmatprep.subr.bf16.mxu0 0
      %1161 = vmatpush1.bf16.xpose.msra.mxu0 0
      %1162 = vmatprep.subr.bf16.mxu0 0
      %1163 = vmatpush1.bf16.xpose.msra.mxu0 0
      %1164 = vmatprep.subr.bf16.mxu0 0
      %1165 = vmatpush1.bf16.xpose.msra.mxu0 0
      %1166 = vmatprep.subr.bf16.mxu0 0
      %1167 = vmatpush1.bf16.xpose.msra.mxu0 0
      %1168 = vmatprep.mubr.bf16.mxu0 0
      %1169 = vmatmul.mubr.bf16.gmra.mrb[0].mxu0 %v1131
      %v1170 = vpop.f32.mrb[0].mxu0
      %v1171 = vadd.f32 %v1122, %v1170
      %v1172 = vpop.f32.mrb[0].mxu0
      %v1173 = vpop.f32.mrb[0].mxu0
      %v1174 = vpop.f32.mrb[0].mxu0
      %1175 = vdwg.mxu0
      %v1177 = vsel %vm1129, %v1112, 0
      %v1180 = vsel %vm1129, %v1114, 0
      %1182 = vmatprep.subr.bf16.mxu0 0
      %1183 = vmatpush1.bf16.xpose.msra.mxu0 %v1180
      %1184 = vmatprep.subr.bf16.mxu0 0
      %1185 = vmatpush1.bf16.xpose.msra.mxu0 0
      %1186 = vmatprep.subr.bf16.mxu0 0
      %1187 = vmatpush1.bf16.xpose.msra.mxu0 0
      %1188 = vmatprep.subr.bf16.mxu0 0
      %1189 = vmatpush1.bf16.xpose.msra.mxu0 0
      %1190 = vmatprep.subr.bf16.mxu0 0
      %1191 = vmatpush1.bf16.xpose.msra.mxu0 0
      %1192 = vmatprep.subr.bf16.mxu0 0
      %1193 = vmatpush1.bf16.xpose.msra.mxu0 0
      %1194 = vmatprep.subr.bf16.mxu0 0
      %1195 = vmatpush1.bf16.xpose.msra.mxu0 0
      %1196 = vmatprep.subr.bf16.mxu0 0
      %1197 = vmatpush1.bf16.xpose.msra.mxu0 0
      %1198 = vmatprep.subr.bf16.mxu0 0
      %1199 = vmatpush1.bf16.xpose.msra.mxu0 0
      %1200 = vmatprep.subr.bf16.mxu0 0
      %1201 = vmatpush1.bf16.xpose.msra.mxu0 0
      %1202 = vmatprep.subr.bf16.mxu0 0
      %1203 = vmatpush1.bf16.xpose.msra.mxu0 0
      %1204 = vmatprep.subr.bf16.mxu0 0
      %1205 = vmatpush1.bf16.xpose.msra.mxu0 0
      %1206 = vmatprep.subr.bf16.mxu0 0
      %1207 = vmatpush1.bf16.xpose.msra.mxu0 0
      %1208 = vmatprep.subr.bf16.mxu0 0
      %1209 = vmatpush1.bf16.xpose.msra.mxu0 0
      %1210 = vmatprep.subr.bf16.mxu0 0
      %1211 = vmatpush1.bf16.xpose.msra.mxu0 0
      %1212 = vmatprep.subr.bf16.mxu0 0
      %1213 = vmatpush1.bf16.xpose.msra.mxu0 0
      %1214 = vmatprep.mubr.bf16.mxu0 0
      %1215 = vmatmul.mubr.bf16.gmra.mrb[0].mxu0 %v1177
      %v1216 = vpop.f32.mrb[0].mxu0
      %v1217 = vadd.f32 %v1126, %v1216
      %v1218 = vpop.f32.mrb[0].mxu0
      %v1219 = vpop.f32.mrb[0].mxu0
      %v1220 = vpop.f32.mrb[0].mxu0
      %1221 = vdwg.mxu0
      %v1222 = vsel %vm1129, %v1171, -inf
      %1223 = vmax.xlane.f32.xlu0 %v1222
      %v1224 = vpop.xlane.xlu0 %1223
      %v1225 = vsel %vm1129, %v1217, -inf
      %1226 = vmax.xlane.f32.xlu0 %v1225
      %v1227 = vpop.xlane.xlu0 %1226
      %v1228 = vsub.f32 %v1171, %v1224
      %v1229 = vsub.f32 %v1217, %v1227
      %v1230 = vmul.f32 %v1228, 1.442695
      %v1231 = vpow.pop %v1230
      %v1232 = vmul.f32 %v1229, 1.442695
      %v1233 = vpow.pop %v1232
      %v1234 = vsel %vm1129, %v1231, 0.0
      %1235 = vadd.xlane.f32.xlu0 %v1234
      %v1236 = vpop.xlane.xlu0 %1235
      %v1237 = vsel %vm1129, %v1233, 0.0
      %1238 = vadd.xlane.f32.xlu0 %v1237
      %v1239 = vpop.xlane.xlu0 %1238
      %v1240 = vrcp.pop %v1236
      %v1241 = vrcp.pop %v1239
      %v1242 = vmul.f32 %v1231, %v1240
      %v1243 = vmul.f32 %v1233, %v1241
      %v1244 = vpack.c.bf16 %v1242, %v1242
      %v1245 = vpack.c.bf16 %v1243, %v1243
      %v1247 = vsel %vm1129, %v1244, 0
      %vm1249 = vcmask 1043456
      %v1251 = vsel %vm1249, %v1115, 0
      %1253 = vmatprep.subr.bf16.mxu0 0
      %1254 = vmatpush1.bf16.msra.mxu0 %v1251
      %1255 = vmatprep.subr.bf16.mxu0 0
      %1256 = vmatpush1.bf16.msra.mxu0 0
      %1257 = vmatprep.subr.bf16.mxu0 0
      %1258 = vmatpush1.bf16.msra.mxu0 0
      %1259 = vmatprep.subr.bf16.mxu0 0
      %1260 = vmatpush1.bf16.msra.mxu0 0
      %1261 = vmatprep.subr.bf16.mxu0 0
      %1262 = vmatpush1.bf16.msra.mxu0 0
      %1263 = vmatprep.subr.bf16.mxu0 0
      %1264 = vmatpush1.bf16.msra.mxu0 0
      %1265 = vmatprep.subr.bf16.mxu0 0
      %1266 = vmatpush1.bf16.msra.mxu0 0
      %1267 = vmatprep.subr.bf16.mxu0 0
      %1268 = vmatpush1.bf16.msra.mxu0 0
      %1269 = vmatprep.subr.bf16.mxu0 0
      %1270 = vmatpush1.bf16.msra.mxu0 0
      %1271 = vmatprep.subr.bf16.mxu0 0
      %1272 = vmatpush1.bf16.msra.mxu0 0
      %1273 = vmatprep.subr.bf16.mxu0 0
      %1274 = vmatpush1.bf16.msra.mxu0 0
      %1275 = vmatprep.subr.bf16.mxu0 0
      %1276 = vmatpush1.bf16.msra.mxu0 0
      %1277 = vmatprep.subr.bf16.mxu0 0
      %1278 = vmatpush1.bf16.msra.mxu0 0
      %1279 = vmatprep.subr.bf16.mxu0 0
      %1280 = vmatpush1.bf16.msra.mxu0 0
      %1281 = vmatprep.subr.bf16.mxu0 0
      %1282 = vmatpush1.bf16.msra.mxu0 0
      %1283 = vmatprep.subr.bf16.mxu0 0
      %1284 = vmatpush1.bf16.msra.mxu0 0
      %1285 = vmatprep.mubr.bf16.mxu0 0
      %1286 = vmatmul.mubr.bf16.gmra.mrb[0].mxu0 %v1247
      %v1287 = vpop.f32.mrb[0].mxu0
      %v1288 = vadd.f32 0.0, %v1287
      %v1289 = vpop.f32.mrb[0].mxu0
      %v1290 = vpop.f32.mrb[0].mxu0
      %v1291 = vpop.f32.mrb[0].mxu0
      %1292 = vdwg.mxu0
      %v1294 = vsel %vm1129, %v1245, 0
      %v1297 = vsel %vm1249, %v1116, 0
      %1299 = vmatprep.subr.bf16.mxu0 0
      %1300 = vmatpush1.bf16.msra.mxu0 %v1297
      %1301 = vmatprep.subr.bf16.mxu0 0
      %1302 = vmatpush1.bf16.msra.mxu0 0
      %1303 = vmatprep.subr.bf16.mxu0 0
      %1304 = vmatpush1.bf16.msra.mxu0 0
      %1305 = vmatprep.subr.bf16.mxu0 0
      %1306 = vmatpush1.bf16.msra.mxu0 0
      %1307 = vmatprep.subr.bf16.mxu0 0
      %1308 = vmatpush1.bf16.msra.mxu0 0
      %1309 = vmatprep.subr.bf16.mxu0 0
      %1310 = vmatpush1.bf16.msra.mxu0 0
      %1311 = vmatprep.subr.bf16.mxu0 0
      %1312 = vmatpush1.bf16.msra.mxu0 0
      %1313 = vmatprep.subr.bf16.mxu0 0
      %1314 = vmatpush1.bf16.msra.mxu0 0
      %1315 = vmatprep.subr.bf16.mxu0 0
      %1316 = vmatpush1.bf16.msra.mxu0 0
      %1317 = vmatprep.subr.bf16.mxu0 0
      %1318 = vmatpush1.bf16.msra.mxu0 0
      %1319 = vmatprep.subr.bf16.mxu0 0
      %1320 = vmatpush1.bf16.msra.mxu0 0
      %1321 = vmatprep.subr.bf16.mxu0 0
      %1322 = vmatpush1.bf16.msra.mxu0 0
      %1323 = vmatprep.subr.bf16.mxu0 0
      %1324 = vmatpush1.bf16.msra.mxu0 0
      %1325 = vmatprep.subr.bf16.mxu0 0
      %1326 = vmatpush1.bf16.msra.mxu0 0
      %1327 = vmatprep.subr.bf16.mxu0 0
      %1328 = vmatpush1.bf16.msra.mxu0 0
      %1329 = vmatprep.subr.bf16.mxu0 0
      %1330 = vmatpush1.bf16.msra.mxu0 0
      %1331 = vmatprep.mubr.bf16.mxu0 0
      %1332 = vmatmul.mubr.bf16.gmra.mrb[0].mxu0 %v1294
      %v1333 = vpop.f32.mrb[0].mxu0
      %v1334 = vadd.f32 0.0, %v1333
      %v1335 = vpop.f32.mrb[0].mxu0
      %v1336 = vpop.f32.mrb[0].mxu0
      %v1337 = vpop.f32.mrb[0].mxu0
      %1338 = vdwg.mxu0
      %v1339 = vpack.c.bf16 %v1334, %v1288
      %v1340 = vld [vmem:[%s823] sm:$0xf]
      %1342 = vrot.lane.b32.xlu0 %v1111, 120
      %v1343 = vpop.permute.xlu0 %1342
      %1345 = vrot.lane.b32.xlu0 %v1113, 120
      %v1346 = vpop.permute.xlu0 %1345
      %v1348 = vsel %vm1129, %v1343, 0
      %v1351 = vsel %vm1129, %v1346, 0
      %1353 = vmatprep.subr.bf16.mxu0 0
      %1354 = vmatpush1.bf16.xpose.msra.mxu0 %v1351
      %1355 = vmatprep.subr.bf16.mxu0 0
      %1356 = vmatpush1.bf16.xpose.msra.mxu0 0
      %1357 = vmatprep.subr.bf16.mxu0 0
      %1358 = vmatpush1.bf16.xpose.msra.mxu0 0
      %1359 = vmatprep.subr.bf16.mxu0 0
      %1360 = vmatpush1.bf16.xpose.msra.mxu0 0
      %1361 = vmatprep.subr.bf16.mxu0 0
      %1362 = vmatpush1.bf16.xpose.msra.mxu0 0
      %1363 = vmatprep.subr.bf16.mxu0 0
      %1364 = vmatpush1.bf16.xpose.msra.mxu0 0
      %1365 = vmatprep.subr.bf16.mxu0 0
      %1366 = vmatpush1.bf16.xpose.msra.mxu0 0
      %1367 = vmatprep.subr.bf16.mxu0 0
      %1368 = vmatpush1.bf16.xpose.msra.mxu0 0
      %1369 = vmatprep.subr.bf16.mxu0 0
      %1370 = vmatpush1.bf16.xpose.msra.mxu0 0
      %1371 = vmatprep.subr.bf16.mxu0 0
      %1372 = vmatpush1.bf16.xpose.msra.mxu0 0
      %1373 = vmatprep.subr.bf16.mxu0 0
      %1374 = vmatpush1.bf16.xpose.msra.mxu0 0
      %1375 = vmatprep.subr.bf16.mxu0 0
      %1376 = vmatpush1.bf16.xpose.msra.mxu0 0
      %1377 = vmatprep.subr.bf16.mxu0 0
      %1378 = vmatpush1.bf16.xpose.msra.mxu0 0
      %1379 = vmatprep.subr.bf16.mxu0 0
      %1380 = vmatpush1.bf16.xpose.msra.mxu0 0
      %1381 = vmatprep.subr.bf16.mxu0 0
      %1382 = vmatpush1.bf16.xpose.msra.mxu0 0
      %1383 = vmatprep.subr.bf16.mxu0 0
      %1384 = vmatpush1.bf16.xpose.msra.mxu0 0
      %1385 = vmatprep.mubr.bf16.mxu0 0
      %1386 = vmatmul.mubr.bf16.gmra.mrb[0].mxu0 %v1348
      %v1387 = vpop.f32.mrb[0].mxu0
      %v1388 = vadd.f32 %v1122, %v1387
      %v1389 = vpop.f32.mrb[0].mxu0
      %v1390 = vpop.f32.mrb[0].mxu0
      %v1391 = vpop.f32.mrb[0].mxu0
      %1392 = vdwg.mxu0
      %1394 = vrot.lane.b32.xlu0 %v1112, 120
      %v1395 = vpop.permute.xlu0 %1394
      %1397 = vrot.lane.b32.xlu0 %v1114, 120
      %v1398 = vpop.permute.xlu0 %1397
      %v1400 = vsel %vm1129, %v1395, 0
      %v1403 = vsel %vm1129, %v1398, 0
      %1405 = vmatprep.subr.bf16.mxu0 0
      %1406 = vmatpush1.bf16.xpose.msra.mxu0 %v1403
      %1407 = vmatprep.subr.bf16.mxu0 0
      %1408 = vmatpush1.bf16.xpose.msra.mxu0 0
      %1409 = vmatprep.subr.bf16.mxu0 0
      %1410 = vmatpush1.bf16.xpose.msra.mxu0 0
      %1411 = vmatprep.subr.bf16.mxu0 0
      %1412 = vmatpush1.bf16.xpose.msra.mxu0 0
      %1413 = vmatprep.subr.bf16.mxu0 0
      %1414 = vmatpush1.bf16.xpose.msra.mxu0 0
      %1415 = vmatprep.subr.bf16.mxu0 0
      %1416 = vmatpush1.bf16.xpose.msra.mxu0 0
      %1417 = vmatprep.subr.bf16.mxu0 0
      %1418 = vmatpush1.bf16.xpose.msra.mxu0 0
      %1419 = vmatprep.subr.bf16.mxu0 0
      %1420 = vmatpush1.bf16.xpose.msra.mxu0 0
      %1421 = vmatprep.subr.bf16.mxu0 0
      %1422 = vmatpush1.bf16.xpose.msra.mxu0 0
      %1423 = vmatprep.subr.bf16.mxu0 0
      %1424 = vmatpush1.bf16.xpose.msra.mxu0 0
      %1425 = vmatprep.subr.bf16.mxu0 0
      %1426 = vmatpush1.bf16.xpose.msra.mxu0 0
      %1427 = vmatprep.subr.bf16.mxu0 0
      %1428 = vmatpush1.bf16.xpose.msra.mxu0 0
      %1429 = vmatprep.subr.bf16.mxu0 0
      %1430 = vmatpush1.bf16.xpose.msra.mxu0 0
      %1431 = vmatprep.subr.bf16.mxu0 0
      %1432 = vmatpush1.bf16.xpose.msra.mxu0 0
      %1433 = vmatprep.subr.bf16.mxu0 0
      %1434 = vmatpush1.bf16.xpose.msra.mxu0 0
      %1435 = vmatprep.subr.bf16.mxu0 0
      %1436 = vmatpush1.bf16.xpose.msra.mxu0 0
      %1437 = vmatprep.mubr.bf16.mxu0 0
      %1438 = vmatmul.mubr.bf16.gmra.mrb[0].mxu0 %v1400
      %v1439 = vpop.f32.mrb[0].mxu0
      %v1440 = vadd.f32 %v1126, %v1439
      %v1441 = vpop.f32.mrb[0].mxu0
      %v1442 = vpop.f32.mrb[0].mxu0
      %v1443 = vpop.f32.mrb[0].mxu0
      %1444 = vdwg.mxu0
      %v1445 = vsel %vm1129, %v1388, -inf
      %1446 = vmax.xlane.f32.xlu0 %v1445
      %v1447 = vpop.xlane.xlu0 %1446
      %v1448 = vsel %vm1129, %v1440, -inf
      %1449 = vmax.xlane.f32.xlu0 %v1448
      %v1450 = vpop.xlane.xlu0 %1449
      %v1451 = vsub.f32 %v1388, %v1447
      %v1452 = vsub.f32 %v1440, %v1450
      %v1453 = vmul.f32 %v1451, 1.442695
      %v1454 = vpow.pop %v1453
      %v1455 = vmul.f32 %v1452, 1.442695
      %v1456 = vpow.pop %v1455
      %v1457 = vsel %vm1129, %v1454, 0.0
      %1458 = vadd.xlane.f32.xlu0 %v1457
      %v1459 = vpop.xlane.xlu0 %1458
      %v1460 = vsel %vm1129, %v1456, 0.0
      %1461 = vadd.xlane.f32.xlu0 %v1460
      %v1462 = vpop.xlane.xlu0 %1461
      %v1463 = vrcp.pop %v1459
      %v1464 = vrcp.pop %v1462
      %v1465 = vmul.f32 %v1454, %v1463
      %v1466 = vmul.f32 %v1456, %v1464
      %v1467 = vpack.c.bf16 %v1465, %v1465
      %v1468 = vpack.c.bf16 %v1466, %v1466
      %1470 = vrot.lane.b32.xlu0 %v1115, 120
      %v1471 = vpop.permute.xlu0 %1470
      %v1473 = vsel %vm1129, %v1467, 0
      %v1476 = vsel %vm1249, %v1471, 0
      %1478 = vmatprep.subr.bf16.mxu0 0
      %1479 = vmatpush1.bf16.msra.mxu0 %v1476
      %1480 = vmatprep.subr.bf16.mxu0 0
      %1481 = vmatpush1.bf16.msra.mxu0 0
      %1482 = vmatprep.subr.bf16.mxu0 0
      %1483 = vmatpush1.bf16.msra.mxu0 0
      %1484 = vmatprep.subr.bf16.mxu0 0
      %1485 = vmatpush1.bf16.msra.mxu0 0
      %1486 = vmatprep.subr.bf16.mxu0 0
      %1487 = vmatpush1.bf16.msra.mxu0 0
      %1488 = vmatprep.subr.bf16.mxu0 0
      %1489 = vmatpush1.bf16.msra.mxu0 0
      %1490 = vmatprep.subr.bf16.mxu0 0
      %1491 = vmatpush1.bf16.msra.mxu0 0
      %1492 = vmatprep.subr.bf16.mxu0 0
      %1493 = vmatpush1.bf16.msra.mxu0 0
      %1494 = vmatprep.subr.bf16.mxu0 0
      %1495 = vmatpush1.bf16.msra.mxu0 0
      %1496 = vmatprep.subr.bf16.mxu0 0
      %1497 = vmatpush1.bf16.msra.mxu0 0
      %1498 = vmatprep.subr.bf16.mxu0 0
      %1499 = vmatpush1.bf16.msra.mxu0 0
      %1500 = vmatprep.subr.bf16.mxu0 0
      %1501 = vmatpush1.bf16.msra.mxu0 0
      %1502 = vmatprep.subr.bf16.mxu0 0
      %1503 = vmatpush1.bf16.msra.mxu0 0
      %1504 = vmatprep.subr.bf16.mxu0 0
      %1505 = vmatpush1.bf16.msra.mxu0 0
      %1506 = vmatprep.subr.bf16.mxu0 0
      %1507 = vmatpush1.bf16.msra.mxu0 0
      %1508 = vmatprep.subr.bf16.mxu0 0
      %1509 = vmatpush1.bf16.msra.mxu0 0
      %1510 = vmatprep.mubr.bf16.mxu0 0
      %1511 = vmatmul.mubr.bf16.gmra.mrb[0].mxu0 %v1473
      %v1512 = vpop.f32.mrb[0].mxu0
      %v1513 = vadd.f32 0.0, %v1512
      %v1514 = vpop.f32.mrb[0].mxu0
      %v1515 = vpop.f32.mrb[0].mxu0
      %v1516 = vpop.f32.mrb[0].mxu0
      %1517 = vdwg.mxu0
      %1519 = vrot.lane.b32.xlu0 %v1116, 120
      %v1520 = vpop.permute.xlu0 %1519
      %v1522 = vsel %vm1129, %v1468, 0
      %v1525 = vsel %vm1249, %v1520, 0
      %1527 = vmatprep.subr.bf16.mxu0 0
      %1528 = vmatpush1.bf16.msra.mxu0 %v1525
      %1529 = vmatprep.subr.bf16.mxu0 0
      %1530 = vmatpush1.bf16.msra.mxu0 0
      %1531 = vmatprep.subr.bf16.mxu0 0
      %1532 = vmatpush1.bf16.msra.mxu0 0
      %1533 = vmatprep.subr.bf16.mxu0 0
      %1534 = vmatpush1.bf16.msra.mxu0 0
      %1535 = vmatprep.subr.bf16.mxu0 0
      %1536 = vmatpush1.bf16.msra.mxu0 0
      %1537 = vmatprep.subr.bf16.mxu0 0
      %1538 = vmatpush1.bf16.msra.mxu0 0
      %1539 = vmatprep.subr.bf16.mxu0 0
      %1540 = vmatpush1.bf16.msra.mxu0 0
      %1541 = vmatprep.subr.bf16.mxu0 0
      %1542 = vmatpush1.bf16.msra.mxu0 0
      %1543 = vmatprep.subr.bf16.mxu0 0
      %1544 = vmatpush1.bf16.msra.mxu0 0
      %1545 = vmatprep.subr.bf16.mxu0 0
      %1546 = vmatpush1.bf16.msra.mxu0 0
      %1547 = vmatprep.subr.bf16.mxu0 0
      %1548 = vmatpush1.bf16.msra.mxu0 0
      %1549 = vmatprep.subr.bf16.mxu0 0
      %1550 = vmatpush1.bf16.msra.mxu0 0
      %1551 = vmatprep.subr.bf16.mxu0 0
      %1552 = vmatpush1.bf16.msra.mxu0 0
      %1553 = vmatprep.subr.bf16.mxu0 0
      %1554 = vmatpush1.bf16.msra.mxu0 0
      %1555 = vmatprep.subr.bf16.mxu0 0
      %1556 = vmatpush1.bf16.msra.mxu0 0
      %1557 = vmatprep.subr.bf16.mxu0 0
      %1558 = vmatpush1.bf16.msra.mxu0 0
      %1559 = vmatprep.mubr.bf16.mxu0 0
      %1560 = vmatmul.mubr.bf16.gmra.mrb[0].mxu0 %v1522
      %v1561 = vpop.f32.mrb[0].mxu0
      %v1562 = vadd.f32 0.0, %v1561
      %v1563 = vpop.f32.mrb[0].mxu0
      %v1564 = vpop.f32.mrb[0].mxu0
      %v1565 = vpop.f32.mrb[0].mxu0
      %1566 = vdwg.mxu0
      %v1567 = vpack.c.bf16 %v1562, %v1513
      %s1568 = scalar_lea.vmem %s823, 4
      %v1569 = vld [vmem:[%s1568] sm:$0xf]
      %v1571 = vsel %vm1129, %v1567, 0
      %v1574 = vsel %vm1249, %v1569, 0
      %1576 = vmatprep.subr.bf16.mxu0 0
      %1577 = vmatpush1.bf16.msra.mxu0 %v1574
      %1578 = vmatprep.subr.bf16.mxu0 0
      %1579 = vmatpush1.bf16.msra.mxu0 0
      %1580 = vmatprep.subr.bf16.mxu0 0
      %1581 = vmatpush1.bf16.msra.mxu0 0
      %1582 = vmatprep.subr.bf16.mxu0 0
      %1583 = vmatpush1.bf16.msra.mxu0 0
      %1584 = vmatprep.subr.bf16.mxu0 0
      %1585 = vmatpush1.bf16.msra.mxu0 0
      %1586 = vmatprep.subr.bf16.mxu0 0
      %1587 = vmatpush1.bf16.msra.mxu0 0
      %1588 = vmatprep.subr.bf16.mxu0 0
      %1589 = vmatpush1.bf16.msra.mxu0 0
      %1590 = vmatprep.subr.bf16.mxu0 0
      %1591 = vmatpush1.bf16.msra.mxu0 0
      %1592 = vmatprep.subr.bf16.mxu0 0
      %1593 = vmatpush1.bf16.msra.mxu0 0
      %1594 = vmatprep.subr.bf16.mxu0 0
      %1595 = vmatpush1.bf16.msra.mxu0 0
      %1596 = vmatprep.subr.bf16.mxu0 0
      %1597 = vmatpush1.bf16.msra.mxu0 0
      %1598 = vmatprep.subr.bf16.mxu0 0
      %1599 = vmatpush1.bf16.msra.mxu0 0
      %1600 = vmatprep.subr.bf16.mxu0 0
      %1601 = vmatpush1.bf16.msra.mxu0 0
      %1602 = vmatprep.subr.bf16.mxu0 0
      %1603 = vmatpush1.bf16.msra.mxu0 0
      %1604 = vmatprep.subr.bf16.mxu0 0
      %1605 = vmatpush1.bf16.msra.mxu0 0
      %1606 = vmatprep.subr.bf16.mxu0 0
      %1607 = vmatpush1.bf16.msra.mxu0 0
      %1608 = vmatprep.mubr.bf16.mxu0 0
      %1609 = vmatmul.mubr.bf16.gmra.mrb[0].mxu0 %v1571
      %v1610 = vpop.f32.mrb[0].mxu0
      %v1611 = vadd.f32 0.0, %v1610
      %v1612 = vpop.f32.mrb[0].mxu0
      %v1613 = vpop.f32.mrb[0].mxu0
      %v1614 = vadd.f32 0.0, %v1613
      %v1615 = vpop.f32.mrb[0].mxu0
      %1616 = vdwg.mxu0
      %v1618 = vsel %vm1129, %v1339, 0
      %v1621 = vsel %vm1249, %v1340, 0
      %1623 = vmatprep.subr.bf16.mxu0 0
      %1624 = vmatpush1.bf16.msra.mxu0 %v1621
      %1625 = vmatprep.subr.bf16.mxu0 0
      %1626 = vmatpush1.bf16.msra.mxu0 0
      %1627 = vmatprep.subr.bf16.mxu0 0
      %1628 = vmatpush1.bf16.msra.mxu0 0
      %1629 = vmatprep.subr.bf16.mxu0 0
      %1630 = vmatpush1.bf16.msra.mxu0 0
      %1631 = vmatprep.subr.bf16.mxu0 0
      %1632 = vmatpush1.bf16.msra.mxu0 0
      %1633 = vmatprep.subr.bf16.mxu0 0
      %1634 = vmatpush1.bf16.msra.mxu0 0
      %1635 = vmatprep.subr.bf16.mxu0 0
      %1636 = vmatpush1.bf16.msra.mxu0 0
      %1637 = vmatprep.subr.bf16.mxu0 0
      %1638 = vmatpush1.bf16.msra.mxu0 0
      %1639 = vmatprep.subr.bf16.mxu0 0
      %1640 = vmatpush1.bf16.msra.mxu0 0
      %1641 = vmatprep.subr.bf16.mxu0 0
      %1642 = vmatpush1.bf16.msra.mxu0 0
      %1643 = vmatprep.subr.bf16.mxu0 0
      %1644 = vmatpush1.bf16.msra.mxu0 0
      %1645 = vmatprep.subr.bf16.mxu0 0
      %1646 = vmatpush1.bf16.msra.mxu0 0
      %1647 = vmatprep.subr.bf16.mxu0 0
      %1648 = vmatpush1.bf16.msra.mxu0 0
      %1649 = vmatprep.subr.bf16.mxu0 0
      %1650 = vmatpush1.bf16.msra.mxu0 0
      %1651 = vmatprep.subr.bf16.mxu0 0
      %1652 = vmatpush1.bf16.msra.mxu0 0
      %1653 = vmatprep.subr.bf16.mxu0 0
      %1654 = vmatpush1.bf16.msra.mxu0 0
      %1655 = vmatprep.mubr.bf16.mxu0 0
      %1656 = vmatmul.mubr.bf16.gmra.mrb[0].mxu0 %v1618
      %v1657 = vpop.f32.mrb[0].mxu0
      %v1658 = vadd.f32 %v1611, %v1657
      %v1659 = vpop.f32.mrb[0].mxu0
      %v1660 = vpop.f32.mrb[0].mxu0
      %v1661 = vadd.f32 %v1614, %v1660
      %v1662 = vpop.f32.mrb[0].mxu0
      %1663 = vdwg.mxu0
      %1664 = vrot.lane.b32.xlu0 %v1111, 112
      %v1665 = vpop.permute.xlu0 %1664
      %1666 = vrot.lane.b32.xlu0 %v1113, 112
      %v1667 = vpop.permute.xlu0 %1666
      %v1669 = vsel %vm1129, %v1665, 0
      %v1672 = vsel %vm1129, %v1667, 0
      %1674 = vmatprep.subr.bf16.mxu0 0
      %1675 = vmatpush1.bf16.xpose.msra.mxu0 %v1672
      %1676 = vmatprep.subr.bf16.mxu0 0
      %1677 = vmatpush1.bf16.xpose.msra.mxu0 0
      %1678 = vmatprep.subr.bf16.mxu0 0
      %1679 = vmatpush1.bf16.xpose.msra.mxu0 0
      %1680 = vmatprep.subr.bf16.mxu0 0
      %1681 = vmatpush1.bf16.xpose.msra.mxu0 0
      %1682 = vmatprep.subr.bf16.mxu0 0
      %1683 = vmatpush1.bf16.xpose.msra.mxu0 0
      %1684 = vmatprep.subr.bf16.mxu0 0
      %1685 = vmatpush1.bf16.xpose.msra.mxu0 0
      %1686 = vmatprep.subr.bf16.mxu0 0
      %1687 = vmatpush1.bf16.xpose.msra.mxu0 0
      %1688 = vmatprep.subr.bf16.mxu0 0
      %1689 = vmatpush1.bf16.xpose.msra.mxu0 0
      %1690 = vmatprep.subr.bf16.mxu0 0
      %1691 = vmatpush1.bf16.xpose.msra.mxu0 0
      %1692 = vmatprep.subr.bf16.mxu0 0
      %1693 = vmatpush1.bf16.xpose.msra.mxu0 0
      %1694 = vmatprep.subr.bf16.mxu0 0
      %1695 = vmatpush1.bf16.xpose.msra.mxu0 0
      %1696 = vmatprep.subr.bf16.mxu0 0
      %1697 = vmatpush1.bf16.xpose.msra.mxu0 0
      %1698 = vmatprep.subr.bf16.mxu0 0
      %1699 = vmatpush1.bf16.xpose.msra.mxu0 0
      %1700 = vmatprep.subr.bf16.mxu0 0
      %1701 = vmatpush1.bf16.xpose.msra.mxu0 0
      %1702 = vmatprep.subr.bf16.mxu0 0
      %1703 = vmatpush1.bf16.xpose.msra.mxu0 0
      %1704 = vmatprep.subr.bf16.mxu0 0
      %1705 = vmatpush1.bf16.xpose.msra.mxu0 0
      %1706 = vmatprep.mubr.bf16.mxu0 0
      %1707 = vmatmul.mubr.bf16.gmra.mrb[0].mxu0 %v1669
      %v1708 = vpop.f32.mrb[0].mxu0
      %v1709 = vadd.f32 %v1122, %v1708
      %v1710 = vpop.f32.mrb[0].mxu0
      %v1711 = vpop.f32.mrb[0].mxu0
      %v1712 = vpop.f32.mrb[0].mxu0
      %1713 = vdwg.mxu0
      %1714 = vrot.lane.b32.xlu0 %v1112, 112
      %v1715 = vpop.permute.xlu0 %1714
      %1716 = vrot.lane.b32.xlu0 %v1114, 112
      %v1717 = vpop.permute.xlu0 %1716
      %v1719 = vsel %vm1129, %v1715, 0
      %v1722 = vsel %vm1129, %v1717, 0
      %1724 = vmatprep.subr.bf16.mxu0 0
      %1725 = vmatpush1.bf16.xpose.msra.mxu0 %v1722
      %1726 = vmatprep.subr.bf16.mxu0 0
      %1727 = vmatpush1.bf16.xpose.msra.mxu0 0
      %1728 = vmatprep.subr.bf16.mxu0 0
      %1729 = vmatpush1.bf16.xpose.msra.mxu0 0
      %1730 = vmatprep.subr.bf16.mxu0 0
      %1731 = vmatpush1.bf16.xpose.msra.mxu0 0
      %1732 = vmatprep.subr.bf16.mxu0 0
      %1733 = vmatpush1.bf16.xpose.msra.mxu0 0
      %1734 = vmatprep.subr.bf16.mxu0 0
      %1735 = vmatpush1.bf16.xpose.msra.mxu0 0
      %1736 = vmatprep.subr.bf16.mxu0 0
      %1737 = vmatpush1.bf16.xpose.msra.mxu0 0
      %1738 = vmatprep.subr.bf16.mxu0 0
      %1739 = vmatpush1.bf16.xpose.msra.mxu0 0
      %1740 = vmatprep.subr.bf16.mxu0 0
      %1741 = vmatpush1.bf16.xpose.msra.mxu0 0
      %1742 = vmatprep.subr.bf16.mxu0 0
      %1743 = vmatpush1.bf16.xpose.msra.mxu0 0
      %1744 = vmatprep.subr.bf16.mxu0 0
      %1745 = vmatpush1.bf16.xpose.msra.mxu0 0
      %1746 = vmatprep.subr.bf16.mxu0 0
      %1747 = vmatpush1.bf16.xpose.msra.mxu0 0
      %1748 = vmatprep.subr.bf16.mxu0 0
      %1749 = vmatpush1.bf16.xpose.msra.mxu0 0
      %1750 = vmatprep.subr.bf16.mxu0 0
      %1751 = vmatpush1.bf16.xpose.msra.mxu0 0
      %1752 = vmatprep.subr.bf16.mxu0 0
      %1753 = vmatpush1.bf16.xpose.msra.mxu0 0
      %1754 = vmatprep.subr.bf16.mxu0 0
      %1755 = vmatpush1.bf16.xpose.msra.mxu0 0
      %1756 = vmatprep.mubr.bf16.mxu0 0
      %1757 = vmatmul.mubr.bf16.gmra.mrb[0].mxu0 %v1719
      %v1758 = vpop.f32.mrb[0].mxu0
      %v1759 = vadd.f32 %v1126, %v1758
      %v1760 = vpop.f32.mrb[0].mxu0
      %v1761 = vpop.f32.mrb[0].mxu0
      %v1762 = vpop.f32.mrb[0].mxu0
      %1763 = vdwg.mxu0
      %v1764 = vsel %vm1129, %v1709, -inf
      %1765 = vmax.xlane.f32.xlu0 %v1764
      %v1766 = vpop.xlane.xlu0 %1765
      %v1767 = vsel %vm1129, %v1759, -inf
      %1768 = vmax.xlane.f32.xlu0 %v1767
      %v1769 = vpop.xlane.xlu0 %1768
      %v1770 = vsub.f32 %v1709, %v1766
      %v1771 = vsub.f32 %v1759, %v1769
      %v1772 = vmul.f32 %v1770, 1.442695
      %v1773 = vpow.pop %v1772
      %v1774 = vmul.f32 %v1771, 1.442695
      %v1775 = vpow.pop %v1774
      %v1776 = vsel %vm1129, %v1773, 0.0
      %1777 = vadd.xlane.f32.xlu0 %v1776
      %v1778 = vpop.xlane.xlu0 %1777
      %v1779 = vsel %vm1129, %v1775, 0.0
      %1780 = vadd.xlane.f32.xlu0 %v1779
      %v1781 = vpop.xlane.xlu0 %1780
      %v1782 = vrcp.pop %v1778
      %v1783 = vrcp.pop %v1781
      %v1784 = vmul.f32 %v1773, %v1782
      %v1785 = vmul.f32 %v1775, %v1783
      %v1786 = vpack.c.bf16 %v1784, %v1784
      %v1787 = vpack.c.bf16 %v1785, %v1785
      %1788 = vrot.lane.b32.xlu0 %v1115, 112
      %v1789 = vpop.permute.xlu0 %1788
      %v1791 = vsel %vm1129, %v1786, 0
      %v1794 = vsel %vm1249, %v1789, 0
      %1796 = vmatprep.subr.bf16.mxu0 0
      %1797 = vmatpush1.bf16.msra.mxu0 %v1794
      %1798 = vmatprep.subr.bf16.mxu0 0
      %1799 = vmatpush1.bf16.msra.mxu0 0
      %1800 = vmatprep.subr.bf16.mxu0 0
      %1801 = vmatpush1.bf16.msra.mxu0 0
      %1802 = vmatprep.subr.bf16.mxu0 0
      %1803 = vmatpush1.bf16.msra.mxu0 0
      %1804 = vmatprep.subr.bf16.mxu0 0
      %1805 = vmatpush1.bf16.msra.mxu0 0
      %1806 = vmatprep.subr.bf16.mxu0 0
      %1807 = vmatpush1.bf16.msra.mxu0 0
      %1808 = vmatprep.subr.bf16.mxu0 0
      %1809 = vmatpush1.bf16.msra.mxu0 0
      %1810 = vmatprep.subr.bf16.mxu0 0
      %1811 = vmatpush1.bf16.msra.mxu0 0
      %1812 = vmatprep.subr.bf16.mxu0 0
      %1813 = vmatpush1.bf16.msra.mxu0 0
      %1814 = vmatprep.subr.bf16.mxu0 0
      %1815 = vmatpush1.bf16.msra.mxu0 0
      %1816 = vmatprep.subr.bf16.mxu0 0
      %1817 = vmatpush1.bf16.msra.mxu0 0
      %1818 = vmatprep.subr.bf16.mxu0 0
      %1819 = vmatpush1.bf16.msra.mxu0 0
      %1820 = vmatprep.subr.bf16.mxu0 0
      %1821 = vmatpush1.bf16.msra.mxu0 0
      %1822 = vmatprep.subr.bf16.mxu0 0
      %1823 = vmatpush1.bf16.msra.mxu0 0
      %1824 = vmatprep.subr.bf16.mxu0 0
      %1825 = vmatpush1.bf16.msra.mxu0 0
      %1826 = vmatprep.subr.bf16.mxu0 0
      %1827 = vmatpush1.bf16.msra.mxu0 0
      %1828 = vmatprep.mubr.bf16.mxu0 0
      %1829 = vmatmul.mubr.bf16.gmra.mrb[0].mxu0 %v1791
      %v1830 = vpop.f32.mrb[0].mxu0
      %v1831 = vadd.f32 0.0, %v1830
      %v1832 = vpop.f32.mrb[0].mxu0
      %v1833 = vpop.f32.mrb[0].mxu0
      %v1834 = vpop.f32.mrb[0].mxu0
      %1835 = vdwg.mxu0
      %1836 = vrot.lane.b32.xlu0 %v1116, 112
      %v1837 = vpop.permute.xlu0 %1836
      %v1839 = vsel %vm1129, %v1787, 0
      %v1842 = vsel %vm1249, %v1837, 0
      %1844 = vmatprep.subr.bf16.mxu0 0
      %1845 = vmatpush1.bf16.msra.mxu0 %v1842
      %1846 = vmatprep.subr.bf16.mxu0 0
      %1847 = vmatpush1.bf16.msra.mxu0 0
      %1848 = vmatprep.subr.bf16.mxu0 0
      %1849 = vmatpush1.bf16.msra.mxu0 0
      %1850 = vmatprep.subr.bf16.mxu0 0
      %1851 = vmatpush1.bf16.msra.mxu0 0
      %1852 = vmatprep.subr.bf16.mxu0 0
      %1853 = vmatpush1.bf16.msra.mxu0 0
      %1854 = vmatprep.subr.bf16.mxu0 0
      %1855 = vmatpush1.bf16.msra.mxu0 0
      %1856 = vmatprep.subr.bf16.mxu0 0
      %1857 = vmatpush1.bf16.msra.mxu0 0
      %1858 = vmatprep.subr.bf16.mxu0 0
      %1859 = vmatpush1.bf16.msra.mxu0 0
      %1860 = vmatprep.subr.bf16.mxu0 0
      %1861 = vmatpush1.bf16.msra.mxu0 0
      %1862 = vmatprep.subr.bf16.mxu0 0
      %1863 = vmatpush1.bf16.msra.mxu0 0
      %1864 = vmatprep.subr.bf16.mxu0 0
      %1865 = vmatpush1.bf16.msra.mxu0 0
      %1866 = vmatprep.subr.bf16.mxu0 0
      %1867 = vmatpush1.bf16.msra.mxu0 0
      %1868 = vmatprep.subr.bf16.mxu0 0
      %1869 = vmatpush1.bf16.msra.mxu0 0
      %1870 = vmatprep.subr.bf16.mxu0 0
      %1871 = vmatpush1.bf16.msra.mxu0 0
      %1872 = vmatprep.subr.bf16.mxu0 0
      %1873 = vmatpush1.bf16.msra.mxu0 0
      %1874 = vmatprep.subr.bf16.mxu0 0
      %1875 = vmatpush1.bf16.msra.mxu0 0
      %1876 = vmatprep.mubr.bf16.mxu0 0
      %1877 = vmatmul.mubr.bf16.gmra.mrb[0].mxu0 %v1839
      %v1878 = vpop.f32.mrb[0].mxu0
      %v1879 = vadd.f32 0.0, %v1878
      %v1880 = vpop.f32.mrb[0].mxu0
      %v1881 = vpop.f32.mrb[0].mxu0
      %v1882 = vpop.f32.mrb[0].mxu0
      %1883 = vdwg.mxu0
      %v1884 = vpack.c.bf16 %v1879, %v1831
      %s1885 = scalar_lea.vmem %s823, 8
      %v1886 = vld [vmem:[%s1885] sm:$0xf]
      %v1888 = vsel %vm1129, %v1884, 0
      %v1891 = vsel %vm1249, %v1886, 0
      %1893 = vmatprep.subr.bf16.mxu0 0
      %1894 = vmatpush1.bf16.msra.mxu0 %v1891
      %1895 = vmatprep.subr.bf16.mxu0 0
      %1896 = vmatpush1.bf16.msra.mxu0 0
      %1897 = vmatprep.subr.bf16.mxu0 0
      %1898 = vmatpush1.bf16.msra.mxu0 0
      %1899 = vmatprep.subr.bf16.mxu0 0
      %1900 = vmatpush1.bf16.msra.mxu0 0
      %1901 = vmatprep.subr.bf16.mxu0 0
      %1902 = vmatpush1.bf16.msra.mxu0 0
      %1903 = vmatprep.subr.bf16.mxu0 0
      %1904 = vmatpush1.bf16.msra.mxu0 0
      %1905 = vmatprep.subr.bf16.mxu0 0
      %1906 = vmatpush1.bf16.msra.mxu0 0
      %1907 = vmatprep.subr.bf16.mxu0 0
      %1908 = vmatpush1.bf16.msra.mxu0 0
      %1909 = vmatprep.subr.bf16.mxu0 0
      %1910 = vmatpush1.bf16.msra.mxu0 0
      %1911 = vmatprep.subr.bf16.mxu0 0
      %1912 = vmatpush1.bf16.msra.mxu0 0
      %1913 = vmatprep.subr.bf16.mxu0 0
      %1914 = vmatpush1.bf16.msra.mxu0 0
      %1915 = vmatprep.subr.bf16.mxu0 0
      %1916 = vmatpush1.bf16.msra.mxu0 0
      %1917 = vmatprep.subr.bf16.mxu0 0
      %1918 = vmatpush1.bf16.msra.mxu0 0
      %1919 = vmatprep.subr.bf16.mxu0 0
      %1920 = vmatpush1.bf16.msra.mxu0 0
      %1921 = vmatprep.subr.bf16.mxu0 0
      %1922 = vmatpush1.bf16.msra.mxu0 0
      %1923 = vmatprep.subr.bf16.mxu0 0
      %1924 = vmatpush1.bf16.msra.mxu0 0
      %1925 = vmatprep.mubr.bf16.mxu0 0
      %1926 = vmatmul.mubr.bf16.gmra.mrb[0].mxu0 %v1888
      %v1927 = vpop.f32.mrb[0].mxu0
      %v1928 = vadd.f32 0.0, %v1927
      %v1929 = vpop.f32.mrb[0].mxu0
      %v1930 = vpop.f32.mrb[0].mxu0
      %v1931 = vadd.f32 0.0, %v1930
      %v1932 = vpop.f32.mrb[0].mxu0
      %1933 = vdwg.mxu0
      %v1934 = vadd.f32 %v1658, %v1928
      %v1935 = vadd.f32 %v1661, %v1931
      %1936 = vrot.lane.b32.xlu0 %v1111, 104
      %v1937 = vpop.permute.xlu0 %1936
      %1938 = vrot.lane.b32.xlu0 %v1113, 104
      %v1939 = vpop.permute.xlu0 %1938
      %v1941 = vsel %vm1129, %v1937, 0
      %v1944 = vsel %vm1129, %v1939, 0
      %1946 = vmatprep.subr.bf16.mxu0 0
      %1947 = vmatpush1.bf16.xpose.msra.mxu0 %v1944
      %1948 = vmatprep.subr.bf16.mxu0 0
      %1949 = vmatpush1.bf16.xpose.msra.mxu0 0
      %1950 = vmatprep.subr.bf16.mxu0 0
      %1951 = vmatpush1.bf16.xpose.msra.mxu0 0
      %1952 = vmatprep.subr.bf16.mxu0 0
      %1953 = vmatpush1.bf16.xpose.msra.mxu0 0
      %1954 = vmatprep.subr.bf16.mxu0 0
      %1955 = vmatpush1.bf16.xpose.msra.mxu0 0
      %1956 = vmatprep.subr.bf16.mxu0 0
      %1957 = vmatpush1.bf16.xpose.msra.mxu0 0
      %1958 = vmatprep.subr.bf16.mxu0 0
      %1959 = vmatpush1.bf16.xpose.msra.mxu0 0
      %1960 = vmatprep.subr.bf16.mxu0 0
      %1961 = vmatpush1.bf16.xpose.msra.mxu0 0
      %1962 = vmatprep.subr.bf16.mxu0 0
      %1963 = vmatpush1.bf16.xpose.msra.mxu0 0
      %1964 = vmatprep.subr.bf16.mxu0 0
      %1965 = vmatpush1.bf16.xpose.msra.mxu0 0
      %1966 = vmatprep.subr.bf16.mxu0 0
      %1967 = vmatpush1.bf16.xpose.msra.mxu0 0
      %1968 = vmatprep.subr.bf16.mxu0 0
      %1969 = vmatpush1.bf16.xpose.msra.mxu0 0
      %1970 = vmatprep.subr.bf16.mxu0 0
      %1971 = vmatpush1.bf16.xpose.msra.mxu0 0
      %1972 = vmatprep.subr.bf16.mxu0 0
      %1973 = vmatpush1.bf16.xpose.msra.mxu0 0
      %1974 = vmatprep.subr.bf16.mxu0 0
      %1975 = vmatpush1.bf16.xpose.msra.mxu0 0
      %1976 = vmatprep.subr.bf16.mxu0 0
      %1977 = vmatpush1.bf16.xpose.msra.mxu0 0
      %1978 = vmatprep.mubr.bf16.mxu0 0
      %1979 = vmatmul.mubr.bf16.gmra.mrb[0].mxu0 %v1941
      %v1980 = vpop.f32.mrb[0].mxu0
      %v1981 = vadd.f32 %v1122, %v1980
      %v1982 = vpop.f32.mrb[0].mxu0
      %v1983 = vpop.f32.mrb[0].mxu0
      %v1984 = vpop.f32.mrb[0].mxu0
      %1985 = vdwg.mxu0
      %1986 = vrot.lane.b32.xlu0 %v1112, 104
      %v1987 = vpop.permute.xlu0 %1986
      %1988 = vrot.lane.b32.xlu0 %v1114, 104
      %v1989 = vpop.permute.xlu0 %1988
      %v1991 = vsel %vm1129, %v1987, 0
      %v1994 = vsel %vm1129, %v1989, 0
      %1996 = vmatprep.subr.bf16.mxu0 0
      %1997 = vmatpush1.bf16.xpose.msra.mxu0 %v1994
      %1998 = vmatprep.subr.bf16.mxu0 0
      %1999 = vmatpush1.bf16.xpose.msra.mxu0 0
      %2000 = vmatprep.subr.bf16.mxu0 0
      %2001 = vmatpush1.bf16.xpose.msra.mxu0 0
      %2002 = vmatprep.subr.bf16.mxu0 0
      %2003 = vmatpush1.bf16.xpose.msra.mxu0 0
      %2004 = vmatprep.subr.bf16.mxu0 0
      %2005 = vmatpush1.bf16.xpose.msra.mxu0 0
      %2006 = vmatprep.subr.bf16.mxu0 0
      %2007 = vmatpush1.bf16.xpose.msra.mxu0 0
      %2008 = vmatprep.subr.bf16.mxu0 0
      %2009 = vmatpush1.bf16.xpose.msra.mxu0 0
      %2010 = vmatprep.subr.bf16.mxu0 0
      %2011 = vmatpush1.bf16.xpose.msra.mxu0 0
      %2012 = vmatprep.subr.bf16.mxu0 0
      %2013 = vmatpush1.bf16.xpose.msra.mxu0 0
      %2014 = vmatprep.subr.bf16.mxu0 0
      %2015 = vmatpush1.bf16.xpose.msra.mxu0 0
      %2016 = vmatprep.subr.bf16.mxu0 0
      %2017 = vmatpush1.bf16.xpose.msra.mxu0 0
      %2018 = vmatprep.subr.bf16.mxu0 0
      %2019 = vmatpush1.bf16.xpose.msra.mxu0 0
      %2020 = vmatprep.subr.bf16.mxu0 0
      %2021 = vmatpush1.bf16.xpose.msra.mxu0 0
      %2022 = vmatprep.subr.bf16.mxu0 0
      %2023 = vmatpush1.bf16.xpose.msra.mxu0 0
      %2024 = vmatprep.subr.bf16.mxu0 0
      %2025 = vmatpush1.bf16.xpose.msra.mxu0 0
      %2026 = vmatprep.subr.bf16.mxu0 0
      %2027 = vmatpush1.bf16.xpose.msra.mxu0 0
      %2028 = vmatprep.mubr.bf16.mxu0 0
      %2029 = vmatmul.mubr.bf16.gmra.mrb[0].mxu0 %v1991
      %v2030 = vpop.f32.mrb[0].mxu0
      %v2031 = vadd.f32 %v1126, %v2030
      %v2032 = vpop.f32.mrb[0].mxu0
      %v2033 = vpop.f32.mrb[0].mxu0
      %v2034 = vpop.f32.mrb[0].mxu0
      %2035 = vdwg.mxu0
      %v2036 = vsel %vm1129, %v1981, -inf
      %2037 = vmax.xlane.f32.xlu0 %v2036
      %v2038 = vpop.xlane.xlu0 %2037
      %v2039 = vsel %vm1129, %v2031, -inf
      %2040 = vmax.xlane.f32.xlu0 %v2039
      %v2041 = vpop.xlane.xlu0 %2040
      %v2042 = vsub.f32 %v1981, %v2038
      %v2043 = vsub.f32 %v2031, %v2041
      %v2044 = vmul.f32 %v2042, 1.442695
      %v2045 = vpow.pop %v2044
      %v2046 = vmul.f32 %v2043, 1.442695
      %v2047 = vpow.pop %v2046
      %v2048 = vsel %vm1129, %v2045, 0.0
      %2049 = vadd.xlane.f32.xlu0 %v2048
      %v2050 = vpop.xlane.xlu0 %2049
      %v2051 = vsel %vm1129, %v2047, 0.0
      %2052 = vadd.xlane.f32.xlu0 %v2051
      %v2053 = vpop.xlane.xlu0 %2052
      %v2054 = vrcp.pop %v2050
      %v2055 = vrcp.pop %v2053
      %v2056 = vmul.f32 %v2045, %v2054
      %v2057 = vmul.f32 %v2047, %v2055
      %v2058 = vpack.c.bf16 %v2056, %v2056
      %v2059 = vpack.c.bf16 %v2057, %v2057
      %2060 = vrot.lane.b32.xlu0 %v1115, 104
      %v2061 = vpop.permute.xlu0 %2060
      %v2063 = vsel %vm1129, %v2058, 0
      %v2066 = vsel %vm1249, %v2061, 0
      %2068 = vmatprep.subr.bf16.mxu0 0
      %2069 = vmatpush1.bf16.msra.mxu0 %v2066
      %2070 = vmatprep.subr.bf16.mxu0 0
      %2071 = vmatpush1.bf16.msra.mxu0 0
      %2072 = vmatprep.subr.bf16.mxu0 0
      %2073 = vmatpush1.bf16.msra.mxu0 0
      %2074 = vmatprep.subr.bf16.mxu0 0
      %2075 = vmatpush1.bf16.msra.mxu0 0
      %2076 = vmatprep.subr.bf16.mxu0 0
      %2077 = vmatpush1.bf16.msra.mxu0 0
      %2078 = vmatprep.subr.bf16.mxu0 0
      %2079 = vmatpush1.bf16.msra.mxu0 0
      %2080 = vmatprep.subr.bf16.mxu0 0
      %2081 = vmatpush1.bf16.msra.mxu0 0
      %2082 = vmatprep.subr.bf16.mxu0 0
      %2083 = vmatpush1.bf16.msra.mxu0 0
      %2084 = vmatprep.subr.bf16.mxu0 0
      %2085 = vmatpush1.bf16.msra.mxu0 0
      %2086 = vmatprep.subr.bf16.mxu0 0
      %2087 = vmatpush1.bf16.msra.mxu0 0
      %2088 = vmatprep.subr.bf16.mxu0 0
      %2089 = vmatpush1.bf16.msra.mxu0 0
      %2090 = vmatprep.subr.bf16.mxu0 0
      %2091 = vmatpush1.bf16.msra.mxu0 0
      %2092 = vmatprep.subr.bf16.mxu0 0
      %2093 = vmatpush1.bf16.msra.mxu0 0
      %2094 = vmatprep.subr.bf16.mxu0 0
      %2095 = vmatpush1.bf16.msra.mxu0 0
      %2096 = vmatprep.subr.bf16.mxu0 0
      %2097 = vmatpush1.bf16.msra.mxu0 0
      %2098 = vmatprep.subr.bf16.mxu0 0
      %2099 = vmatpush1.bf16.msra.mxu0 0
      %2100 = vmatprep.mubr.bf16.mxu0 0
      %2101 = vmatmul.mubr.bf16.gmra.mrb[0].mxu0 %v2063
      %v2102 = vpop.f32.mrb[0].mxu0
      %v2103 = vadd.f32 0.0, %v2102
      %v2104 = vpop.f32.mrb[0].mxu0
      %v2105 = vpop.f32.mrb[0].mxu0
      %v2106 = vpop.f32.mrb[0].mxu0
      %2107 = vdwg.mxu0
      %2108 = vrot.lane.b32.xlu0 %v1116, 104
      %v2109 = vpop.permute.xlu0 %2108
      %v2111 = vsel %vm1129, %v2059, 0
      %v2114 = vsel %vm1249, %v2109, 0
      %2116 = vmatprep.subr.bf16.mxu0 0
      %2117 = vmatpush1.bf16.msra.mxu0 %v2114
      %2118 = vmatprep.subr.bf16.mxu0 0
      %2119 = vmatpush1.bf16.msra.mxu0 0
      %2120 = vmatprep.subr.bf16.mxu0 0
      %2121 = vmatpush1.bf16.msra.mxu0 0
      %2122 = vmatprep.subr.bf16.mxu0 0
      %2123 = vmatpush1.bf16.msra.mxu0 0
      %2124 = vmatprep.subr.bf16.mxu0 0
      %2125 = vmatpush1.bf16.msra.mxu0 0
      %2126 = vmatprep.subr.bf16.mxu0 0
      %2127 = vmatpush1.bf16.msra.mxu0 0
      %2128 = vmatprep.subr.bf16.mxu0 0
      %2129 = vmatpush1.bf16.msra.mxu0 0
      %2130 = vmatprep.subr.bf16.mxu0 0
      %2131 = vmatpush1.bf16.msra.mxu0 0
      %2132 = vmatprep.subr.bf16.mxu0 0
      %2133 = vmatpush1.bf16.msra.mxu0 0
      %2134 = vmatprep.subr.bf16.mxu0 0
      %2135 = vmatpush1.bf16.msra.mxu0 0
      %2136 = vmatprep.subr.bf16.mxu0 0
      %2137 = vmatpush1.bf16.msra.mxu0 0
      %2138 = vmatprep.subr.bf16.mxu0 0
      %2139 = vmatpush1.bf16.msra.mxu0 0
      %2140 = vmatprep.subr.bf16.mxu0 0
      %2141 = vmatpush1.bf16.msra.mxu0 0
      %2142 = vmatprep.subr.bf16.mxu0 0
      %2143 = vmatpush1.bf16.msra.mxu0 0
      %2144 = vmatprep.subr.bf16.mxu0 0
      %2145 = vmatpush1.bf16.msra.mxu0 0
      %2146 = vmatprep.subr.bf16.mxu0 0
      %2147 = vmatpush1.bf16.msra.mxu0 0
      %2148 = vmatprep.mubr.bf16.mxu0 0
      %2149 = vmatmul.mubr.bf16.gmra.mrb[0].mxu0 %v2111
      %v2150 = vpop.f32.mrb[0].mxu0
      %v2151 = vadd.f32 0.0, %v2150
      %v2152 = vpop.f32.mrb[0].mxu0
      %v2153 = vpop.f32.mrb[0].mxu0
      %v2154 = vpop.f32.mrb[0].mxu0
      %2155 = vdwg.mxu0
      %v2156 = vpack.c.bf16 %v2151, %v2103
      %s2157 = scalar_lea.vmem %s823, 12
      %v2158 = vld [vmem:[%s2157] sm:$0xf]
      %v2160 = vsel %vm1129, %v2156, 0
      %v2163 = vsel %vm1249, %v2158, 0
      %2165 = vmatprep.subr.bf16.mxu0 0
      %2166 = vmatpush1.bf16.msra.mxu0 %v2163
      %2167 = vmatprep.subr.bf16.mxu0 0
      %2168 = vmatpush1.bf16.msra.mxu0 0
      %2169 = vmatprep.subr.bf16.mxu0 0
      %2170 = vmatpush1.bf16.msra.mxu0 0
      %2171 = vmatprep.subr.bf16.mxu0 0
      %2172 = vmatpush1.bf16.msra.mxu0 0
      %2173 = vmatprep.subr.bf16.mxu0 0
      %2174 = vmatpush1.bf16.msra.mxu0 0
      %2175 = vmatprep.subr.bf16.mxu0 0
      %2176 = vmatpush1.bf16.msra.mxu0 0
      %2177 = vmatprep.subr.bf16.mxu0 0
      %2178 = vmatpush1.bf16.msra.mxu0 0
      %2179 = vmatprep.subr.bf16.mxu0 0
      %2180 = vmatpush1.bf16.msra.mxu0 0
      %2181 = vmatprep.subr.bf16.mxu0 0
      %2182 = vmatpush1.bf16.msra.mxu0 0
      %2183 = vmatprep.subr.bf16.mxu0 0
      %2184 = vmatpush1.bf16.msra.mxu0 0
      %2185 = vmatprep.subr.bf16.mxu0 0
      %2186 = vmatpush1.bf16.msra.mxu0 0
      %2187 = vmatprep.subr.bf16.mxu0 0
      %2188 = vmatpush1.bf16.msra.mxu0 0
      %2189 = vmatprep.subr.bf16.mxu0 0
      %2190 = vmatpush1.bf16.msra.mxu0 0
      %2191 = vmatprep.subr.bf16.mxu0 0
      %2192 = vmatpush1.bf16.msra.mxu0 0
      %2193 = vmatprep.subr.bf16.mxu0 0
      %2194 = vmatpush1.bf16.msra.mxu0 0
      %2195 = vmatprep.subr.bf16.mxu0 0
      %2196 = vmatpush1.bf16.msra.mxu0 0
      %2197 = vmatprep.mubr.bf16.mxu0 0
      %2198 = vmatmul.mubr.bf16.gmra.mrb[0].mxu0 %v2160
      %v2199 = vpop.f32.mrb[0].mxu0
      %v2200 = vadd.f32 0.0, %v2199
      %v2201 = vpop.f32.mrb[0].mxu0
      %v2202 = vpop.f32.mrb[0].mxu0
      %v2203 = vadd.f32 0.0, %v2202
      %v2204 = vpop.f32.mrb[0].mxu0
      %2205 = vdwg.mxu0
      %v2206 = vadd.f32 %v1934, %v2200
      %v2207 = vadd.f32 %v1935, %v2203
      %v2208 = vld [vmem:[%s826] sm:$0x1]
      %v2210 = vlaneseq
      %v2211 = vshrl.u32 %v2210, 7
      %v2212 = vsub.s32 0, %v2211
      %v2213 = vrot.slane %v2208, %v2212
      %v2215 = vadd.f32 %v2206, %v2213
      %v2216 = vadd.f32 %v2207, %v2213
      %v2217 = vadd.f32 %v2215, %v910
      %v2218 = vadd.f32 %v2216, %v911
      %v2219 = vld [vmem:[%s829] sm:$0x1]
      %v2220 = vld [vmem:[%s832] sm:$0x1]
      %v2221 = vsel %vm936, %v2217, 0.0
      %2222 = vadd.xlane.f32.xlu0 %v2221
      %v2223 = vpop.xlane.xlu0 %2222
      %v2224 = vsel %vm936, %v2218, 0.0
      %2225 = vadd.xlane.f32.xlu0 %v2224
      %v2226 = vpop.xlane.xlu0 %2225
      %v2227 = vrcp.pop 32.0
      %v2228 = vmul.f32 %v2223, %v2227
      %v2229 = vmul.f32 %v2226, %v2227
      %v2230 = vsub.f32 %v2217, %v2228
      %v2231 = vsub.f32 %v2218, %v2229
      %v2232 = vmul.f32 %v2230, %v2230
      %v2233 = vmul.f32 %v2231, %v2231
      %v2234 = vsel %vm936, %v2232, 0.0
      %2235 = vadd.xlane.f32.xlu0 %v2234
      %v2236 = vpop.xlane.xlu0 %2235
      %v2237 = vsel %vm936, %v2233, 0.0
      %2238 = vadd.xlane.f32.xlu0 %v2237
      %v2239 = vpop.xlane.xlu0 %2238
      %v2240 = vmul.f32 %v2236, %v2227
      %v2241 = vmul.f32 %v2239, %v2227
      %v2242 = vadd.f32 %v2240, 1e-12
      %v2243 = vadd.f32 %v2241, 1e-12
      %v2244 = vrsqrt.pop %v2242
      %v2245 = vrsqrt.pop %v2243
      %v2246 = vmul.f32 %v2230, %v2244
      %v2247 = vmul.f32 %v2231, %v2245
      %v2249 = vlaneseq
      %v2250 = vshrl.u32 %v2249, 7
      %v2251 = vsub.s32 0, %v2250
      %v2252 = vrot.slane %v2219, %v2251
      %v2254 = vmul.f32 %v2246, %v2252
      %v2255 = vmul.f32 %v2247, %v2252
      %v2257 = vlaneseq
      %v2258 = vshrl.u32 %v2257, 7
      %v2259 = vsub.s32 0, %v2258
      %v2260 = vrot.slane %v2220, %v2259
      %v2262 = vadd.f32 %v2254, %v2260
      %v2263 = vadd.f32 %v2255, %v2260
      %v2264 = vpack.c.bf16 %v2263, %v2262
      %v2265 = vld [vmem:[%s837] sm:$0xf]
      %v2266 = vld [vmem:[%s837 + $0x4] sm:$0xf]
      %v2267 = vld [vmem:[%s837 + $0x8] sm:$0xf]
      %v2268 = vld [vmem:[%s837 + $0xc] sm:$0xf]
      %v2269 = vld [vmem:[%s840] sm:$0x1]
      %v2271 = vlaneseq
      %v2272 = vshrl.u32 %v2271, 7
      %v2273 = vsub.s32 0, %v2272
      %v2274 = vrot.slane %v2269, %v2273
      %v2280 = vunpack.c.l.b16 %v2265
      %v2281 = vunpack.c.l.b16 %v2266
      %v2282 = vunpack.c.l.b16 %v2267
      %v2283 = vunpack.c.l.b16 %v2268
      %v2284 = vpack.c.b16 %v2281, %v2280
      %v2285 = vpack.c.b16 %v2283, %v2282
      %v2289 = vsel %vm936, %v2264, 0
      %2291 = vmatprep.subr.bf16.mxu0 0
      %2292 = vmatpush1.bf16.msra.mxu0 %v2284
      %2293 = vmatprep.subr.bf16.mxu0 0
      %2294 = vmatpush1.bf16.msra.mxu0 %v2285
      %2295 = vmatprep.subr.bf16.mxu0 0
      %2296 = vmatpush1.bf16.msra.mxu0 0
      %2297 = vmatprep.subr.bf16.mxu0 0
      %2298 = vmatpush1.bf16.msra.mxu0 0
      %2299 = vmatprep.subr.bf16.mxu0 0
      %2300 = vmatpush1.bf16.msra.mxu0 0
      %2301 = vmatprep.subr.bf16.mxu0 0
      %2302 = vmatpush1.bf16.msra.mxu0 0
      %2303 = vmatprep.subr.bf16.mxu0 0
      %2304 = vmatpush1.bf16.msra.mxu0 0
      %2305 = vmatprep.subr.bf16.mxu0 0
      %2306 = vmatpush1.bf16.msra.mxu0 0
      %2307 = vmatprep.subr.bf16.mxu0 0
      %2308 = vmatpush1.bf16.msra.mxu0 0
      %2309 = vmatprep.subr.bf16.mxu0 0
      %2310 = vmatpush1.bf16.msra.mxu0 0
      %2311 = vmatprep.subr.bf16.mxu0 0
      %2312 = vmatpush1.bf16.msra.mxu0 0
      %2313 = vmatprep.subr.bf16.mxu0 0
      %2314 = vmatpush1.bf16.msra.mxu0 0
      %2315 = vmatprep.subr.bf16.mxu0 0
      %2316 = vmatpush1.bf16.msra.mxu0 0
      %2317 = vmatprep.subr.bf16.mxu0 0
      %2318 = vmatpush1.bf16.msra.mxu0 0
      %2319 = vmatprep.subr.bf16.mxu0 0
      %2320 = vmatpush1.bf16.msra.mxu0 0
      %2321 = vmatprep.subr.bf16.mxu0 0
      %2322 = vmatpush1.bf16.msra.mxu0 0
      %2323 = vmatprep.mubr.bf16.mxu0 0
      %2324 = vmatmul.mubr.bf16.gmra.mrb[0].mxu0 %v2289
      %v2325 = vpop.f32.mrb[0].mxu0
      %v2326 = vadd.f32 %v2274, %v2325
      %v2327 = vpop.f32.mrb[0].mxu0
      %v2328 = vpop.f32.mrb[0].mxu0
      %v2329 = vadd.f32 %v2274, %v2328
      %v2330 = vpop.f32.mrb[0].mxu0
      %2331 = vdwg.mxu0
      %v2332 = vmul.f32 %v2326, 0.5
      %v2333 = vmul.f32 %v2329, 0.5
      %v2334 = vmul.f32 %v2326, 0.044715
      %v2335 = vmul.f32 %v2329, 0.044715
      %v2336 = vmul.f32 %v2334, %v2326
      %v2337 = vmul.f32 %v2335, %v2329
      %v2338 = vmul.f32 %v2336, %v2326
      %v2339 = vmul.f32 %v2337, %v2329
      %v2340 = vadd.f32 %v2326, %v2338
      %v2341 = vadd.f32 %v2329, %v2339
      %v2342 = vmul.f32 %v2340, 0.7978846
      %v2343 = vmul.f32 %v2341, 0.7978846
      %v2344 = vtanh.pop %v2342
      %v2345 = vtanh.pop %v2343
      %v2346 = vadd.f32 %v2344, 1.0
      %v2347 = vadd.f32 %v2345, 1.0
      %v2348 = vmul.f32 %v2332, %v2346
      %v2349 = vmul.f32 %v2333, %v2347
      %v2350 = vpack.c.bf16 %v2349, %v2348
      %v2351 = vld [vmem:[%s845] sm:$0xf]
      %v2352 = vld [vmem:[%s845 + $0x4] sm:$0xf]
      %v2353 = vld [vmem:[%s845 + $0x8] sm:$0xf]
      %v2354 = vld [vmem:[%s845 + $0xc] sm:$0xf]
      %v2355 = vld [vmem:[%s845 + $0x10] sm:$0xf]
      %v2356 = vld [vmem:[%s845 + $0x14] sm:$0xf]
      %v2357 = vld [vmem:[%s845 + $0x18] sm:$0xf]
      %v2358 = vld [vmem:[%s845 + $0x1c] sm:$0xf]
      %v2359 = vld [vmem:[%s848] sm:$0x1]
      %v2361 = vlaneseq
      %v2362 = vshrl.u32 %v2361, 7
      %v2363 = vsub.s32 0, %v2362
      %v2364 = vrot.slane %v2359, %v2363
      %v2374 = vunpack.c.l.b16 %v2351
      %v2375 = vunpack.c.l.b16 %v2352
      %v2376 = vunpack.c.l.b16 %v2353
      %v2377 = vunpack.c.l.b16 %v2354
      %v2378 = vunpack.c.l.b16 %v2355
      %v2379 = vunpack.c.l.b16 %v2356
      %v2380 = vunpack.c.l.b16 %v2357
      %v2381 = vunpack.c.l.b16 %v2358
      %v2382 = vpack.c.b16 %v2375, %v2374
      %v2383 = vpack.c.b16 %v2377, %v2376
      %v2384 = vpack.c.b16 %v2379, %v2378
      %v2385 = vpack.c.b16 %v2381, %v2380
      %vm2390 = vcmask 523264
      %v2392 = vsel %vm2390, %v2350, 0
      %2394 = vmatprep.subr.bf16.mxu0 0
      %2395 = vmatpush1.bf16.msra.mxu0 %v2382
      %2396 = vmatprep.subr.bf16.mxu0 0
      %2397 = vmatpush1.bf16.msra.mxu0 %v2383
      %2398 = vmatprep.subr.bf16.mxu0 0
      %2399 = vmatpush1.bf16.msra.mxu0 %v2384
      %2400 = vmatprep.subr.bf16.mxu0 0
      %2401 = vmatpush1.bf16.msra.mxu0 %v2385
      %2402 = vmatprep.subr.bf16.mxu0 0
      %2403 = vmatpush1.bf16.msra.mxu0 0
      %2404 = vmatprep.subr.bf16.mxu0 0
      %2405 = vmatpush1.bf16.msra.mxu0 0
      %2406 = vmatprep.subr.bf16.mxu0 0
      %2407 = vmatpush1.bf16.msra.mxu0 0
      %2408 = vmatprep.subr.bf16.mxu0 0
      %2409 = vmatpush1.bf16.msra.mxu0 0
      %2410 = vmatprep.subr.bf16.mxu0 0
      %2411 = vmatpush1.bf16.msra.mxu0 0
      %2412 = vmatprep.subr.bf16.mxu0 0
      %2413 = vmatpush1.bf16.msra.mxu0 0
      %2414 = vmatprep.subr.bf16.mxu0 0
      %2415 = vmatpush1.bf16.msra.mxu0 0
      %2416 = vmatprep.subr.bf16.mxu0 0
      %2417 = vmatpush1.bf16.msra.mxu0 0
      %2418 = vmatprep.subr.bf16.mxu0 0
      %2419 = vmatpush1.bf16.msra.mxu0 0
      %2420 = vmatprep.subr.bf16.mxu0 0
      %2421 = vmatpush1.bf16.msra.mxu0 0
      %2422 = vmatprep.subr.bf16.mxu0 0
      %2423 = vmatpush1.bf16.msra.mxu0 0
      %2424 = vmatprep.subr.bf16.mxu0 0
      %2425 = vmatpush1.bf16.msra.mxu0 0
      %2426 = vmatprep.mubr.bf16.mxu0 0
      %2427 = vmatmul.mubr.bf16.gmra.mrb[0].mxu0 %v2392
      %v2428 = vpop.f32.mrb[0].mxu0
      %v2429 = vadd.f32 %v2364, %v2428
      %v2430 = vpop.f32.mrb[0].mxu0
      %v2431 = vpop.f32.mrb[0].mxu0
      %v2432 = vadd.f32 %v2364, %v2431
      %v2433 = vpop.f32.mrb[0].mxu0
      %2434 = vdwg.mxu0
      %v2435 = vadd.f32 %v2429, %v2262
      %v2436 = vadd.f32 %v2432, %v2263
      %v2437 = vld [vmem:[%s851] sm:$0x1]
      %v2438 = vld [vmem:[%s854] sm:$0x1]
      %v2439 = vsel %vm936, %v2435, 0.0
      %2440 = vadd.xlane.f32.xlu0 %v2439
      %v2441 = vpop.xlane.xlu0 %2440
      %v2442 = vsel %vm936, %v2436, 0.0
      %2443 = vadd.xlane.f32.xlu0 %v2442
      %v2444 = vpop.xlane.xlu0 %2443
      %v2445 = vmul.f32 %v2441, %v2227
      %v2446 = vmul.f32 %v2444, %v2227
      %v2447 = vsub.f32 %v2435, %v2445
      %v2448 = vsub.f32 %v2436, %v2446
      %v2449 = vmul.f32 %v2447, %v2447
      %v2450 = vmul.f32 %v2448, %v2448
      %v2451 = vsel %vm936, %v2449, 0.0
      %2452 = vadd.xlane.f32.xlu0 %v2451
      %v2453 = vpop.xlane.xlu0 %2452
      %v2454 = vsel %vm936, %v2450, 0.0
      %2455 = vadd.xlane.f32.xlu0 %v2454
      %v2456 = vpop.xlane.xlu0 %2455
      %v2457 = vmul.f32 %v2453, %v2227
      %v2458 = vmul.f32 %v2456, %v2227
      %v2459 = vadd.f32 %v2457, 1e-12
      %v2460 = vadd.f32 %v2458, 1e-12
      %v2461 = vrsqrt.pop %v2459
      %v2462 = vrsqrt.pop %v2460
      %v2463 = vmul.f32 %v2447, %v2461
      %v2464 = vmul.f32 %v2448, %v2462
      %v2466 = vlaneseq
      %v2467 = vshrl.u32 %v2466, 7
      %v2468 = vsub.s32 0, %v2467
      %v2469 = vrot.slane %v2437, %v2468
      %v2471 = vmul.f32 %v2463, %v2469
      %v2472 = vmul.f32 %v2464, %v2469
      %v2474 = vlaneseq
      %v2475 = vshrl.u32 %v2474, 7
      %v2476 = vsub.s32 0, %v2475
      %v2477 = vrot.slane %v2438, %v2476
      %v2479 = vadd.f32 %v2471, %v2477
      %v2480 = vadd.f32 %v2472, %v2477
      %2481 = vst.msk [vmem:[%s20] sm:$0xff] %vm936, %v2479
      %2482 = vst.msk [vmem:[%s20 + $0x8] sm:$0xff] %vm936, %v2480
      // Predicated region
      $region105: #{bert_encoder_forward.1} parent=99 // pred_check
        %p2483 = pneg %p544
      $region106: #{bert_encoder_forward.1} parent=99 // pred_check_branch
        %2485 = sbr.rel (%p2483) target = $region108
      $region107: #{bert_encoder_forward.1} parent=99 // pred_region
        _
      $region108: #{bert_encoder_forward.1} parent=99 // pred_fallthru
        _
      // Predicated region
      $region109: #{bert_encoder_forward.1} parent=99 // pred_check
        %p2486 = pneg %p544
      $region110: #{bert_encoder_forward.1} parent=99 // pred_check_branch
        %2488 = sbr.rel (%p2486) target = $region112
      $region111: #{bert_encoder_forward.1} parent=99 // pred_region
        _
      $region112: #{bert_encoder_forward.1} parent=99 // pred_fallthru
        _
    $region100: #{bert_encoder_forward.1} parent=5 // pred_fallthru
      _
    %p2489 = scmp.le.s32.totalorder 2, %s26
    // Predicated region
    $region113: #{bert_encoder_forward.1} parent=5 // pred_check
      %p2490 = pneg %p2489
    $region114: #{bert_encoder_forward.1} parent=5 // pred_check_branch
      %2492 = sbr.rel (%p2490) target = $region116
    $region115: #{bert_encoder_forward.1} parent=5 // pred_region
      %s2493 = ssub.s32 %s26, 2
    $region116: #{bert_encoder_forward.1} parent=5 // pred_fallthru
      _
  $region6: #{bert_encoder_forward.1} parent=0 // loop_footer
    %s30 = sadd.s32 1, %s26
  $region7: #{bert_encoder_forward.1} parent=0 // loop_footer_branch
    %25 = sbr.rel target = $region3
  $region8: #{bert_encoder_forward.1} parent=0 // loop_exit
    _

</llo_original>
